<compile_context>
chip_gen: v6e
topology: v6e:2x2x1
jax: 0.10.0
libtpu: 0.0.40
codegen_flags: <defaults>
</compile_context>

<pallas_src>
import functools
import numpy as np
import jax
import jax.numpy as jnp
from jax import lax
from jax.experimental import pallas as pl
from jax.experimental.pallas import tpu as pltpu

PAD = 0
LN_EPS = 1e-5        # torch.nn.LayerNorm default
NEG_BIAS = -1e9      # additive mask bias (underflows to exp()==0 in f32)


# ------------------------- per-(batch, layer) kernel -------------------------

def _decoder_layer_kernel(
        dec_ref, enc_ref, nonpad_ref, tkpad_ref, skpad_ref,
        s_wqkv, s_bqkv, s_wo, s_bo, s_g, s_b,
        e_wq, e_bq, e_wkv, e_bkv, e_wo, e_bo, e_g, e_b,
        f_w1, f_b1, f_w2, f_b2, f_g, f_b,
        o_ref, x_ref,
        *, Lt, Ls, H, d_k, d_v, inv_temp):
    """One grid step = one decoder layer applied to one batch element.

    grid = (B, n_layers); the layer axis is innermost / "arbitrary".  The f32
    activation is carried across layers in the VMEM scratch `x_ref`; per-layer
    bf16 weight blocks are streamed (double-buffered) by the BlockSpec pipeline.
    """
    layer = pl.program_id(1)

    @pl.when(layer == 0)
    def _init():
        x_ref[...] = dec_ref[0]          # embedded decoder input (Lt, D) f32

    x = x_ref[...]                       # (Lt, D)  f32 running activation
    enc = enc_ref[0]                     # (Ls, D)  bf16 encoder output
    non_pad = nonpad_ref[0]              # (Lt, 1)  1.0 on non-PAD target tokens

    # ---- additive attention biases, generated in-kernel (O(L^2) VMEM only) ----
    rows = lax.broadcasted_iota(jnp.int32, (Lt, Lt), 0)
    cols = lax.broadcasted_iota(jnp.int32, (Lt, Lt), 1)
    causal = (cols > rows).astype(jnp.float32)                       # subsequent mask
    slf_bias = jnp.where(causal + tkpad_ref[0] > 0.0, NEG_BIAS, 0.0)  # (Lt, Lt)
    enc_bias = skpad_ref[0] * NEG_BIAS                                # (1, Ls)

    def dense(a, w_ref, b_ref):
        # bf16 MXU operands, f32 accumulation; bias add stays f32.
        return jnp.dot(a.astype(jnp.bfloat16), w_ref[0],
                       preferred_element_type=jnp.float32) + b_ref[0]

    def layer_norm(y, g_ref, b_ref):
        mean = jnp.mean(y, axis=-1, keepdims=True)
        var = jnp.mean((y - mean) ** 2, axis=-1, keepdims=True)
        return (y - mean) * lax.rsqrt(var + LN_EPS) * g_ref[0] + b_ref[0]

    def attention(q2d, k2d, v2d, bias):
        # Heads are folded into a leading batch dim once; a single batched
        # einsum covers all heads for the scores and for P@V (no per-head
        # matmuls, no lane concat of H score tensors).
        # TODO(synk): at real head dims (>=128 lanes) replace the static head
        # slices with a lane-aligned reshape and cast q/k/v/p to bf16 as well.
        qh = jnp.stack([q2d[:, h * d_k:(h + 1) * d_k] for h in range(H)], axis=0)
        kh = jnp.stack([k2d[:, h * d_k:(h + 1) * d_k] for h in range(H)], axis=0)
        vh = jnp.stack([v2d[:, h * d_v:(h + 1) * d_v] for h in range(H)], axis=0)
        s = jnp.einsum('hqd,hkd->hqk', qh, kh,
                       preferred_element_type=jnp.float32) + bias
        s = s - jnp.max(s, axis=-1, keepdims=True)
        p = jnp.exp(s)
        p = p * pl.reciprocal(jnp.sum(p, axis=-1, keepdims=True), approx=True)
        av = jnp.einsum('hqk,hkd->hqd', p, vh,
                        preferred_element_type=jnp.float32)
        return jnp.concatenate([av[h] for h in range(H)], axis=-1)   # (Lq, H*d_v)

    n_q = H * d_k

    # ------------------------ masked self-attention ------------------------
    res = x
    qkv = dense(x, s_wqkv, s_bqkv)               # (Lt, 2*H*d_k + H*d_v), fused QKV
    q = qkv[:, :n_q] * inv_temp                  # 1/sqrt(d_k) folded into q
    k = qkv[:, n_q:2 * n_q]
    v = qkv[:, 2 * n_q:]
    a = attention(q, k, v, slf_bias)
    o = dense(a, s_wo, s_bo)
    # TODO(synk): dropout omitted (inference / eval mode).
    x = layer_norm(o + res, s_g, s_b) * non_pad

    # ---------------------- encoder-decoder attention ----------------------
    res = x
    q = dense(x, e_wq, e_bq) * inv_temp
    kv = dense(enc, e_wkv, e_bkv)                # (Ls, H*d_k + H*d_v), fused KV
    k = kv[:, :n_q]
    v = kv[:, n_q:]
    a = attention(q, k, v, enc_bias)
    o = dense(a, e_wo, e_bo)
    x = layer_norm(o + res, e_g, e_b) * non_pad

    # -------------------------- position-wise FFN --------------------------
    # Conv1d(d_in, d_hid, 1) -> relu -> Conv1d(d_hid, d_in, 1) == token MLP
    res = x
    h1 = jnp.maximum(dense(x, f_w1, f_b1), 0.0)
    o = dense(h1, f_w2, f_b2)
    x = layer_norm(o + res, f_g, f_b) * non_pad

    x_ref[...] = x         # carry to next layer
    o_ref[0] = x           # resident output block; written back when batch changes


# ------------------------------ model glue ---------------------------------

def get_sinusoid_encoding_table(n_position, d_hid, padding_idx=None):
    def cal_angle(position, hid_idx):
        return position / np.power(10000, 2 * (hid_idx // 2) / d_hid)
    table = np.array([[cal_angle(pos, j) for j in range(d_hid)]
                      for pos in range(n_position)], dtype=np.float64)
    table[:, 0::2] = np.sin(table[:, 0::2])
    table[:, 1::2] = np.cos(table[:, 1::2])
    if padding_idx is not None:
        table[padding_idx] = 0.0
    return jnp.asarray(table, jnp.float32)


def init_params(key, n_vocab, n_position, d_word_vec, n_layers,
                n_head, d_k, d_v, d_model, d_inner):
    keys = list(jax.random.split(key, 8 * 12 * max(n_layers, 1) + 4))
    it = iter(keys)

    def nrm(shape, scale):
        # Parameters are bf16-representable (round-tripped) so the bf16 kernel
        # and the f32 reference see identical weight values.
        w = scale * jax.random.normal(next(it), shape)
        return w.astype(jnp.bfloat16).astype(jnp.float32)

    emb = nrm((n_vocab, d_word_vec), 1.0).at[PAD].set(0.0)   # padding_idx=PAD
    pos = get_sinusoid_encoding_table(n_position, d_word_vec, padding_idx=0)

    def mha_p():
        s_in = 1.0 / np.sqrt(d_model)
        s_out = 1.0 / np.sqrt(n_head * d_v)
        return dict(
            wq=nrm((d_model, n_head * d_k), s_in), bq=nrm((1, n_head * d_k), s_in),
            wk=nrm((d_model, n_head * d_k), s_in), bk=nrm((1, n_head * d_k), s_in),
            wv=nrm((d_model, n_head * d_v), s_in), bv=nrm((1, n_head * d_v), s_in),
            wo=nrm((n_head * d_v, d_model), s_out), bo=nrm((1, d_model), s_out),
            ln_g=jnp.ones((1, d_model), jnp.float32),
            ln_b=jnp.zeros((1, d_model), jnp.float32),
        )

    layers = []
    for _ in range(n_layers):
        layers.append(dict(
            slf=mha_p(),
            enc=mha_p(),
            ffn=dict(
                w1=nrm((d_model, d_inner), 1.0 / np.sqrt(d_model)),
                b1=nrm((1, d_inner), 1.0 / np.sqrt(d_model)),
                w2=nrm((d_inner, d_model), 1.0 / np.sqrt(d_inner)),
                b2=nrm((1, d_model), 1.0 / np.sqrt(d_inner)),
                ln_g=jnp.ones((1, d_model), jnp.float32),
                ln_b=jnp.zeros((1, d_model), jnp.float32),
            ),
        ))
    return dict(emb=emb, pos=pos, layers=layers)


def decoder_forward(params, tgt_seq, tgt_pos, src_seq, enc_output,
                    n_head, d_k, d_v):
    B, Lt = tgt_seq.shape
    Ls = src_seq.shape[1]
    D = enc_output.shape[-1]
    layers = params['layers']
    n_layers = len(layers)

    # O(B*L) pad vectors only; the O(L^2) biases are built inside the kernel.
    non_pad = (tgt_seq != PAD).astype(jnp.float32)[:, :, None]     # (B, Lt, 1)
    tgt_keypad = (tgt_seq == PAD).astype(jnp.float32)[:, None, :]  # (B, 1, Lt)
    src_keypad = (src_seq == PAD).astype(jnp.float32)[:, None, :]  # (B, 1, Ls)

    # Embedding / positional gathers stay in plain JAX (gather-unfriendly in Pallas).
    dec0 = (params['emb'][tgt_seq] + params['pos'][tgt_pos]).astype(jnp.float32)
    enc_bf = enc_output.astype(jnp.bfloat16)

    def stack_w(fn):   # bf16 MXU weight slabs, stacked per layer: (n_layers, K, N)
        return jnp.stack([fn(L) for L in layers], axis=0).astype(jnp.bfloat16)

    def stack_p(fn):   # f32 biases / LayerNorm params: (n_layers, 1, N)
        return jnp.stack([fn(L) for L in layers], axis=0).astype(jnp.float32)

    weights = [
        # self-attention: fused QKV projection
        stack_w(lambda L: jnp.concatenate(
            [L['slf']['wq'], L['slf']['wk'], L['slf']['wv']], axis=1)),
        stack_p(lambda L: jnp.concatenate(
            [L['slf']['bq'], L['slf']['bk'], L['slf']['bv']], axis=1)),
        stack_w(lambda L: L['slf']['wo']), stack_p(lambda L: L['slf']['bo']),
        stack_p(lambda L: L['slf']['ln_g']), stack_p(lambda L: L['slf']['ln_b']),
        # encoder-decoder attention: Q from decoder, fused KV from encoder output
        stack_w(lambda L: L['enc']['wq']), stack_p(lambda L: L['enc']['bq']),
        stack_w(lambda L: jnp.concatenate(
            [L['enc']['wk'], L['enc']['wv']], axis=1)),
        stack_p(lambda L: jnp.concatenate(
            [L['enc']['bk'], L['enc']['bv']], axis=1)),
        stack_w(lambda L: L['enc']['wo']), stack_p(lambda L: L['enc']['bo']),
        stack_p(lambda L: L['enc']['ln_g']), stack_p(lambda L: L['enc']['ln_b']),
        # position-wise FFN
        stack_w(lambda L: L['ffn']['w1']), stack_p(lambda L: L['ffn']['b1']),
        stack_w(lambda L: L['ffn']['w2']), stack_p(lambda L: L['ffn']['b2']),
        stack_p(lambda L: L['ffn']['ln_g']), stack_p(lambda L: L['ffn']['ln_b']),
    ]

    def batch_spec(arr):   # per-batch blocks, constant across the layer axis
        return pl.BlockSpec((1,) + arr.shape[1:], lambda b, l: (b, 0, 0))

    def layer_spec(arr):   # per-layer weight blocks, streamed along the layer axis
        return pl.BlockSpec((1,) + arr.shape[1:], lambda b, l: (l, 0, 0))

    in_specs = ([batch_spec(a) for a in
                 (dec0, enc_bf, non_pad, tgt_keypad, src_keypad)]
                + [layer_spec(w) for w in weights])

    kernel = functools.partial(
        _decoder_layer_kernel, Lt=Lt, Ls=Ls, H=n_head, d_k=d_k, d_v=d_v,
        inv_temp=float(1.0 / np.sqrt(d_k)))

    out = pl.pallas_call(
        kernel,
        out_shape=jax.ShapeDtypeStruct((B, Lt, D), jnp.float32),
        grid=(B, n_layers),
        in_specs=in_specs,
        out_specs=pl.BlockSpec((1, Lt, D), lambda b, l: (b, 0, 0)),
        scratch_shapes=[pltpu.VMEM((Lt, D), jnp.float32)],   # layer-carried activation
        compiler_params=pltpu.CompilerParams(
            dimension_semantics=("parallel", "arbitrary"),
            vmem_limit_bytes=32 * 1024 * 1024),
    )(dec0, enc_bf, non_pad, tgt_keypad, src_keypad, *weights)
    return out


decoder_forward_jit = jax.jit(decoder_forward, static_argnums=(5, 6, 7))


# --------------------------- pure-JAX reference -----------------------------

def build_masks(tgt_seq, src_seq):
    B, Lt = tgt_seq.shape
    Ls = src_seq.shape[1]
    non_pad = (tgt_seq != PAD).astype(jnp.float32)[:, :, None]           # (B,Lt,1)
    subseq = jnp.triu(jnp.ones((Lt, Lt), jnp.float32), k=1)[None, :, :]  # (1,Lt,Lt)
    keypad = (tgt_seq == PAD).astype(jnp.float32)[:, None, :]            # (B,1,Lt)
    slf_mask = jnp.broadcast_to(((keypad + subseq) > 0).astype(jnp.float32),
                                (B, Lt, Lt))
    enc_mask = jnp.broadcast_to(
        (src_seq == PAD).astype(jnp.float32)[:, None, :], (B, Lt, Ls))
    return non_pad, slf_mask, enc_mask


def _ref_ln(x, g, b):
    mean = x.mean(-1, keepdims=True)
    var = ((x - mean) ** 2).mean(-1, keepdims=True)
    return (x - mean) / jnp.sqrt(var + LN_EPS) * g + b


def _ref_mha(q_in, k_in, v_in, mask, p, non_pad, n_head, d_k, d_v):
    B, Lq, D = q_in.shape
    Lk = k_in.shape[1]
    residual = q_in
    q = (q_in @ p['wq'] + p['bq']).reshape(B, Lq, n_head, d_k).transpose(0, 2, 1, 3)
    k = (k_in @ p['wk'] + p['bk']).reshape(B, Lk, n_head, d_k).transpose(0, 2, 1, 3)
    v = (v_in @ p['wv'] + p['bv']).reshape(B, Lk, n_head, d_v).transpose(0, 2, 1, 3)
    s = jnp.einsum('bhqd,bhkd->bhqk', q, k) / np.sqrt(d_k)
    s = jnp.where(mask[:, None, :, :] > 0, -jnp.inf, s)
    a = jax.nn.softmax(s, axis=-1)
    o = jnp.einsum('bhqk,bhkd->bhqd', a, v).transpose(0, 2, 1, 3)
    o = o.reshape(B, Lq, n_head * d_v) @ p['wo'] + p['bo']
    return _ref_ln(o + residual, p['ln_g'], p['ln_b']) * non_pad


def _ref_ffn(x, p, non_pad):
    h = jnp.maximum(x @ p['w1'] + p['b1'], 0.0) @ p['w2'] + p['b2']
    return _ref_ln(h + x, p['ln_g'], p['ln_b']) * non_pad


def ref_decoder_forward(params, tgt_seq, tgt_pos, src_seq, enc_output,
                        n_head, d_k, d_v):
    non_pad, slf_mask, enc_mask = build_masks(tgt_seq, src_seq)
    dec = (params['emb'][tgt_seq] + params['pos'][tgt_pos]).astype(jnp.float32)
    for layer in params['layers']:
        dec = _ref_mha(dec, dec, dec, slf_mask, layer['slf'], non_pad,
                       n_head, d_k, d_v)
        dec = _ref_mha(dec, enc_output, enc_output, enc_mask, layer['enc'], non_pad,
                       n_head, d_k, d_v)
        dec = _ref_ffn(dec, layer['ffn'], non_pad)
    return dec


# ---------------------------------- main ------------------------------------

if __name__ == "__main__":
    B, LT, LS = 2, 8, 10
    N_VOCAB, MAX_SEQ = 20, 16
    D_MODEL = D_WORD_VEC = 32
    N_LAYERS, N_HEAD, D_K, D_V, D_INNER = 2, 4, 8, 8, 64

    key = jax.random.PRNGKey(0)
    kp, kt, ks, ke = jax.random.split(key, 4)

    params = init_params(kp, N_VOCAB, MAX_SEQ + 1, D_WORD_VEC, N_LAYERS,
                         N_HEAD, D_K, D_V, D_MODEL, D_INNER)

    tgt_seq = jax.random.randint(kt, (B, LT), 1, N_VOCAB).astype(jnp.int32)
    tgt_seq = tgt_seq.at[1, -2:].set(PAD)                      # some padding
    tgt_pos = jnp.where(tgt_seq != PAD,
                        jnp.arange(1, LT + 1, dtype=jnp.int32)[None, :],
                        jnp.int32(0))
    src_seq = jax.random.randint(ks, (B, LS), 1, N_VOCAB).astype(jnp.int32)
    src_seq = src_seq.at[1, -1].set(PAD)
    # bf16-representable encoder activations (kernel feeds them to the MXU in bf16)
    enc_output = jax.random.normal(ke, (B, LS, D_MODEL), jnp.float32
                                   ).astype(jnp.bfloat16).astype(jnp.float32)

    out = decoder_forward_jit(params, tgt_seq, tgt_pos, src_seq, enc_output,
                              N_HEAD, D_K, D_V)
    out = jax.block_until_ready(out)

    ref = jax.block_until_ready(
        ref_decoder_forward(params, tgt_seq, tgt_pos, src_seq, enc_output,
                            N_HEAD, D_K, D_V))

    assert out.shape == (B, LT, D_MODEL)
    assert bool(jnp.all(jnp.isfinite(out)))
    # Tolerance sized for bf16 MXU operands vs. the f32 reference.
    np.testing.assert_allclose(np.asarray(out), np.asarray(ref),
                               atol=5e-2, rtol=5e-2)
    print("KERNEL_OK")
</pallas_src>

<mosaic_0001>
module attributes {stable_mosaic.version = 11 : i64} {
  func.func @_decoder_layer_kernel(%arg0: i32, %arg1: i32, %arg2: memref<1x8x32xf32, #tpu.memory_space<vmem>>, %arg3: memref<1x10x32xbf16, #tpu.memory_space<vmem>>, %arg4: memref<1x8x1xf32, #tpu.memory_space<vmem>>, %arg5: memref<1x1x8xf32, #tpu.memory_space<vmem>>, %arg6: memref<1x1x10xf32, #tpu.memory_space<vmem>>, %arg7: memref<1x32x96xbf16, #tpu.memory_space<vmem>>, %arg8: memref<1x1x96xf32, #tpu.memory_space<vmem>>, %arg9: memref<1x32x32xbf16, #tpu.memory_space<vmem>>, %arg10: memref<1x1x32xf32, #tpu.memory_space<vmem>>, %arg11: memref<1x1x32xf32, #tpu.memory_space<vmem>>, %arg12: memref<1x1x32xf32, #tpu.memory_space<vmem>>, %arg13: memref<1x32x32xbf16, #tpu.memory_space<vmem>>, %arg14: memref<1x1x32xf32, #tpu.memory_space<vmem>>, %arg15: memref<1x32x64xbf16, #tpu.memory_space<vmem>>, %arg16: memref<1x1x64xf32, #tpu.memory_space<vmem>>, %arg17: memref<1x32x32xbf16, #tpu.memory_space<vmem>>, %arg18: memref<1x1x32xf32, #tpu.memory_space<vmem>>, %arg19: memref<1x1x32xf32, #tpu.memory_space<vmem>>, %arg20: memref<1x1x32xf32, #tpu.memory_space<vmem>>, %arg21: memref<1x32x64xbf16, #tpu.memory_space<vmem>>, %arg22: memref<1x1x64xf32, #tpu.memory_space<vmem>>, %arg23: memref<1x64x32xbf16, #tpu.memory_space<vmem>>, %arg24: memref<1x1x32xf32, #tpu.memory_space<vmem>>, %arg25: memref<1x1x32xf32, #tpu.memory_space<vmem>>, %arg26: memref<1x1x32xf32, #tpu.memory_space<vmem>>, %arg27: memref<1x8x32xf32, #tpu.memory_space<vmem>>, %arg28: memref<8x32xf32, #tpu.memory_space<vmem>>) attributes {dimension_semantics = [#tpu.dimension_semantics<parallel>, #tpu.dimension_semantics<arbitrary>], iteration_bounds = array<i64: 2, 2>, scalar_prefetch = 0 : i64, scratch_operands = 1 : i64, tpu.core_type = #tpu.core_type<tc>, window_params = [{transform_indices = @transform_0, window_bounds = array<i64: 1, 8, 32>}, {transform_indices = @transform_1, window_bounds = array<i64: 1, 10, 32>}, {transform_indices = @transform_2, window_bounds = array<i64: 1, 8, 1>}, {transform_indices = @transform_3, window_bounds = array<i64: 1, 1, 8>}, {transform_indices = @transform_4, window_bounds = array<i64: 1, 1, 10>}, {transform_indices = @transform_5, window_bounds = array<i64: 1, 32, 96>}, {transform_indices = @transform_6, window_bounds = array<i64: 1, 1, 96>}, {transform_indices = @transform_7, window_bounds = array<i64: 1, 32, 32>}, {transform_indices = @transform_8, window_bounds = array<i64: 1, 1, 32>}, {transform_indices = @transform_9, window_bounds = array<i64: 1, 1, 32>}, {transform_indices = @transform_10, window_bounds = array<i64: 1, 1, 32>}, {transform_indices = @transform_11, window_bounds = array<i64: 1, 32, 32>}, {transform_indices = @transform_12, window_bounds = array<i64: 1, 1, 32>}, {transform_indices = @transform_13, window_bounds = array<i64: 1, 32, 64>}, {transform_indices = @transform_14, window_bounds = array<i64: 1, 1, 64>}, {transform_indices = @transform_15, window_bounds = array<i64: 1, 32, 32>}, {transform_indices = @transform_16, window_bounds = array<i64: 1, 1, 32>}, {transform_indices = @transform_17, window_bounds = array<i64: 1, 1, 32>}, {transform_indices = @transform_18, window_bounds = array<i64: 1, 1, 32>}, {transform_indices = @transform_19, window_bounds = array<i64: 1, 32, 64>}, {transform_indices = @transform_20, window_bounds = array<i64: 1, 1, 64>}, {transform_indices = @transform_21, window_bounds = array<i64: 1, 64, 32>}, {transform_indices = @transform_22, window_bounds = array<i64: 1, 1, 32>}, {transform_indices = @transform_23, window_bounds = array<i64: 1, 1, 32>}, {transform_indices = @transform_24, window_bounds = array<i64: 1, 1, 32>}, {transform_indices = @transform_25, window_bounds = array<i64: 1, 8, 32>}]} {
    %c0_i32 = arith.constant 0 : i32
    %0 = arith.cmpi eq, %arg1, %c0_i32 : i32
    %1 = arith.extui %0 : i1 to i32
    %c0_i32_0 = arith.constant 0 : i32
    %2 = arith.cmpi ne, %1, %c0_i32_0 : i32
    scf.if %2 {
      %c0_115 = arith.constant 0 : index
      %c0_116 = arith.constant 0 : index
      %c0_117 = arith.constant 0 : index
      %285 = vector.load %arg2[%c0_115, %c0_116, %c0_117] : memref<1x8x32xf32, #tpu.memory_space<vmem>>, vector<1x8x32xf32>
      %286 = vector.shape_cast %285 : vector<1x8x32xf32> to vector<8x32xf32>
      %c0_118 = arith.constant 0 : index
      %c0_119 = arith.constant 0 : index
      %287 = vector.load %arg28[%c0_118, %c0_119] : memref<8x32xf32, #tpu.memory_space<vmem>>, vector<8x32xf32>
      tpu.vector_store %arg28[%c0_118, %c0_119], %286 {strides = array<i32>} : memref<8x32xf32, #tpu.memory_space<vmem>>, vector<8x32xf32>,
    } else {
    }
    %c0 = arith.constant 0 : index
    %c0_1 = arith.constant 0 : index
    %3 = vector.load %arg28[%c0, %c0_1] : memref<8x32xf32, #tpu.memory_space<vmem>>, vector<8x32xf32>
    %c0_2 = arith.constant 0 : index
    %c0_3 = arith.constant 0 : index
    %c0_4 = arith.constant 0 : index
    %4 = vector.load %arg3[%c0_2, %c0_3, %c0_4] : memref<1x10x32xbf16, #tpu.memory_space<vmem>>, vector<1x10x32xbf16>
    %5 = vector.shape_cast %4 : vector<1x10x32xbf16> to vector<10x32xbf16>
    %c0_5 = arith.constant 0 : index
    %c0_6 = arith.constant 0 : index
    %c0_7 = arith.constant 0 : index
    %6 = vector.load %arg4[%c0_5, %c0_6, %c0_7] : memref<1x8x1xf32, #tpu.memory_space<vmem>>, vector<1x8x1xf32>
    %7 = vector.shape_cast %6 : vector<1x8x1xf32> to vector<8x1xf32>
    %8 = tpu.iota {dimensions = array<i32: 0>} : vector<8x8xi32>
    %9 = tpu.iota {dimensions = array<i32: 1>} : vector<8x8xi32>
    %10 = arith.cmpi sgt, %9, %8 : vector<8x8xi32>
    %11 = arith.extui %10 : vector<8x8xi1> to vector<8x8xi32>
    %12 = arith.sitofp %11 : vector<8x8xi32> to vector<8x8xf32>
    %c0_8 = arith.constant 0 : index
    %c0_9 = arith.constant 0 : index
    %c0_10 = arith.constant 0 : index
    %13 = vector.load %arg5[%c0_8, %c0_9, %c0_10] : memref<1x1x8xf32, #tpu.memory_space<vmem>>, vector<1x1x8xf32>
    %14 = vector.shape_cast %13 : vector<1x1x8xf32> to vector<1x8xf32>
    %15 = vector.broadcast %14 : vector<1x8xf32> to vector<8x8xf32>
    %16 = arith.addf %12, %15 : vector<8x8xf32>
    %cst = arith.constant 0.000000e+00 : f32
    %17 = vector.broadcast %cst : f32 to vector<8x8xf32>
    %18 = arith.cmpf ogt, %16, %17 : vector<8x8xf32>
    %cst_11 = arith.constant -1.000000e+09 : f32
    %cst_12 = arith.constant 0.000000e+00 : f32
    %19 = vector.broadcast %cst_11 : f32 to vector<8x8xf32>
    %20 = vector.broadcast %cst_12 : f32 to vector<8x8xf32>
    %21 = arith.select %18, %19, %20 : vector<8x8xi1>, vector<8x8xf32>
    %c0_13 = arith.constant 0 : index
    %c0_14 = arith.constant 0 : index
    %c0_15 = arith.constant 0 : index
    %22 = vector.load %arg6[%c0_13, %c0_14, %c0_15] : memref<1x1x10xf32, #tpu.memory_space<vmem>>, vector<1x1x10xf32>
    %23 = vector.shape_cast %22 : vector<1x1x10xf32> to vector<1x10xf32>
    %cst_16 = arith.constant -1.000000e+09 : f32
    %24 = vector.broadcast %cst_16 : f32 to vector<1x10xf32>
    %25 = arith.mulf %23, %24 : vector<1x10xf32>
    %26 = arith.truncf %3 : vector<8x32xf32> to vector<8x32xbf16>
    %c0_17 = arith.constant 0 : index
    %c0_18 = arith.constant 0 : index
    %c0_19 = arith.constant 0 : index
    %27 = vector.load %arg7[%c0_17, %c0_18, %c0_19] : memref<1x32x96xbf16, #tpu.memory_space<vmem>>, vector<1x32x96xbf16>
    %28 = vector.shape_cast %27 : vector<1x32x96xbf16> to vector<32x96xbf16>
    %cst_20 = arith.constant dense<0.000000e+00> : vector<8x96xf32>
    %29 = tpu.matmul %26, %28, %cst_20 {dimension_numbers = #tpu.dot_dimension_numbers<[1], [0], [0], [1], [0, 0, 1, 1], [], []>} : vector<8x32xbf16>, vector<32x96xbf16>, vector<8x96xf32> -> vector<8x96xf32>
    %c0_21 = arith.constant 0 : index
    %c0_22 = arith.constant 0 : index
    %c0_23 = arith.constant 0 : index
    %30 = vector.load %arg8[%c0_21, %c0_22, %c0_23] : memref<1x1x96xf32, #tpu.memory_space<vmem>>, vector<1x1x96xf32>
    %31 = vector.shape_cast %30 : vector<1x1x96xf32> to vector<1x96xf32>
    %32 = vector.broadcast %31 : vector<1x96xf32> to vector<8x96xf32>
    %33 = arith.addf %29, %32 : vector<8x96xf32>
    %34 = vector.extract_strided_slice %33 {offsets = [0, 0], sizes = [8, 32], strides = [1, 1]} : vector<8x96xf32> to vector<8x32xf32>
    %cst_24 = arith.constant 0.353553385 : f32
    %35 = vector.broadcast %cst_24 : f32 to vector<8x32xf32>
    %36 = arith.mulf %34, %35 : vector<8x32xf32>
    %37 = vector.extract_strided_slice %33 {offsets = [0, 32], sizes = [8, 32], strides = [1, 1]} : vector<8x96xf32> to vector<8x32xf32>
    %38 = vector.extract_strided_slice %33 {offsets = [0, 64], sizes = [8, 32], strides = [1, 1]} : vector<8x96xf32> to vector<8x32xf32>
    %39 = vector.extract_strided_slice %36 {offsets = [0, 0], sizes = [8, 8], strides = [1, 1]} : vector<8x32xf32> to vector<8x8xf32>
    %40 = vector.extract_strided_slice %36 {offsets = [0, 8], sizes = [8, 8], strides = [1, 1]} : vector<8x32xf32> to vector<8x8xf32>
    %41 = vector.extract_strided_slice %36 {offsets = [0, 16], sizes = [8, 8], strides = [1, 1]} : vector<8x32xf32> to vector<8x8xf32>
    %42 = vector.extract_strided_slice %36 {offsets = [0, 24], sizes = [8, 8], strides = [1, 1]} : vector<8x32xf32> to vector<8x8xf32>
    %43 = vector.shape_cast %39 : vector<8x8xf32> to vector<1x8x8xf32>
    %44 = vector.shape_cast %40 : vector<8x8xf32> to vector<1x8x8xf32>
    %45 = vector.shape_cast %41 : vector<8x8xf32> to vector<1x8x8xf32>
    %46 = vector.shape_cast %42 : vector<8x8xf32> to vector<1x8x8xf32>
    %47 = tpu.concatenate %43, %44, %45, %46 in 0 : vector<1x8x8xf32>, vector<1x8x8xf32>, vector<1x8x8xf32>, vector<1x8x8xf32> -> vector<4x8x8xf32>
    %48 = vector.extract_strided_slice %37 {offsets = [0, 0], sizes = [8, 8], strides = [1, 1]} : vector<8x32xf32> to vector<8x8xf32>
    %49 = vector.extract_strided_slice %37 {offsets = [0, 8], sizes = [8, 8], strides = [1, 1]} : vector<8x32xf32> to vector<8x8xf32>
    %50 = vector.extract_strided_slice %37 {offsets = [0, 16], sizes = [8, 8], strides = [1, 1]} : vector<8x32xf32> to vector<8x8xf32>
    %51 = vector.extract_strided_slice %37 {offsets = [0, 24], sizes = [8, 8], strides = [1, 1]} : vector<8x32xf32> to vector<8x8xf32>
    %52 = vector.shape_cast %48 : vector<8x8xf32> to vector<1x8x8xf32>
    %53 = vector.shape_cast %49 : vector<8x8xf32> to vector<1x8x8xf32>
    %54 = vector.shape_cast %50 : vector<8x8xf32> to vector<1x8x8xf32>
    %55 = vector.shape_cast %51 : vector<8x8xf32> to vector<1x8x8xf32>
    %56 = tpu.concatenate %52, %53, %54, %55 in 0 : vector<1x8x8xf32>, vector<1x8x8xf32>, vector<1x8x8xf32>, vector<1x8x8xf32> -> vector<4x8x8xf32>
    %57 = vector.extract_strided_slice %38 {offsets = [0, 0], sizes = [8, 8], strides = [1, 1]} : vector<8x32xf32> to vector<8x8xf32>
    %58 = vector.extract_strided_slice %38 {offsets = [0, 8], sizes = [8, 8], strides = [1, 1]} : vector<8x32xf32> to vector<8x8xf32>
    %59 = vector.extract_strided_slice %38 {offsets = [0, 16], sizes = [8, 8], strides = [1, 1]} : vector<8x32xf32> to vector<8x8xf32>
    %60 = vector.extract_strided_slice %38 {offsets = [0, 24], sizes = [8, 8], strides = [1, 1]} : vector<8x32xf32> to vector<8x8xf32>
    %61 = vector.shape_cast %57 : vector<8x8xf32> to vector<1x8x8xf32>
    %62 = vector.shape_cast %58 : vector<8x8xf32> to vector<1x8x8xf32>
    %63 = vector.shape_cast %59 : vector<8x8xf32> to vector<1x8x8xf32>
    %64 = vector.shape_cast %60 : vector<8x8xf32> to vector<1x8x8xf32>
    %65 = tpu.concatenate %61, %62, %63, %64 in 0 : vector<1x8x8xf32>, vector<1x8x8xf32>, vector<1x8x8xf32>, vector<1x8x8xf32> -> vector<4x8x8xf32>
    "tpu.trace_start"() <{level = 10 : i32, message = "hqd,hkd->hqk"}> : () -> ()
    %cst_25 = arith.constant dense<0.000000e+00> : vector<4x8x8xf32>
    %66 = tpu.matmul %47, %56, %cst_25 {dimension_numbers = #tpu.dot_dimension_numbers<[2], [2], [1], [1], [0, 0, 0, 1, 1, 1], [0], [0]>} : vector<4x8x8xf32>, vector<4x8x8xf32>, vector<4x8x8xf32> -> vector<4x8x8xf32>
    "tpu.trace_stop"() : () -> ()
    %67 = vector.shape_cast %21 : vector<8x8xf32> to vector<1x8x8xf32>
    %68 = vector.broadcast %67 : vector<1x8x8xf32> to vector<4x8x8xf32>
    %69 = arith.addf %66, %68 : vector<4x8x8xf32>
    %cst_26 = arith.constant dense<0xFF800000> : vector<4x8xf32>
    %70 = vector.multi_reduction <maximumf>, %69, %cst_26 [2] : vector<4x8x8xf32> to vector<4x8xf32>
    %71 = vector.shape_cast %70 : vector<4x8xf32> to vector<4x8x1xf32>
    %72 = vector.broadcast %71 : vector<4x8x1xf32> to vector<4x8x8xf32>
    %73 = arith.subf %69, %72 : vector<4x8x8xf32>
    %74 = math.exp %73 : vector<4x8x8xf32>
    %cst_27 = arith.constant dense<0.000000e+00> : vector<4x8xf32>
    %75 = vector.multi_reduction <add>, %74, %cst_27 [2] : vector<4x8x8xf32> to vector<4x8xf32>
    %76 = vector.shape_cast %75 : vector<4x8xf32> to vector<4x8x1xf32>
    %77 = tpu.reciprocal %76 {approx = true} : vector<4x8x1xf32> -> vector<4x8x1xf32>
    %78 = vector.broadcast %77 : vector<4x8x1xf32> to vector<4x8x8xf32>
    %79 = arith.mulf %74, %78 : vector<4x8x8xf32>
    "tpu.trace_start"() <{level = 10 : i32, message = "hqk,hkd->hqd"}> : () -> ()
    %cst_28 = arith.constant dense<0.000000e+00> : vector<4x8x8xf32>
    %80 = tpu.matmul %79, %65, %cst_28 {dimension_numbers = #tpu.dot_dimension_numbers<[2], [1], [1], [2], [0, 0, 0, 1, 1, 2], [0], [0]>} : vector<4x8x8xf32>, vector<4x8x8xf32>, vector<4x8x8xf32> -> vector<4x8x8xf32>
    "tpu.trace_stop"() : () -> ()
    %81 = vector.extract_strided_slice %80 {offsets = [0, 0, 0], sizes = [1, 8, 8], strides = [1, 1, 1]} : vector<4x8x8xf32> to vector<1x8x8xf32>
    %82 = vector.shape_cast %81 : vector<1x8x8xf32> to vector<8x8xf32>
    %83 = vector.extract_strided_slice %80 {offsets = [1, 0, 0], sizes = [1, 8, 8], strides = [1, 1, 1]} : vector<4x8x8xf32> to vector<1x8x8xf32>
    %84 = vector.shape_cast %83 : vector<1x8x8xf32> to vector<8x8xf32>
    %85 = vector.extract_strided_slice %80 {offsets = [2, 0, 0], sizes = [1, 8, 8], strides = [1, 1, 1]} : vector<4x8x8xf32> to vector<1x8x8xf32>
    %86 = vector.shape_cast %85 : vector<1x8x8xf32> to vector<8x8xf32>
    %87 = vector.extract_strided_slice %80 {offsets = [3, 0, 0], sizes = [1, 8, 8], strides = [1, 1, 1]} : vector<4x8x8xf32> to vector<1x8x8xf32>
    %88 = vector.shape_cast %87 : vector<1x8x8xf32> to vector<8x8xf32>
    %89 = tpu.concatenate %82, %84, %86, %88 in 1 : vector<8x8xf32>, vector<8x8xf32>, vector<8x8xf32>, vector<8x8xf32> -> vector<8x32xf32>
    %90 = arith.truncf %89 : vector<8x32xf32> to vector<8x32xbf16>
    %c0_29 = arith.constant 0 : index
    %c0_30 = arith.constant 0 : index
    %c0_31 = arith.constant 0 : index
    %91 = vector.load %arg9[%c0_29, %c0_30, %c0_31] : memref<1x32x32xbf16, #tpu.memory_space<vmem>>, vector<1x32x32xbf16>
    %92 = vector.shape_cast %91 : vector<1x32x32xbf16> to vector<32x32xbf16>
    %cst_32 = arith.constant dense<0.000000e+00> : vector<8x32xf32>
    %93 = tpu.matmul %90, %92, %cst_32 {dimension_numbers = #tpu.dot_dimension_numbers<[1], [0], [0], [1], [0, 0, 1, 1], [], []>} : vector<8x32xbf16>, vector<32x32xbf16>, vector<8x32xf32> -> vector<8x32xf32>
    %c0_33 = arith.constant 0 : index
    %c0_34 = arith.constant 0 : index
    %c0_35 = arith.constant 0 : index
    %94 = vector.load %arg10[%c0_33, %c0_34, %c0_35] : memref<1x1x32xf32, #tpu.memory_space<vmem>>, vector<1x1x32xf32>
    %95 = vector.shape_cast %94 : vector<1x1x32xf32> to vector<1x32xf32>
    %96 = vector.broadcast %95 : vector<1x32xf32> to vector<8x32xf32>
    %97 = arith.addf %93, %96 : vector<8x32xf32>
    %98 = arith.addf %97, %3 : vector<8x32xf32>
    %cst_36 = arith.constant dense<0.000000e+00> : vector<8xf32>
    %99 = vector.multi_reduction <add>, %98, %cst_36 [1] : vector<8x32xf32> to vector<8xf32>
    %100 = vector.shape_cast %99 : vector<8xf32> to vector<8x1xf32>
    %cst_37 = arith.constant 3.200000e+01 : f32
    %101 = vector.broadcast %cst_37 : f32 to vector<8x1xf32>
    %102 = arith.divf %100, %101 : vector<8x1xf32>
    %103 = vector.broadcast %102 : vector<8x1xf32> to vector<8x32xf32>
    %104 = arith.subf %98, %103 : vector<8x32xf32>
    %105 = arith.mulf %104, %104 : vector<8x32xf32>
    %cst_38 = arith.constant dense<0.000000e+00> : vector<8xf32>
    %106 = vector.multi_reduction <add>, %105, %cst_38 [1] : vector<8x32xf32> to vector<8xf32>
    %107 = vector.shape_cast %106 : vector<8xf32> to vector<8x1xf32>
    %cst_39 = arith.constant 3.200000e+01 : f32
    %108 = vector.broadcast %cst_39 : f32 to vector<8x1xf32>
    %109 = arith.divf %107, %108 : vector<8x1xf32>
    %110 = vector.broadcast %102 : vector<8x1xf32> to vector<8x32xf32>
    %111 = arith.subf %98, %110 : vector<8x32xf32>
    %cst_40 = arith.constant 9.99999974E-6 : f32
    %112 = vector.broadcast %cst_40 : f32 to vector<8x1xf32>
    %113 = arith.addf %109, %112 : vector<8x1xf32>
    %114 = math.rsqrt %113 : vector<8x1xf32>
    %115 = vector.broadcast %114 : vector<8x1xf32> to vector<8x32xf32>
    %116 = arith.mulf %111, %115 : vector<8x32xf32>
    %c0_41 = arith.constant 0 : index
    %c0_42 = arith.constant 0 : index
    %c0_43 = arith.constant 0 : index
    %117 = vector.load %arg11[%c0_41, %c0_42, %c0_43] : memref<1x1x32xf32, #tpu.memory_space<vmem>>, vector<1x1x32xf32>
    %118 = vector.shape_cast %117 : vector<1x1x32xf32> to vector<1x32xf32>
    %119 = vector.broadcast %118 : vector<1x32xf32> to vector<8x32xf32>
    %120 = arith.mulf %116, %119 : vector<8x32xf32>
    %c0_44 = arith.constant 0 : index
    %c0_45 = arith.constant 0 : index
    %c0_46 = arith.constant 0 : index
    %121 = vector.load %arg12[%c0_44, %c0_45, %c0_46] : memref<1x1x32xf32, #tpu.memory_space<vmem>>, vector<1x1x32xf32>
    %122 = vector.shape_cast %121 : vector<1x1x32xf32> to vector<1x32xf32>
    %123 = vector.broadcast %122 : vector<1x32xf32> to vector<8x32xf32>
    %124 = arith.addf %120, %123 : vector<8x32xf32>
    %125 = vector.broadcast %7 : vector<8x1xf32> to vector<8x32xf32>
    %126 = arith.mulf %124, %125 : vector<8x32xf32>
    %127 = arith.truncf %126 : vector<8x32xf32> to vector<8x32xbf16>
    %c0_47 = arith.constant 0 : index
    %c0_48 = arith.constant 0 : index
    %c0_49 = arith.constant 0 : index
    %128 = vector.load %arg13[%c0_47, %c0_48, %c0_49] : memref<1x32x32xbf16, #tpu.memory_space<vmem>>, vector<1x32x32xbf16>
    %129 = vector.shape_cast %128 : vector<1x32x32xbf16> to vector<32x32xbf16>
    %cst_50 = arith.constant dense<0.000000e+00> : vector<8x32xf32>
    %130 = tpu.matmul %127, %129, %cst_50 {dimension_numbers = #tpu.dot_dimension_numbers<[1], [0], [0], [1], [0, 0, 1, 1], [], []>} : vector<8x32xbf16>, vector<32x32xbf16>, vector<8x32xf32> -> vector<8x32xf32>
    %c0_51 = arith.constant 0 : index
    %c0_52 = arith.constant 0 : index
    %c0_53 = arith.constant 0 : index
    %131 = vector.load %arg14[%c0_51, %c0_52, %c0_53] : memref<1x1x32xf32, #tpu.memory_space<vmem>>, vector<1x1x32xf32>
    %132 = vector.shape_cast %131 : vector<1x1x32xf32> to vector<1x32xf32>
    %133 = vector.broadcast %132 : vector<1x32xf32> to vector<8x32xf32>
    %134 = arith.addf %130, %133 : vector<8x32xf32>
    %cst_54 = arith.constant 0.353553385 : f32
    %135 = vector.broadcast %cst_54 : f32 to vector<8x32xf32>
    %136 = arith.mulf %134, %135 : vector<8x32xf32>
    %c0_55 = arith.constant 0 : index
    %c0_56 = arith.constant 0 : index
    %c0_57 = arith.constant 0 : index
    %137 = vector.load %arg15[%c0_55, %c0_56, %c0_57] : memref<1x32x64xbf16, #tpu.memory_space<vmem>>, vector<1x32x64xbf16>
    %138 = vector.shape_cast %137 : vector<1x32x64xbf16> to vector<32x64xbf16>
    %cst_58 = arith.constant dense<0.000000e+00> : vector<10x64xf32>
    %139 = tpu.matmul %5, %138, %cst_58 {dimension_numbers = #tpu.dot_dimension_numbers<[1], [0], [0], [1], [0, 0, 1, 1], [], []>} : vector<10x32xbf16>, vector<32x64xbf16>, vector<10x64xf32> -> vector<10x64xf32>
    %c0_59 = arith.constant 0 : index
    %c0_60 = arith.constant 0 : index
    %c0_61 = arith.constant 0 : index
    %140 = vector.load %arg16[%c0_59, %c0_60, %c0_61] : memref<1x1x64xf32, #tpu.memory_space<vmem>>, vector<1x1x64xf32>
    %141 = vector.shape_cast %140 : vector<1x1x64xf32> to vector<1x64xf32>
    %142 = vector.broadcast %141 : vector<1x64xf32> to vector<10x64xf32>
    %143 = arith.addf %139, %142 : vector<10x64xf32>
    %144 = vector.extract_strided_slice %143 {offsets = [0, 0], sizes = [10, 32], strides = [1, 1]} : vector<10x64xf32> to vector<10x32xf32>
    %145 = vector.extract_strided_slice %143 {offsets = [0, 32], sizes = [10, 32], strides = [1, 1]} : vector<10x64xf32> to vector<10x32xf32>
    %146 = vector.extract_strided_slice %136 {offsets = [0, 0], sizes = [8, 8], strides = [1, 1]} : vector<8x32xf32> to vector<8x8xf32>
    %147 = vector.extract_strided_slice %136 {offsets = [0, 8], sizes = [8, 8], strides = [1, 1]} : vector<8x32xf32> to vector<8x8xf32>
    %148 = vector.extract_strided_slice %136 {offsets = [0, 16], sizes = [8, 8], strides = [1, 1]} : vector<8x32xf32> to vector<8x8xf32>
    %149 = vector.extract_strided_slice %136 {offsets = [0, 24], sizes = [8, 8], strides = [1, 1]} : vector<8x32xf32> to vector<8x8xf32>
    %150 = vector.shape_cast %146 : vector<8x8xf32> to vector<1x8x8xf32>
    %151 = vector.shape_cast %147 : vector<8x8xf32> to vector<1x8x8xf32>
    %152 = vector.shape_cast %148 : vector<8x8xf32> to vector<1x8x8xf32>
    %153 = vector.shape_cast %149 : vector<8x8xf32> to vector<1x8x8xf32>
    %154 = tpu.concatenate %150, %151, %152, %153 in 0 : vector<1x8x8xf32>, vector<1x8x8xf32>, vector<1x8x8xf32>, vector<1x8x8xf32> -> vector<4x8x8xf32>
    %155 = vector.extract_strided_slice %144 {offsets = [0, 0], sizes = [10, 8], strides = [1, 1]} : vector<10x32xf32> to vector<10x8xf32>
    %156 = vector.extract_strided_slice %144 {offsets = [0, 8], sizes = [10, 8], strides = [1, 1]} : vector<10x32xf32> to vector<10x8xf32>
    %157 = vector.extract_strided_slice %144 {offsets = [0, 16], sizes = [10, 8], strides = [1, 1]} : vector<10x32xf32> to vector<10x8xf32>
    %158 = vector.extract_strided_slice %144 {offsets = [0, 24], sizes = [10, 8], strides = [1, 1]} : vector<10x32xf32> to vector<10x8xf32>
    %159 = vector.shape_cast %155 : vector<10x8xf32> to vector<1x10x8xf32>
    %160 = vector.shape_cast %156 : vector<10x8xf32> to vector<1x10x8xf32>
    %161 = vector.shape_cast %157 : vector<10x8xf32> to vector<1x10x8xf32>
    %162 = vector.shape_cast %158 : vector<10x8xf32> to vector<1x10x8xf32>
    %163 = tpu.concatenate %159, %160, %161, %162 in 0 : vector<1x10x8xf32>, vector<1x10x8xf32>, vector<1x10x8xf32>, vector<1x10x8xf32> -> vector<4x10x8xf32>
    %164 = vector.extract_strided_slice %145 {offsets = [0, 0], sizes = [10, 8], strides = [1, 1]} : vector<10x32xf32> to vector<10x8xf32>
    %165 = vector.extract_strided_slice %145 {offsets = [0, 8], sizes = [10, 8], strides = [1, 1]} : vector<10x32xf32> to vector<10x8xf32>
    %166 = vector.extract_strided_slice %145 {offsets = [0, 16], sizes = [10, 8], strides = [1, 1]} : vector<10x32xf32> to vector<10x8xf32>
    %167 = vector.extract_strided_slice %145 {offsets = [0, 24], sizes = [10, 8], strides = [1, 1]} : vector<10x32xf32> to vector<10x8xf32>
    %168 = vector.shape_cast %164 : vector<10x8xf32> to vector<1x10x8xf32>
    %169 = vector.shape_cast %165 : vector<10x8xf32> to vector<1x10x8xf32>
    %170 = vector.shape_cast %166 : vector<10x8xf32> to vector<1x10x8xf32>
    %171 = vector.shape_cast %167 : vector<10x8xf32> to vector<1x10x8xf32>
    %172 = tpu.concatenate %168, %169, %170, %171 in 0 : vector<1x10x8xf32>, vector<1x10x8xf32>, vector<1x10x8xf32>, vector<1x10x8xf32> -> vector<4x10x8xf32>
    "tpu.trace_start"() <{level = 10 : i32, message = "hqd,hkd->hqk"}> : () -> ()
    %cst_62 = arith.constant dense<0.000000e+00> : vector<4x8x10xf32>
    %173 = tpu.matmul %154, %163, %cst_62 {dimension_numbers = #tpu.dot_dimension_numbers<[2], [2], [1], [1], [0, 0, 0, 1, 1, 1], [0], [0]>} : vector<4x8x8xf32>, vector<4x10x8xf32>, vector<4x8x10xf32> -> vector<4x8x10xf32>
    "tpu.trace_stop"() : () -> ()
    %174 = vector.shape_cast %25 : vector<1x10xf32> to vector<1x1x10xf32>
    %175 = vector.broadcast %174 : vector<1x1x10xf32> to vector<4x8x10xf32>
    %176 = arith.addf %173, %175 : vector<4x8x10xf32>
    %cst_63 = arith.constant dense<0xFF800000> : vector<4x8xf32>
    %177 = vector.multi_reduction <maximumf>, %176, %cst_63 [2] : vector<4x8x10xf32> to vector<4x8xf32>
    %178 = vector.shape_cast %177 : vector<4x8xf32> to vector<4x8x1xf32>
    %179 = vector.broadcast %178 : vector<4x8x1xf32> to vector<4x8x10xf32>
    %180 = arith.subf %176, %179 : vector<4x8x10xf32>
    %181 = math.exp %180 : vector<4x8x10xf32>
    %cst_64 = arith.constant dense<0.000000e+00> : vector<4x8xf32>
    %182 = vector.multi_reduction <add>, %181, %cst_64 [2] : vector<4x8x10xf32> to vector<4x8xf32>
    %183 = vector.shape_cast %182 : vector<4x8xf32> to vector<4x8x1xf32>
    %184 = tpu.reciprocal %183 {approx = true} : vector<4x8x1xf32> -> vector<4x8x1xf32>
    %185 = vector.broadcast %184 : vector<4x8x1xf32> to vector<4x8x10xf32>
    %186 = arith.mulf %181, %185 : vector<4x8x10xf32>
    "tpu.trace_start"() <{level = 10 : i32, message = "hqk,hkd->hqd"}> : () -> ()
    %cst_65 = arith.constant dense<0.000000e+00> : vector<4x8x8xf32>
    %187 = tpu.matmul %186, %172, %cst_65 {dimension_numbers = #tpu.dot_dimension_numbers<[2], [1], [1], [2], [0, 0, 0, 1, 1, 2], [0], [0]>} : vector<4x8x10xf32>, vector<4x10x8xf32>, vector<4x8x8xf32> -> vector<4x8x8xf32>
    "tpu.trace_stop"() : () -> ()
    %188 = vector.extract_strided_slice %187 {offsets = [0, 0, 0], sizes = [1, 8, 8], strides = [1, 1, 1]} : vector<4x8x8xf32> to vector<1x8x8xf32>
    %189 = vector.shape_cast %188 : vector<1x8x8xf32> to vector<8x8xf32>
    %190 = vector.extract_strided_slice %187 {offsets = [1, 0, 0], sizes = [1, 8, 8], strides = [1, 1, 1]} : vector<4x8x8xf32> to vector<1x8x8xf32>
    %191 = vector.shape_cast %190 : vector<1x8x8xf32> to vector<8x8xf32>
    %192 = vector.extract_strided_slice %187 {offsets = [2, 0, 0], sizes = [1, 8, 8], strides = [1, 1, 1]} : vector<4x8x8xf32> to vector<1x8x8xf32>
    %193 = vector.shape_cast %192 : vector<1x8x8xf32> to vector<8x8xf32>
    %194 = vector.extract_strided_slice %187 {offsets = [3, 0, 0], sizes = [1, 8, 8], strides = [1, 1, 1]} : vector<4x8x8xf32> to vector<1x8x8xf32>
    %195 = vector.shape_cast %194 : vector<1x8x8xf32> to vector<8x8xf32>
    %196 = tpu.concatenate %189, %191, %193, %195 in 1 : vector<8x8xf32>, vector<8x8xf32>, vector<8x8xf32>, vector<8x8xf32> -> vector<8x32xf32>
    %197 = arith.truncf %196 : vector<8x32xf32> to vector<8x32xbf16>
    %c0_66 = arith.constant 0 : index
    %c0_67 = arith.constant 0 : index
    %c0_68 = arith.constant 0 : index
    %198 = vector.load %arg17[%c0_66, %c0_67, %c0_68] : memref<1x32x32xbf16, #tpu.memory_space<vmem>>, vector<1x32x32xbf16>
    %199 = vector.shape_cast %198 : vector<1x32x32xbf16> to vector<32x32xbf16>
    %cst_69 = arith.constant dense<0.000000e+00> : vector<8x32xf32>
    %200 = tpu.matmul %197, %199, %cst_69 {dimension_numbers = #tpu.dot_dimension_numbers<[1], [0], [0], [1], [0, 0, 1, 1], [], []>} : vector<8x32xbf16>, vector<32x32xbf16>, vector<8x32xf32> -> vector<8x32xf32>
    %c0_70 = arith.constant 0 : index
    %c0_71 = arith.constant 0 : index
    %c0_72 = arith.constant 0 : index
    %201 = vector.load %arg18[%c0_70, %c0_71, %c0_72] : memref<1x1x32xf32, #tpu.memory_space<vmem>>, vector<1x1x32xf32>
    %202 = vector.shape_cast %201 : vector<1x1x32xf32> to vector<1x32xf32>
    %203 = vector.broadcast %202 : vector<1x32xf32> to vector<8x32xf32>
    %204 = arith.addf %200, %203 : vector<8x32xf32>
    %205 = arith.addf %204, %126 : vector<8x32xf32>
    %cst_73 = arith.constant dense<0.000000e+00> : vector<8xf32>
    %206 = vector.multi_reduction <add>, %205, %cst_73 [1] : vector<8x32xf32> to vector<8xf32>
    %207 = vector.shape_cast %206 : vector<8xf32> to vector<8x1xf32>
    %cst_74 = arith.constant 3.200000e+01 : f32
    %208 = vector.broadcast %cst_74 : f32 to vector<8x1xf32>
    %209 = arith.divf %207, %208 : vector<8x1xf32>
    %210 = vector.broadcast %209 : vector<8x1xf32> to vector<8x32xf32>
    %211 = arith.subf %205, %210 : vector<8x32xf32>
    %212 = arith.mulf %211, %211 : vector<8x32xf32>
    %cst_75 = arith.constant dense<0.000000e+00> : vector<8xf32>
    %213 = vector.multi_reduction <add>, %212, %cst_75 [1] : vector<8x32xf32> to vector<8xf32>
    %214 = vector.shape_cast %213 : vector<8xf32> to vector<8x1xf32>
    %cst_76 = arith.constant 3.200000e+01 : f32
    %215 = vector.broadcast %cst_76 : f32 to vector<8x1xf32>
    %216 = arith.divf %214, %215 : vector<8x1xf32>
    %217 = vector.broadcast %209 : vector<8x1xf32> to vector<8x32xf32>
    %218 = arith.subf %205, %217 : vector<8x32xf32>
    %cst_77 = arith.constant 9.99999974E-6 : f32
    %219 = vector.broadcast %cst_77 : f32 to vector<8x1xf32>
    %220 = arith.addf %216, %219 : vector<8x1xf32>
    %221 = math.rsqrt %220 : vector<8x1xf32>
    %222 = vector.broadcast %221 : vector<8x1xf32> to vector<8x32xf32>
    %223 = arith.mulf %218, %222 : vector<8x32xf32>
    %c0_78 = arith.constant 0 : index
    %c0_79 = arith.constant 0 : index
    %c0_80 = arith.constant 0 : index
    %224 = vector.load %arg19[%c0_78, %c0_79, %c0_80] : memref<1x1x32xf32, #tpu.memory_space<vmem>>, vector<1x1x32xf32>
    %225 = vector.shape_cast %224 : vector<1x1x32xf32> to vector<1x32xf32>
    %226 = vector.broadcast %225 : vector<1x32xf32> to vector<8x32xf32>
    %227 = arith.mulf %223, %226 : vector<8x32xf32>
    %c0_81 = arith.constant 0 : index
    %c0_82 = arith.constant 0 : index
    %c0_83 = arith.constant 0 : index
    %228 = vector.load %arg20[%c0_81, %c0_82, %c0_83] : memref<1x1x32xf32, #tpu.memory_space<vmem>>, vector<1x1x32xf32>
    %229 = vector.shape_cast %228 : vector<1x1x32xf32> to vector<1x32xf32>
    %230 = vector.broadcast %229 : vector<1x32xf32> to vector<8x32xf32>
    %231 = arith.addf %227, %230 : vector<8x32xf32>
    %232 = vector.broadcast %7 : vector<8x1xf32> to vector<8x32xf32>
    %233 = arith.mulf %231, %232 : vector<8x32xf32>
    %234 = arith.truncf %233 : vector<8x32xf32> to vector<8x32xbf16>
    %c0_84 = arith.constant 0 : index
    %c0_85 = arith.constant 0 : index
    %c0_86 = arith.constant 0 : index
    %235 = vector.load %arg21[%c0_84, %c0_85, %c0_86] : memref<1x32x64xbf16, #tpu.memory_space<vmem>>, vector<1x32x64xbf16>
    %236 = vector.shape_cast %235 : vector<1x32x64xbf16> to vector<32x64xbf16>
    %cst_87 = arith.constant dense<0.000000e+00> : vector<8x64xf32>
    %237 = tpu.matmul %234, %236, %cst_87 {dimension_numbers = #tpu.dot_dimension_numbers<[1], [0], [0], [1], [0, 0, 1, 1], [], []>} : vector<8x32xbf16>, vector<32x64xbf16>, vector<8x64xf32> -> vector<8x64xf32>
    %c0_88 = arith.constant 0 : index
    %c0_89 = arith.constant 0 : index
    %c0_90 = arith.constant 0 : index
    %238 = vector.load %arg22[%c0_88, %c0_89, %c0_90] : memref<1x1x64xf32, #tpu.memory_space<vmem>>, vector<1x1x64xf32>
    %239 = vector.shape_cast %238 : vector<1x1x64xf32> to vector<1x64xf32>
    %240 = vector.broadcast %239 : vector<1x64xf32> to vector<8x64xf32>
    %241 = arith.addf %237, %240 : vector<8x64xf32>
    %cst_91 = arith.constant 0.000000e+00 : f32
    %242 = vector.broadcast %cst_91 : f32 to vector<8x64xf32>
    %243 = arith.maximumf %241, %242 : vector<8x64xf32>
    %244 = arith.truncf %243 : vector<8x64xf32> to vector<8x64xbf16>
    %c0_92 = arith.constant 0 : index
    %c0_93 = arith.constant 0 : index
    %c0_94 = arith.constant 0 : index
    %245 = vector.load %arg23[%c0_92, %c0_93, %c0_94] : memref<1x64x32xbf16, #tpu.memory_space<vmem>>, vector<1x64x32xbf16>
    %246 = vector.shape_cast %245 : vector<1x64x32xbf16> to vector<64x32xbf16>
    %cst_95 = arith.constant dense<0.000000e+00> : vector<8x32xf32>
    %247 = tpu.matmul %244, %246, %cst_95 {dimension_numbers = #tpu.dot_dimension_numbers<[1], [0], [0], [1], [0, 0, 1, 1], [], []>} : vector<8x64xbf16>, vector<64x32xbf16>, vector<8x32xf32> -> vector<8x32xf32>
    %c0_96 = arith.constant 0 : index
    %c0_97 = arith.constant 0 : index
    %c0_98 = arith.constant 0 : index
    %248 = vector.load %arg24[%c0_96, %c0_97, %c0_98] : memref<1x1x32xf32, #tpu.memory_space<vmem>>, vector<1x1x32xf32>
    %249 = vector.shape_cast %248 : vector<1x1x32xf32> to vector<1x32xf32>
    %250 = vector.broadcast %249 : vector<1x32xf32> to vector<8x32xf32>
    %251 = arith.addf %247, %250 : vector<8x32xf32>
    %252 = arith.addf %251, %233 : vector<8x32xf32>
    %cst_99 = arith.constant dense<0.000000e+00> : vector<8xf32>
    %253 = vector.multi_reduction <add>, %252, %cst_99 [1] : vector<8x32xf32> to vector<8xf32>
    %254 = vector.shape_cast %253 : vector<8xf32> to vector<8x1xf32>
    %cst_100 = arith.constant 3.200000e+01 : f32
    %255 = vector.broadcast %cst_100 : f32 to vector<8x1xf32>
    %256 = arith.divf %254, %255 : vector<8x1xf32>
    %257 = vector.broadcast %256 : vector<8x1xf32> to vector<8x32xf32>
    %258 = arith.subf %252, %257 : vector<8x32xf32>
    %259 = arith.mulf %258, %258 : vector<8x32xf32>
    %cst_101 = arith.constant dense<0.000000e+00> : vector<8xf32>
    %260 = vector.multi_reduction <add>, %259, %cst_101 [1] : vector<8x32xf32> to vector<8xf32>
    %261 = vector.shape_cast %260 : vector<8xf32> to vector<8x1xf32>
    %cst_102 = arith.constant 3.200000e+01 : f32
    %262 = vector.broadcast %cst_102 : f32 to vector<8x1xf32>
    %263 = arith.divf %261, %262 : vector<8x1xf32>
    %264 = vector.broadcast %256 : vector<8x1xf32> to vector<8x32xf32>
    %265 = arith.subf %252, %264 : vector<8x32xf32>
    %cst_103 = arith.constant 9.99999974E-6 : f32
    %266 = vector.broadcast %cst_103 : f32 to vector<8x1xf32>
    %267 = arith.addf %263, %266 : vector<8x1xf32>
    %268 = math.rsqrt %267 : vector<8x1xf32>
    %269 = vector.broadcast %268 : vector<8x1xf32> to vector<8x32xf32>
    %270 = arith.mulf %265, %269 : vector<8x32xf32>
    %c0_104 = arith.constant 0 : index
    %c0_105 = arith.constant 0 : index
    %c0_106 = arith.constant 0 : index
    %271 = vector.load %arg25[%c0_104, %c0_105, %c0_106] : memref<1x1x32xf32, #tpu.memory_space<vmem>>, vector<1x1x32xf32>
    %272 = vector.shape_cast %271 : vector<1x1x32xf32> to vector<1x32xf32>
    %273 = vector.broadcast %272 : vector<1x32xf32> to vector<8x32xf32>
    %274 = arith.mulf %270, %273 : vector<8x32xf32>
    %c0_107 = arith.constant 0 : index
    %c0_108 = arith.constant 0 : index
    %c0_109 = arith.constant 0 : index
    %275 = vector.load %arg26[%c0_107, %c0_108, %c0_109] : memref<1x1x32xf32, #tpu.memory_space<vmem>>, vector<1x1x32xf32>
    %276 = vector.shape_cast %275 : vector<1x1x32xf32> to vector<1x32xf32>
    %277 = vector.broadcast %276 : vector<1x32xf32> to vector<8x32xf32>
    %278 = arith.addf %274, %277 : vector<8x32xf32>
    %279 = vector.broadcast %7 : vector<8x1xf32> to vector<8x32xf32>
    %280 = arith.mulf %278, %279 : vector<8x32xf32>
    %c0_110 = arith.constant 0 : index
    %c0_111 = arith.constant 0 : index
    %281 = vector.load %arg28[%c0_110, %c0_111] : memref<8x32xf32, #tpu.memory_space<vmem>>, vector<8x32xf32>
    tpu.vector_store %arg28[%c0_110, %c0_111], %280 {strides = array<i32>} : memref<8x32xf32, #tpu.memory_space<vmem>>, vector<8x32xf32>,
    %c0_112 = arith.constant 0 : index
    %c0_113 = arith.constant 0 : index
    %c0_114 = arith.constant 0 : index
    %282 = vector.load %arg27[%c0_112, %c0_113, %c0_114] : memref<1x8x32xf32, #tpu.memory_space<vmem>>, vector<1x8x32xf32>
    %283 = vector.shape_cast %282 : vector<1x8x32xf32> to vector<8x32xf32>
    %284 = vector.shape_cast %280 : vector<8x32xf32> to vector<1x8x32xf32>
    tpu.vector_store %arg27[%c0_112, %c0_113, %c0_114], %284 {strides = array<i32>} : memref<1x8x32xf32, #tpu.memory_space<vmem>>, vector<1x8x32xf32>,
    return
  }
  func.func @transform_0(%arg0: i32, %arg1: i32) -> (i32, i32, i32) {
    %c0_i32 = arith.constant 0 : i32
    %c0_i32_0 = arith.constant 0 : i32
    %c0_i32_1 = arith.constant 0 : i32
    return %arg0, %c0_i32, %c0_i32_0 : i32, i32, i32
  }
  func.func @transform_1(%arg0: i32, %arg1: i32) -> (i32, i32, i32) {
    %c0_i32 = arith.constant 0 : i32
    %c0_i32_0 = arith.constant 0 : i32
    %c0_i32_1 = arith.constant 0 : i32
    return %arg0, %c0_i32, %c0_i32_0 : i32, i32, i32
  }
  func.func @transform_2(%arg0: i32, %arg1: i32) -> (i32, i32, i32) {
    %c0_i32 = arith.constant 0 : i32
    %c0_i32_0 = arith.constant 0 : i32
    %c0_i32_1 = arith.constant 0 : i32
    return %arg0, %c0_i32, %c0_i32_0 : i32, i32, i32
  }
  func.func @transform_3(%arg0: i32, %arg1: i32) -> (i32, i32, i32) {
    %c0_i32 = arith.constant 0 : i32
    %c0_i32_0 = arith.constant 0 : i32
    %c0_i32_1 = arith.constant 0 : i32
    return %arg0, %c0_i32, %c0_i32_0 : i32, i32, i32
  }
  func.func @transform_4(%arg0: i32, %arg1: i32) -> (i32, i32, i32) {
    %c0_i32 = arith.constant 0 : i32
    %c0_i32_0 = arith.constant 0 : i32
    %c0_i32_1 = arith.constant 0 : i32
    return %arg0, %c0_i32, %c0_i32_0 : i32, i32, i32
  }
  func.func @transform_5(%arg0: i32, %arg1: i32) -> (i32, i32, i32) {
    %c0_i32 = arith.constant 0 : i32
    %c0_i32_0 = arith.constant 0 : i32
    %c0_i32_1 = arith.constant 0 : i32
    return %arg1, %c0_i32, %c0_i32_0 : i32, i32, i32
  }
  func.func @transform_6(%arg0: i32, %arg1: i32) -> (i32, i32, i32) {
    %c0_i32 = arith.constant 0 : i32
    %c0_i32_0 = arith.constant 0 : i32
    %c0_i32_1 = arith.constant 0 : i32
    return %arg1, %c0_i32, %c0_i32_0 : i32, i32, i32
  }
  func.func @transform_7(%arg0: i32, %arg1: i32) -> (i32, i32, i32) {
    %c0_i32 = arith.constant 0 : i32
    %c0_i32_0 = arith.constant 0 : i32
    %c0_i32_1 = arith.constant 0 : i32
    return %arg1, %c0_i32, %c0_i32_0 : i32, i32, i32
  }
  func.func @transform_8(%arg0: i32, %arg1: i32) -> (i32, i32, i32) {
    %c0_i32 = arith.constant 0 : i32
    %c0_i32_0 = arith.constant 0 : i32
    %c0_i32_1 = arith.constant 0 : i32
    return %arg1, %c0_i32, %c0_i32_0 : i32, i32, i32
  }
  func.func @transform_9(%arg0: i32, %arg1: i32) -> (i32, i32, i32) {
    %c0_i32 = arith.constant 0 : i32
    %c0_i32_0 = arith.constant 0 : i32
    %c0_i32_1 = arith.constant 0 : i32
    return %arg1, %c0_i32, %c0_i32_0 : i32, i32, i32
  }
  func.func @transform_10(%arg0: i32, %arg1: i32) -> (i32, i32, i32) {
    %c0_i32 = arith.constant 0 : i32
    %c0_i32_0 = arith.constant 0 : i32
    %c0_i32_1 = arith.constant 0 : i32
    return %arg1, %c0_i32, %c0_i32_0 : i32, i32, i32
  }
  func.func @transform_11(%arg0: i32, %arg1: i32) -> (i32, i32, i32) {
    %c0_i32 = arith.constant 0 : i32
    %c0_i32_0 = arith.constant 0 : i32
    %c0_i32_1 = arith.constant 0 : i32
    return %arg1, %c0_i32, %c0_i32_0 : i32, i32, i32
  }
  func.func @transform_12(%arg0: i32, %arg1: i32) -> (i32, i32, i32) {
    %c0_i32 = arith.constant 0 : i32
    %c0_i32_0 = arith.constant 0 : i32
    %c0_i32_1 = arith.constant 0 : i32
    return %arg1, %c0_i32, %c0_i32_0 : i32, i32, i32
  }
  func.func @transform_13(%arg0: i32, %arg1: i32) -> (i32, i32, i32) {
    %c0_i32 = arith.constant 0 : i32
    %c0_i32_0 = arith.constant 0 : i32
    %c0_i32_1 = arith.constant 0 : i32
    return %arg1, %c0_i32, %c0_i32_0 : i32, i32, i32
  }
  func.func @transform_14(%arg0: i32, %arg1: i32) -> (i32, i32, i32) {
    %c0_i32 = arith.constant 0 : i32
    %c0_i32_0 = arith.constant 0 : i32
    %c0_i32_1 = arith.constant 0 : i32
    return %arg1, %c0_i32, %c0_i32_0 : i32, i32, i32
  }
  func.func @transform_15(%arg0: i32, %arg1: i32) -> (i32, i32, i32) {
    %c0_i32 = arith.constant 0 : i32
    %c0_i32_0 = arith.constant 0 : i32
    %c0_i32_1 = arith.constant 0 : i32
    return %arg1, %c0_i32, %c0_i32_0 : i32, i32, i32
  }
  func.func @transform_16(%arg0: i32, %arg1: i32) -> (i32, i32, i32) {
    %c0_i32 = arith.constant 0 : i32
    %c0_i32_0 = arith.constant 0 : i32
    %c0_i32_1 = arith.constant 0 : i32
    return %arg1, %c0_i32, %c0_i32_0 : i32, i32, i32
  }
  func.func @transform_17(%arg0: i32, %arg1: i32) -> (i32, i32, i32) {
    %c0_i32 = arith.constant 0 : i32
    %c0_i32_0 = arith.constant 0 : i32
    %c0_i32_1 = arith.constant 0 : i32
    return %arg1, %c0_i32, %c0_i32_0 : i32, i32, i32
  }
  func.func @transform_18(%arg0: i32, %arg1: i32) -> (i32, i32, i32) {
    %c0_i32 = arith.constant 0 : i32
    %c0_i32_0 = arith.constant 0 : i32
    %c0_i32_1 = arith.constant 0 : i32
    return %arg1, %c0_i32, %c0_i32_0 : i32, i32, i32
  }
  func.func @transform_19(%arg0: i32, %arg1: i32) -> (i32, i32, i32) {
    %c0_i32 = arith.constant 0 : i32
    %c0_i32_0 = arith.constant 0 : i32
    %c0_i32_1 = arith.constant 0 : i32
    return %arg1, %c0_i32, %c0_i32_0 : i32, i32, i32
  }
  func.func @transform_20(%arg0: i32, %arg1: i32) -> (i32, i32, i32) {
    %c0_i32 = arith.constant 0 : i32
    %c0_i32_0 = arith.constant 0 : i32
    %c0_i32_1 = arith.constant 0 : i32
    return %arg1, %c0_i32, %c0_i32_0 : i32, i32, i32
  }
  func.func @transform_21(%arg0: i32, %arg1: i32) -> (i32, i32, i32) {
    %c0_i32 = arith.constant 0 : i32
    %c0_i32_0 = arith.constant 0 : i32
    %c0_i32_1 = arith.constant 0 : i32
    return %arg1, %c0_i32, %c0_i32_0 : i32, i32, i32
  }
  func.func @transform_22(%arg0: i32, %arg1: i32) -> (i32, i32, i32) {
    %c0_i32 = arith.constant 0 : i32
    %c0_i32_0 = arith.constant 0 : i32
    %c0_i32_1 = arith.constant 0 : i32
    return %arg1, %c0_i32, %c0_i32_0 : i32, i32, i32
  }
  func.func @transform_23(%arg0: i32, %arg1: i32) -> (i32, i32, i32) {
    %c0_i32 = arith.constant 0 : i32
    %c0_i32_0 = arith.constant 0 : i32
    %c0_i32_1 = arith.constant 0 : i32
    return %arg1, %c0_i32, %c0_i32_0 : i32, i32, i32
  }
  func.func @transform_24(%arg0: i32, %arg1: i32) -> (i32, i32, i32) {
    %c0_i32 = arith.constant 0 : i32
    %c0_i32_0 = arith.constant 0 : i32
    %c0_i32_1 = arith.constant 0 : i32
    return %arg1, %c0_i32, %c0_i32_0 : i32, i32, i32
  }
  func.func @transform_25(%arg0: i32, %arg1: i32) -> (i32, i32, i32) {
    %c0_i32 = arith.constant 0 : i32
    %c0_i32_0 = arith.constant 0 : i32
    %c0_i32_1 = arith.constant 0 : i32
    return %arg0, %c0_i32, %c0_i32_0 : i32, i32, i32
  }
}

</mosaic_0001>

<llo_original>
// kernel: decoder_forward.1
$region0: #{decoder_forward.1}
  #allocation0 [shape = 'u32[]', space=smem, size = 0x4, offset = 0x4, fixed_abs, tag = 'smem constant byte address 0x4 - core index']
  #allocation1 [shape = 'u32[144,128]{1,0:T(1,128)}', space=vmem, size = 0x12000, scoped, tag = 'internal scratch']
  #allocation2 [shape = 'f32[8,32]{1,0:T(8,128)}', space=vmem, size = 0x1000, scoped, tag = 'scratch operand']
  %s0 = inlined_call_operand.vmem [shape: f32[2,8,32], index: 0, kind: input, shape index: {}]
  %s1 = inlined_call_operand.vmem [shape: bf16[2,10,32], index: 1, kind: input, shape index: {}]
  %s2 = inlined_call_operand.vmem [shape: f32[2,8,1], index: 2, kind: input, shape index: {}]
  %s3 = inlined_call_operand.vmem [shape: f32[2,1,8], index: 3, kind: input, shape index: {}]
  %s4 = inlined_call_operand.vmem [shape: f32[2,1,10], index: 4, kind: input, shape index: {}]
  %s5 = inlined_call_operand.vmem [shape: bf16[2,32,96], index: 5, kind: input, shape index: {}]
  %s6 = inlined_call_operand.vmem [shape: f32[2,1,96], index: 6, kind: input, shape index: {}]
  %s7 = inlined_call_operand.vmem [shape: bf16[2,32,32], index: 7, kind: input, shape index: {}]
  %s8 = inlined_call_operand.vmem [shape: f32[2,1,32], index: 8, kind: input, shape index: {}]
  %s9 = inlined_call_operand.vmem [shape: f32[2,1,32], index: 9, kind: input, shape index: {}]
  %s10 = inlined_call_operand.vmem [shape: f32[2,1,32], index: 10, kind: input, shape index: {}]
  %s11 = inlined_call_operand.vmem [shape: bf16[2,32,32], index: 11, kind: input, shape index: {}]
  %s12 = inlined_call_operand.vmem [shape: f32[2,1,32], index: 12, kind: input, shape index: {}]
  %s13 = inlined_call_operand.vmem [shape: bf16[2,32,64], index: 13, kind: input, shape index: {}]
  %s14 = inlined_call_operand.vmem [shape: f32[2,1,64], index: 14, kind: input, shape index: {}]
  %s15 = inlined_call_operand.vmem [shape: bf16[2,32,32], index: 15, kind: input, shape index: {}]
  %s16 = inlined_call_operand.vmem [shape: f32[2,1,32], index: 16, kind: input, shape index: {}]
  %s17 = inlined_call_operand.vmem [shape: f32[2,1,32], index: 17, kind: input, shape index: {}]
  %s18 = inlined_call_operand.vmem [shape: f32[2,1,32], index: 18, kind: input, shape index: {}]
  %s19 = inlined_call_operand.vmem [shape: bf16[2,32,64], index: 19, kind: input, shape index: {}]
  %s20 = inlined_call_operand.vmem [shape: f32[2,1,64], index: 20, kind: input, shape index: {}]
  %s21 = inlined_call_operand.vmem [shape: bf16[2,64,32], index: 21, kind: input, shape index: {}]
  %s22 = inlined_call_operand.vmem [shape: f32[2,1,32], index: 22, kind: input, shape index: {}]
  %s23 = inlined_call_operand.vmem [shape: f32[2,1,32], index: 23, kind: input, shape index: {}]
  %s24 = inlined_call_operand.vmem [shape: f32[2,1,32], index: 24, kind: input, shape index: {}]
  %s25 = inlined_call_operand.hbm [shape: f32[2,8,32], index: 25, kind: output, shape index: {}]
  %s26 = sld [smem:[#allocation0]]
  $region137: #{decoder_forward.1} parent=0
    _
  %s28 = ssub.s32 1, %s26
  %s29 = scalar_select 0, %s28, %s26
  $region1: #{decoder_forward.1} parent=0
    #allocation3 [shape = 'u8[8192]{0}', space=vmem, size = 0x2000, scoped, tag = 'output window, operand 0']
    #allocation4 [shape = 's32[2]{0}', space=sflag, size = 0x8, scoped, tag = 'scoped memory for decoder_forward.1']
    %30 = vsyncpa [#allocation4], 0
    %s31 = scalar_lea.sflag [#allocation4], 1
    %32 = vsyncpa %s31, 0
    loop: start=0, step=1, limit=6
    $region2: #{decoder_forward.1} parent=1 // loop_pre_header
      _
    $region3: #{decoder_forward.1} parent=1 // loop_header
      %s34 = sphi 0, %s38
      %p35 = scmp.ge.s32.totalorder %s34, 6
      %s41 = sphi 0, %s53
      %s42 = sphi 0, %s49
      %s43 = sphi 0, %s41
      %s44 = sphi 0, %s42
      %s45 = sphi 0, %s43
      %s46 = sphi 0, %s44
      %s56 = sphi 0, %s58
      %s59 = sphi 0, %s56
      %s60 = sphi 0, %s59
      %s76 = sphi 0, %s60
      %s82 = sphi 0, %s84
      %s85 = sphi 0, %s82
      %s86 = sphi 0, %s85
      %s102 = sphi 0, %s86
      %s108 = sphi 0, %s110
      %s111 = sphi 0, %s108
      %s112 = sphi 0, %s111
      %s128 = sphi 0, %s112
      %s134 = sphi 0, %s136
      %s137 = sphi 0, %s134
      %s138 = sphi 0, %s137
      %s154 = sphi 0, %s138
      %s160 = sphi 0, %s162
      %s163 = sphi 0, %s160
      %s164 = sphi 0, %s163
      %s180 = sphi 0, %s164
      %s186 = sphi 0, %s188
      %s189 = sphi 0, %s186
      %s190 = sphi 0, %s189
      %s206 = sphi 0, %s190
      %s212 = sphi 0, %s214
      %s215 = sphi 0, %s212
      %s216 = sphi 0, %s215
      %s232 = sphi 0, %s216
      %s238 = sphi 0, %s240
      %s241 = sphi 0, %s238
      %s242 = sphi 0, %s241
      %s258 = sphi 0, %s242
      %s264 = sphi 0, %s266
      %s267 = sphi 0, %s264
      %s268 = sphi 0, %s267
      %s284 = sphi 0, %s268
      %s290 = sphi 0, %s292
      %s293 = sphi 0, %s290
      %s294 = sphi 0, %s293
      %s310 = sphi 0, %s294
      %s316 = sphi 0, %s318
      %s319 = sphi 0, %s316
      %s320 = sphi 0, %s319
      %s336 = sphi 0, %s320
      %s342 = sphi 0, %s344
      %s345 = sphi 0, %s342
      %s346 = sphi 0, %s345
      %s362 = sphi 0, %s346
      %s368 = sphi 0, %s370
      %s371 = sphi 0, %s368
      %s372 = sphi 0, %s371
      %s388 = sphi 0, %s372
      %s394 = sphi 0, %s396
      %s397 = sphi 0, %s394
      %s398 = sphi 0, %s397
      %s414 = sphi 0, %s398
      %s420 = sphi 0, %s422
      %s423 = sphi 0, %s420
      %s424 = sphi 0, %s423
      %s440 = sphi 0, %s424
      %s446 = sphi 0, %s448
      %s449 = sphi 0, %s446
      %s450 = sphi 0, %s449
      %s466 = sphi 0, %s450
      %s472 = sphi 0, %s474
      %s475 = sphi 0, %s472
      %s476 = sphi 0, %s475
      %s492 = sphi 0, %s476
      %s498 = sphi 0, %s500
      %s501 = sphi 0, %s498
      %s502 = sphi 0, %s501
      %s518 = sphi 0, %s502
      %s524 = sphi 0, %s526
      %s527 = sphi 0, %s524
      %s528 = sphi 0, %s527
      %s544 = sphi 0, %s528
      %s550 = sphi 0, %s552
      %s553 = sphi 0, %s550
      %s554 = sphi 0, %s553
      %s570 = sphi 0, %s554
      %s576 = sphi 0, %s578
      %s579 = sphi 0, %s576
      %s580 = sphi 0, %s579
      %s596 = sphi 0, %s580
      %s602 = sphi 0, %s604
      %s605 = sphi 0, %s602
      %s606 = sphi 0, %s605
      %s622 = sphi 0, %s606
      %s628 = sphi 0, %s630
      %s631 = sphi 0, %s628
      %s632 = sphi 0, %s631
      %s648 = sphi 0, %s632
      %s654 = sphi 0, %s656
      %s657 = sphi 0, %s654
      %s658 = sphi 0, %s657
      %s674 = sphi 0, %s658
      %s680 = sphi 0, %s682
      %s683 = sphi 0, %s680
      %s684 = sphi 0, %s683
      %s700 = sphi 0, %s684
      %s706 = sphi 0, %s708
      %s709 = sphi 0, %s706
      %s710 = sphi 0, %s709
      %s726 = sphi 0, %s710
    $region4: #{decoder_forward.1} parent=1 // loop_header_branch
      %37 = sbr.rel (%p35) target = $region8
    $region5: #{decoder_forward.1} parent=1 // loop_body
      %s39 = ssub.s32 %s34, 1
      %s40 = ssub.s32 %s34, 2
      %s47 = sadd.s32 1, %s42
      %p48 = scmp.ge.s32.totalorder %s47, 2
      %s49 = scalar_select %p48, 0, %s47
      %s50 = sadd.s32 1, %s41
      %s51 = scalar_select %p48, %s50, %s41
      %p52 = scmp.ge.s32.totalorder %s51, 2
      %s53 = scalar_select %p52, 0, %s51
      %s54 = ssub.s32 %s41, %s53
      %p55 = scmp.eq.s32.totalorder %s54, 0
      %s57 = sadd.s32 %s56, 1
      %s58 = scalar_select %p55, %s56, %s57
      %p61 = pneg %p55
      %p62 = scmp.eq.s32.totalorder %s34, 3
      %p63 = por %p61, %p62
      %p64 = scmp.ne.s32.totalorder %s56, %s59
      %p65 = scmp.eq.s32.totalorder %s34, 0
      %p66 = por %p64, %p65
      %p67 = scmp.ne.s32.totalorder %s56, %s59
      %p68 = scmp.eq.s32.totalorder %s39, 3
      %p69 = por %p67, %p68
      %p70 = scmp.ne.s32.totalorder %s59, %s60
      %p71 = scmp.eq.s32.totalorder %s39, 0
      %p72 = por %p70, %p71
      %p73 = scmp.ne.s32.totalorder %s59, %s60
      %p74 = scmp.eq.s32.totalorder %s40, 3
      %p75 = por %p73, %p74
      %p77 = scmp.ne.s32.totalorder %s60, %s76
      %p78 = scmp.eq.s32.totalorder %s40, 0
      %p79 = por %p77, %p78
      %s80 = ssub.s32 %s41, %s53
      %p81 = scmp.eq.s32.totalorder %s80, 0
      %s83 = sadd.s32 %s82, 1
      %s84 = scalar_select %p81, %s82, %s83
      %p87 = pneg %p81
      %p88 = scmp.eq.s32.totalorder %s34, 3
      %p89 = por %p87, %p88
      %p90 = scmp.ne.s32.totalorder %s82, %s85
      %p91 = scmp.eq.s32.totalorder %s34, 0
      %p92 = por %p90, %p91
      %p93 = scmp.ne.s32.totalorder %s82, %s85
      %p94 = scmp.eq.s32.totalorder %s39, 3
      %p95 = por %p93, %p94
      %p96 = scmp.ne.s32.totalorder %s85, %s86
      %p97 = scmp.eq.s32.totalorder %s39, 0
      %p98 = por %p96, %p97
      %p99 = scmp.ne.s32.totalorder %s85, %s86
      %p100 = scmp.eq.s32.totalorder %s40, 3
      %p101 = por %p99, %p100
      %p103 = scmp.ne.s32.totalorder %s86, %s102
      %p104 = scmp.eq.s32.totalorder %s40, 0
      %p105 = por %p103, %p104
      %s106 = ssub.s32 %s41, %s53
      %p107 = scmp.eq.s32.totalorder %s106, 0
      %s109 = sadd.s32 %s108, 1
      %s110 = scalar_select %p107, %s108, %s109
      %p113 = pneg %p107
      %p114 = scmp.eq.s32.totalorder %s34, 3
      %p115 = por %p113, %p114
      %p116 = scmp.ne.s32.totalorder %s108, %s111
      %p117 = scmp.eq.s32.totalorder %s34, 0
      %p118 = por %p116, %p117
      %p119 = scmp.ne.s32.totalorder %s108, %s111
      %p120 = scmp.eq.s32.totalorder %s39, 3
      %p121 = por %p119, %p120
      %p122 = scmp.ne.s32.totalorder %s111, %s112
      %p123 = scmp.eq.s32.totalorder %s39, 0
      %p124 = por %p122, %p123
      %p125 = scmp.ne.s32.totalorder %s111, %s112
      %p126 = scmp.eq.s32.totalorder %s40, 3
      %p127 = por %p125, %p126
      %p129 = scmp.ne.s32.totalorder %s112, %s128
      %p130 = scmp.eq.s32.totalorder %s40, 0
      %p131 = por %p129, %p130
      %s132 = ssub.s32 %s41, %s53
      %p133 = scmp.eq.s32.totalorder %s132, 0
      %s135 = sadd.s32 %s134, 1
      %s136 = scalar_select %p133, %s134, %s135
      %p139 = pneg %p133
      %p140 = scmp.eq.s32.totalorder %s34, 3
      %p141 = por %p139, %p140
      %p142 = scmp.ne.s32.totalorder %s134, %s137
      %p143 = scmp.eq.s32.totalorder %s34, 0
      %p144 = por %p142, %p143
      %p145 = scmp.ne.s32.totalorder %s134, %s137
      %p146 = scmp.eq.s32.totalorder %s39, 3
      %p147 = por %p145, %p146
      %p148 = scmp.ne.s32.totalorder %s137, %s138
      %p149 = scmp.eq.s32.totalorder %s39, 0
      %p150 = por %p148, %p149
      %p151 = scmp.ne.s32.totalorder %s137, %s138
      %p152 = scmp.eq.s32.totalorder %s40, 3
      %p153 = por %p151, %p152
      %p155 = scmp.ne.s32.totalorder %s138, %s154
      %p156 = scmp.eq.s32.totalorder %s40, 0
      %p157 = por %p155, %p156
      %s158 = ssub.s32 %s41, %s53
      %p159 = scmp.eq.s32.totalorder %s158, 0
      %s161 = sadd.s32 %s160, 1
      %s162 = scalar_select %p159, %s160, %s161
      %p165 = pneg %p159
      %p166 = scmp.eq.s32.totalorder %s34, 3
      %p167 = por %p165, %p166
      %p168 = scmp.ne.s32.totalorder %s160, %s163
      %p169 = scmp.eq.s32.totalorder %s34, 0
      %p170 = por %p168, %p169
      %p171 = scmp.ne.s32.totalorder %s160, %s163
      %p172 = scmp.eq.s32.totalorder %s39, 3
      %p173 = por %p171, %p172
      %p174 = scmp.ne.s32.totalorder %s163, %s164
      %p175 = scmp.eq.s32.totalorder %s39, 0
      %p176 = por %p174, %p175
      %p177 = scmp.ne.s32.totalorder %s163, %s164
      %p178 = scmp.eq.s32.totalorder %s40, 3
      %p179 = por %p177, %p178
      %p181 = scmp.ne.s32.totalorder %s164, %s180
      %p182 = scmp.eq.s32.totalorder %s40, 0
      %p183 = por %p181, %p182
      %s184 = ssub.s32 %s42, %s49
      %p185 = scmp.eq.s32.totalorder %s184, 0
      %s187 = sadd.s32 %s186, 1
      %s188 = scalar_select %p185, %s186, %s187
      %p191 = pneg %p185
      %p192 = scmp.eq.s32.totalorder %s34, 3
      %p193 = por %p191, %p192
      %p194 = scmp.ne.s32.totalorder %s186, %s189
      %p195 = scmp.eq.s32.totalorder %s34, 0
      %p196 = por %p194, %p195
      %p197 = scmp.ne.s32.totalorder %s186, %s189
      %p198 = scmp.eq.s32.totalorder %s39, 3
      %p199 = por %p197, %p198
      %p200 = scmp.ne.s32.totalorder %s189, %s190
      %p201 = scmp.eq.s32.totalorder %s39, 0
      %p202 = por %p200, %p201
      %p203 = scmp.ne.s32.totalorder %s189, %s190
      %p204 = scmp.eq.s32.totalorder %s40, 3
      %p205 = por %p203, %p204
      %p207 = scmp.ne.s32.totalorder %s190, %s206
      %p208 = scmp.eq.s32.totalorder %s40, 0
      %p209 = por %p207, %p208
      %s210 = ssub.s32 %s42, %s49
      %p211 = scmp.eq.s32.totalorder %s210, 0
      %s213 = sadd.s32 %s212, 1
      %s214 = scalar_select %p211, %s212, %s213
      %p217 = pneg %p211
      %p218 = scmp.eq.s32.totalorder %s34, 3
      %p219 = por %p217, %p218
      %p220 = scmp.ne.s32.totalorder %s212, %s215
      %p221 = scmp.eq.s32.totalorder %s34, 0
      %p222 = por %p220, %p221
      %p223 = scmp.ne.s32.totalorder %s212, %s215
      %p224 = scmp.eq.s32.totalorder %s39, 3
      %p225 = por %p223, %p224
      %p226 = scmp.ne.s32.totalorder %s215, %s216
      %p227 = scmp.eq.s32.totalorder %s39, 0
      %p228 = por %p226, %p227
      %p229 = scmp.ne.s32.totalorder %s215, %s216
      %p230 = scmp.eq.s32.totalorder %s40, 3
      %p231 = por %p229, %p230
      %p233 = scmp.ne.s32.totalorder %s216, %s232
      %p234 = scmp.eq.s32.totalorder %s40, 0
      %p235 = por %p233, %p234
      %s236 = ssub.s32 %s42, %s49
      %p237 = scmp.eq.s32.totalorder %s236, 0
      %s239 = sadd.s32 %s238, 1
      %s240 = scalar_select %p237, %s238, %s239
      %p243 = pneg %p237
      %p244 = scmp.eq.s32.totalorder %s34, 3
      %p245 = por %p243, %p244
      %p246 = scmp.ne.s32.totalorder %s238, %s241
      %p247 = scmp.eq.s32.totalorder %s34, 0
      %p248 = por %p246, %p247
      %p249 = scmp.ne.s32.totalorder %s238, %s241
      %p250 = scmp.eq.s32.totalorder %s39, 3
      %p251 = por %p249, %p250
      %p252 = scmp.ne.s32.totalorder %s241, %s242
      %p253 = scmp.eq.s32.totalorder %s39, 0
      %p254 = por %p252, %p253
      %p255 = scmp.ne.s32.totalorder %s241, %s242
      %p256 = scmp.eq.s32.totalorder %s40, 3
      %p257 = por %p255, %p256
      %p259 = scmp.ne.s32.totalorder %s242, %s258
      %p260 = scmp.eq.s32.totalorder %s40, 0
      %p261 = por %p259, %p260
      %s262 = ssub.s32 %s42, %s49
      %p263 = scmp.eq.s32.totalorder %s262, 0
      %s265 = sadd.s32 %s264, 1
      %s266 = scalar_select %p263, %s264, %s265
      %p269 = pneg %p263
      %p270 = scmp.eq.s32.totalorder %s34, 3
      %p271 = por %p269, %p270
      %p272 = scmp.ne.s32.totalorder %s264, %s267
      %p273 = scmp.eq.s32.totalorder %s34, 0
      %p274 = por %p272, %p273
      %p275 = scmp.ne.s32.totalorder %s264, %s267
      %p276 = scmp.eq.s32.totalorder %s39, 3
      %p277 = por %p275, %p276
      %p278 = scmp.ne.s32.totalorder %s267, %s268
      %p279 = scmp.eq.s32.totalorder %s39, 0
      %p280 = por %p278, %p279
      %p281 = scmp.ne.s32.totalorder %s267, %s268
      %p282 = scmp.eq.s32.totalorder %s40, 3
      %p283 = por %p281, %p282
      %p285 = scmp.ne.s32.totalorder %s268, %s284
      %p286 = scmp.eq.s32.totalorder %s40, 0
      %p287 = por %p285, %p286
      %s288 = ssub.s32 %s42, %s49
      %p289 = scmp.eq.s32.totalorder %s288, 0
      %s291 = sadd.s32 %s290, 1
      %s292 = scalar_select %p289, %s290, %s291
      %p295 = pneg %p289
      %p296 = scmp.eq.s32.totalorder %s34, 3
      %p297 = por %p295, %p296
      %p298 = scmp.ne.s32.totalorder %s290, %s293
      %p299 = scmp.eq.s32.totalorder %s34, 0
      %p300 = por %p298, %p299
      %p301 = scmp.ne.s32.totalorder %s290, %s293
      %p302 = scmp.eq.s32.totalorder %s39, 3
      %p303 = por %p301, %p302
      %p304 = scmp.ne.s32.totalorder %s293, %s294
      %p305 = scmp.eq.s32.totalorder %s39, 0
      %p306 = por %p304, %p305
      %p307 = scmp.ne.s32.totalorder %s293, %s294
      %p308 = scmp.eq.s32.totalorder %s40, 3
      %p309 = por %p307, %p308
      %p311 = scmp.ne.s32.totalorder %s294, %s310
      %p312 = scmp.eq.s32.totalorder %s40, 0
      %p313 = por %p311, %p312
      %s314 = ssub.s32 %s42, %s49
      %p315 = scmp.eq.s32.totalorder %s314, 0
      %s317 = sadd.s32 %s316, 1
      %s318 = scalar_select %p315, %s316, %s317
      %p321 = pneg %p315
      %p322 = scmp.eq.s32.totalorder %s34, 3
      %p323 = por %p321, %p322
      %p324 = scmp.ne.s32.totalorder %s316, %s319
      %p325 = scmp.eq.s32.totalorder %s34, 0
      %p326 = por %p324, %p325
      %p327 = scmp.ne.s32.totalorder %s316, %s319
      %p328 = scmp.eq.s32.totalorder %s39, 3
      %p329 = por %p327, %p328
      %p330 = scmp.ne.s32.totalorder %s319, %s320
      %p331 = scmp.eq.s32.totalorder %s39, 0
      %p332 = por %p330, %p331
      %p333 = scmp.ne.s32.totalorder %s319, %s320
      %p334 = scmp.eq.s32.totalorder %s40, 3
      %p335 = por %p333, %p334
      %p337 = scmp.ne.s32.totalorder %s320, %s336
      %p338 = scmp.eq.s32.totalorder %s40, 0
      %p339 = por %p337, %p338
      %s340 = ssub.s32 %s42, %s49
      %p341 = scmp.eq.s32.totalorder %s340, 0
      %s343 = sadd.s32 %s342, 1
      %s344 = scalar_select %p341, %s342, %s343
      %p347 = pneg %p341
      %p348 = scmp.eq.s32.totalorder %s34, 3
      %p349 = por %p347, %p348
      %p350 = scmp.ne.s32.totalorder %s342, %s345
      %p351 = scmp.eq.s32.totalorder %s34, 0
      %p352 = por %p350, %p351
      %p353 = scmp.ne.s32.totalorder %s342, %s345
      %p354 = scmp.eq.s32.totalorder %s39, 3
      %p355 = por %p353, %p354
      %p356 = scmp.ne.s32.totalorder %s345, %s346
      %p357 = scmp.eq.s32.totalorder %s39, 0
      %p358 = por %p356, %p357
      %p359 = scmp.ne.s32.totalorder %s345, %s346
      %p360 = scmp.eq.s32.totalorder %s40, 3
      %p361 = por %p359, %p360
      %p363 = scmp.ne.s32.totalorder %s346, %s362
      %p364 = scmp.eq.s32.totalorder %s40, 0
      %p365 = por %p363, %p364
      %s366 = ssub.s32 %s42, %s49
      %p367 = scmp.eq.s32.totalorder %s366, 0
      %s369 = sadd.s32 %s368, 1
      %s370 = scalar_select %p367, %s368, %s369
      %p373 = pneg %p367
      %p374 = scmp.eq.s32.totalorder %s34, 3
      %p375 = por %p373, %p374
      %p376 = scmp.ne.s32.totalorder %s368, %s371
      %p377 = scmp.eq.s32.totalorder %s34, 0
      %p378 = por %p376, %p377
      %p379 = scmp.ne.s32.totalorder %s368, %s371
      %p380 = scmp.eq.s32.totalorder %s39, 3
      %p381 = por %p379, %p380
      %p382 = scmp.ne.s32.totalorder %s371, %s372
      %p383 = scmp.eq.s32.totalorder %s39, 0
      %p384 = por %p382, %p383
      %p385 = scmp.ne.s32.totalorder %s371, %s372
      %p386 = scmp.eq.s32.totalorder %s40, 3
      %p387 = por %p385, %p386
      %p389 = scmp.ne.s32.totalorder %s372, %s388
      %p390 = scmp.eq.s32.totalorder %s40, 0
      %p391 = por %p389, %p390
      %s392 = ssub.s32 %s42, %s49
      %p393 = scmp.eq.s32.totalorder %s392, 0
      %s395 = sadd.s32 %s394, 1
      %s396 = scalar_select %p393, %s394, %s395
      %p399 = pneg %p393
      %p400 = scmp.eq.s32.totalorder %s34, 3
      %p401 = por %p399, %p400
      %p402 = scmp.ne.s32.totalorder %s394, %s397
      %p403 = scmp.eq.s32.totalorder %s34, 0
      %p404 = por %p402, %p403
      %p405 = scmp.ne.s32.totalorder %s394, %s397
      %p406 = scmp.eq.s32.totalorder %s39, 3
      %p407 = por %p405, %p406
      %p408 = scmp.ne.s32.totalorder %s397, %s398
      %p409 = scmp.eq.s32.totalorder %s39, 0
      %p410 = por %p408, %p409
      %p411 = scmp.ne.s32.totalorder %s397, %s398
      %p412 = scmp.eq.s32.totalorder %s40, 3
      %p413 = por %p411, %p412
      %p415 = scmp.ne.s32.totalorder %s398, %s414
      %p416 = scmp.eq.s32.totalorder %s40, 0
      %p417 = por %p415, %p416
      %s418 = ssub.s32 %s42, %s49
      %p419 = scmp.eq.s32.totalorder %s418, 0
      %s421 = sadd.s32 %s420, 1
      %s422 = scalar_select %p419, %s420, %s421
      %p425 = pneg %p419
      %p426 = scmp.eq.s32.totalorder %s34, 3
      %p427 = por %p425, %p426
      %p428 = scmp.ne.s32.totalorder %s420, %s423
      %p429 = scmp.eq.s32.totalorder %s34, 0
      %p430 = por %p428, %p429
      %p431 = scmp.ne.s32.totalorder %s420, %s423
      %p432 = scmp.eq.s32.totalorder %s39, 3
      %p433 = por %p431, %p432
      %p434 = scmp.ne.s32.totalorder %s423, %s424
      %p435 = scmp.eq.s32.totalorder %s39, 0
      %p436 = por %p434, %p435
      %p437 = scmp.ne.s32.totalorder %s423, %s424
      %p438 = scmp.eq.s32.totalorder %s40, 3
      %p439 = por %p437, %p438
      %p441 = scmp.ne.s32.totalorder %s424, %s440
      %p442 = scmp.eq.s32.totalorder %s40, 0
      %p443 = por %p441, %p442
      %s444 = ssub.s32 %s42, %s49
      %p445 = scmp.eq.s32.totalorder %s444, 0
      %s447 = sadd.s32 %s446, 1
      %s448 = scalar_select %p445, %s446, %s447
      %p451 = pneg %p445
      %p452 = scmp.eq.s32.totalorder %s34, 3
      %p453 = por %p451, %p452
      %p454 = scmp.ne.s32.totalorder %s446, %s449
      %p455 = scmp.eq.s32.totalorder %s34, 0
      %p456 = por %p454, %p455
      %p457 = scmp.ne.s32.totalorder %s446, %s449
      %p458 = scmp.eq.s32.totalorder %s39, 3
      %p459 = por %p457, %p458
      %p460 = scmp.ne.s32.totalorder %s449, %s450
      %p461 = scmp.eq.s32.totalorder %s39, 0
      %p462 = por %p460, %p461
      %p463 = scmp.ne.s32.totalorder %s449, %s450
      %p464 = scmp.eq.s32.totalorder %s40, 3
      %p465 = por %p463, %p464
      %p467 = scmp.ne.s32.totalorder %s450, %s466
      %p468 = scmp.eq.s32.totalorder %s40, 0
      %p469 = por %p467, %p468
      %s470 = ssub.s32 %s42, %s49
      %p471 = scmp.eq.s32.totalorder %s470, 0
      %s473 = sadd.s32 %s472, 1
      %s474 = scalar_select %p471, %s472, %s473
      %p477 = pneg %p471
      %p478 = scmp.eq.s32.totalorder %s34, 3
      %p479 = por %p477, %p478
      %p480 = scmp.ne.s32.totalorder %s472, %s475
      %p481 = scmp.eq.s32.totalorder %s34, 0
      %p482 = por %p480, %p481
      %p483 = scmp.ne.s32.totalorder %s472, %s475
      %p484 = scmp.eq.s32.totalorder %s39, 3
      %p485 = por %p483, %p484
      %p486 = scmp.ne.s32.totalorder %s475, %s476
      %p487 = scmp.eq.s32.totalorder %s39, 0
      %p488 = por %p486, %p487
      %p489 = scmp.ne.s32.totalorder %s475, %s476
      %p490 = scmp.eq.s32.totalorder %s40, 3
      %p491 = por %p489, %p490
      %p493 = scmp.ne.s32.totalorder %s476, %s492
      %p494 = scmp.eq.s32.totalorder %s40, 0
      %p495 = por %p493, %p494
      %s496 = ssub.s32 %s42, %s49
      %p497 = scmp.eq.s32.totalorder %s496, 0
      %s499 = sadd.s32 %s498, 1
      %s500 = scalar_select %p497, %s498, %s499
      %p503 = pneg %p497
      %p504 = scmp.eq.s32.totalorder %s34, 3
      %p505 = por %p503, %p504
      %p506 = scmp.ne.s32.totalorder %s498, %s501
      %p507 = scmp.eq.s32.totalorder %s34, 0
      %p508 = por %p506, %p507
      %p509 = scmp.ne.s32.totalorder %s498, %s501
      %p510 = scmp.eq.s32.totalorder %s39, 3
      %p511 = por %p509, %p510
      %p512 = scmp.ne.s32.totalorder %s501, %s502
      %p513 = scmp.eq.s32.totalorder %s39, 0
      %p514 = por %p512, %p513
      %p515 = scmp.ne.s32.totalorder %s501, %s502
      %p516 = scmp.eq.s32.totalorder %s40, 3
      %p517 = por %p515, %p516
      %p519 = scmp.ne.s32.totalorder %s502, %s518
      %p520 = scmp.eq.s32.totalorder %s40, 0
      %p521 = por %p519, %p520
      %s522 = ssub.s32 %s42, %s49
      %p523 = scmp.eq.s32.totalorder %s522, 0
      %s525 = sadd.s32 %s524, 1
      %s526 = scalar_select %p523, %s524, %s525
      %p529 = pneg %p523
      %p530 = scmp.eq.s32.totalorder %s34, 3
      %p531 = por %p529, %p530
      %p532 = scmp.ne.s32.totalorder %s524, %s527
      %p533 = scmp.eq.s32.totalorder %s34, 0
      %p534 = por %p532, %p533
      %p535 = scmp.ne.s32.totalorder %s524, %s527
      %p536 = scmp.eq.s32.totalorder %s39, 3
      %p537 = por %p535, %p536
      %p538 = scmp.ne.s32.totalorder %s527, %s528
      %p539 = scmp.eq.s32.totalorder %s39, 0
      %p540 = por %p538, %p539
      %p541 = scmp.ne.s32.totalorder %s527, %s528
      %p542 = scmp.eq.s32.totalorder %s40, 3
      %p543 = por %p541, %p542
      %p545 = scmp.ne.s32.totalorder %s528, %s544
      %p546 = scmp.eq.s32.totalorder %s40, 0
      %p547 = por %p545, %p546
      %s548 = ssub.s32 %s42, %s49
      %p549 = scmp.eq.s32.totalorder %s548, 0
      %s551 = sadd.s32 %s550, 1
      %s552 = scalar_select %p549, %s550, %s551
      %p555 = pneg %p549
      %p556 = scmp.eq.s32.totalorder %s34, 3
      %p557 = por %p555, %p556
      %p558 = scmp.ne.s32.totalorder %s550, %s553
      %p559 = scmp.eq.s32.totalorder %s34, 0
      %p560 = por %p558, %p559
      %p561 = scmp.ne.s32.totalorder %s550, %s553
      %p562 = scmp.eq.s32.totalorder %s39, 3
      %p563 = por %p561, %p562
      %p564 = scmp.ne.s32.totalorder %s553, %s554
      %p565 = scmp.eq.s32.totalorder %s39, 0
      %p566 = por %p564, %p565
      %p567 = scmp.ne.s32.totalorder %s553, %s554
      %p568 = scmp.eq.s32.totalorder %s40, 3
      %p569 = por %p567, %p568
      %p571 = scmp.ne.s32.totalorder %s554, %s570
      %p572 = scmp.eq.s32.totalorder %s40, 0
      %p573 = por %p571, %p572
      %s574 = ssub.s32 %s42, %s49
      %p575 = scmp.eq.s32.totalorder %s574, 0
      %s577 = sadd.s32 %s576, 1
      %s578 = scalar_select %p575, %s576, %s577
      %p581 = pneg %p575
      %p582 = scmp.eq.s32.totalorder %s34, 3
      %p583 = por %p581, %p582
      %p584 = scmp.ne.s32.totalorder %s576, %s579
      %p585 = scmp.eq.s32.totalorder %s34, 0
      %p586 = por %p584, %p585
      %p587 = scmp.ne.s32.totalorder %s576, %s579
      %p588 = scmp.eq.s32.totalorder %s39, 3
      %p589 = por %p587, %p588
      %p590 = scmp.ne.s32.totalorder %s579, %s580
      %p591 = scmp.eq.s32.totalorder %s39, 0
      %p592 = por %p590, %p591
      %p593 = scmp.ne.s32.totalorder %s579, %s580
      %p594 = scmp.eq.s32.totalorder %s40, 3
      %p595 = por %p593, %p594
      %p597 = scmp.ne.s32.totalorder %s580, %s596
      %p598 = scmp.eq.s32.totalorder %s40, 0
      %p599 = por %p597, %p598
      %s600 = ssub.s32 %s42, %s49
      %p601 = scmp.eq.s32.totalorder %s600, 0
      %s603 = sadd.s32 %s602, 1
      %s604 = scalar_select %p601, %s602, %s603
      %p607 = pneg %p601
      %p608 = scmp.eq.s32.totalorder %s34, 3
      %p609 = por %p607, %p608
      %p610 = scmp.ne.s32.totalorder %s602, %s605
      %p611 = scmp.eq.s32.totalorder %s34, 0
      %p612 = por %p610, %p611
      %p613 = scmp.ne.s32.totalorder %s602, %s605
      %p614 = scmp.eq.s32.totalorder %s39, 3
      %p615 = por %p613, %p614
      %p616 = scmp.ne.s32.totalorder %s605, %s606
      %p617 = scmp.eq.s32.totalorder %s39, 0
      %p618 = por %p616, %p617
      %p619 = scmp.ne.s32.totalorder %s605, %s606
      %p620 = scmp.eq.s32.totalorder %s40, 3
      %p621 = por %p619, %p620
      %p623 = scmp.ne.s32.totalorder %s606, %s622
      %p624 = scmp.eq.s32.totalorder %s40, 0
      %p625 = por %p623, %p624
      %s626 = ssub.s32 %s42, %s49
      %p627 = scmp.eq.s32.totalorder %s626, 0
      %s629 = sadd.s32 %s628, 1
      %s630 = scalar_select %p627, %s628, %s629
      %p633 = pneg %p627
      %p634 = scmp.eq.s32.totalorder %s34, 3
      %p635 = por %p633, %p634
      %p636 = scmp.ne.s32.totalorder %s628, %s631
      %p637 = scmp.eq.s32.totalorder %s34, 0
      %p638 = por %p636, %p637
      %p639 = scmp.ne.s32.totalorder %s628, %s631
      %p640 = scmp.eq.s32.totalorder %s39, 3
      %p641 = por %p639, %p640
      %p642 = scmp.ne.s32.totalorder %s631, %s632
      %p643 = scmp.eq.s32.totalorder %s39, 0
      %p644 = por %p642, %p643
      %p645 = scmp.ne.s32.totalorder %s631, %s632
      %p646 = scmp.eq.s32.totalorder %s40, 3
      %p647 = por %p645, %p646
      %p649 = scmp.ne.s32.totalorder %s632, %s648
      %p650 = scmp.eq.s32.totalorder %s40, 0
      %p651 = por %p649, %p650
      %s652 = ssub.s32 %s42, %s49
      %p653 = scmp.eq.s32.totalorder %s652, 0
      %s655 = sadd.s32 %s654, 1
      %s656 = scalar_select %p653, %s654, %s655
      %p659 = pneg %p653
      %p660 = scmp.eq.s32.totalorder %s34, 3
      %p661 = por %p659, %p660
      %p662 = scmp.ne.s32.totalorder %s654, %s657
      %p663 = scmp.eq.s32.totalorder %s34, 0
      %p664 = por %p662, %p663
      %p665 = scmp.ne.s32.totalorder %s654, %s657
      %p666 = scmp.eq.s32.totalorder %s39, 3
      %p667 = por %p665, %p666
      %p668 = scmp.ne.s32.totalorder %s657, %s658
      %p669 = scmp.eq.s32.totalorder %s39, 0
      %p670 = por %p668, %p669
      %p671 = scmp.ne.s32.totalorder %s657, %s658
      %p672 = scmp.eq.s32.totalorder %s40, 3
      %p673 = por %p671, %p672
      %p675 = scmp.ne.s32.totalorder %s658, %s674
      %p676 = scmp.eq.s32.totalorder %s40, 0
      %p677 = por %p675, %p676
      %s678 = ssub.s32 %s42, %s49
      %p679 = scmp.eq.s32.totalorder %s678, 0
      %s681 = sadd.s32 %s680, 1
      %s682 = scalar_select %p679, %s680, %s681
      %p685 = pneg %p679
      %p686 = scmp.eq.s32.totalorder %s34, 3
      %p687 = por %p685, %p686
      %p688 = scmp.ne.s32.totalorder %s680, %s683
      %p689 = scmp.eq.s32.totalorder %s34, 0
      %p690 = por %p688, %p689
      %p691 = scmp.ne.s32.totalorder %s680, %s683
      %p692 = scmp.eq.s32.totalorder %s39, 3
      %p693 = por %p691, %p692
      %p694 = scmp.ne.s32.totalorder %s683, %s684
      %p695 = scmp.eq.s32.totalorder %s39, 0
      %p696 = por %p694, %p695
      %p697 = scmp.ne.s32.totalorder %s683, %s684
      %p698 = scmp.eq.s32.totalorder %s40, 3
      %p699 = por %p697, %p698
      %p701 = scmp.ne.s32.totalorder %s684, %s700
      %p702 = scmp.eq.s32.totalorder %s40, 0
      %p703 = por %p701, %p702
      %s704 = ssub.s32 %s41, %s53
      %p705 = scmp.eq.s32.totalorder %s704, 0
      %s707 = sadd.s32 %s706, 1
      %s708 = scalar_select %p705, %s706, %s707
      %p711 = pneg %p705
      %p712 = scmp.eq.s32.totalorder %s34, 3
      %p713 = por %p711, %p712
      %p714 = scmp.ne.s32.totalorder %s706, %s709
      %p715 = scmp.eq.s32.totalorder %s34, 0
      %p716 = por %p714, %p715
      %p717 = scmp.ne.s32.totalorder %s706, %s709
      %p718 = scmp.eq.s32.totalorder %s39, 3
      %p719 = por %p717, %p718
      %p720 = scmp.ne.s32.totalorder %s709, %s710
      %p721 = scmp.eq.s32.totalorder %s39, 0
      %p722 = por %p720, %p721
      %p723 = scmp.ne.s32.totalorder %s709, %s710
      %p724 = scmp.eq.s32.totalorder %s40, 3
      %p725 = por %p723, %p724
      %p727 = scmp.ne.s32.totalorder %s710, %s726
      %p728 = scmp.eq.s32.totalorder %s40, 0
      %p729 = por %p727, %p728
      %p730 = scmp.le.s32.totalorder 1, %s34
      %p731 = scmp.lt.s32.totalorder %s34, 5
      %p732 = pnand %p730, %p731
      %p733 = pneg %p732
      // Predicated region
      $region9: #{decoder_forward.1} parent=5 // pred_check
        _
      $region10: #{decoder_forward.1} parent=5 // pred_check_branch
        %735 = sbr.rel (%p732) target = $region12
      $region11: #{decoder_forward.1} parent=5 // pred_region
        %s736 = ssub.s32 %s34, 1
      $region12: #{decoder_forward.1} parent=5 // pred_fallthru
        _
      %p737 = scmp.lt.s32.totalorder %s34, 4
      // Predicated region
      $region13: #{decoder_forward.1} parent=5 // pred_check
        %p738 = pneg %p737
      $region14: #{decoder_forward.1} parent=5 // pred_check_branch
        %740 = sbr.rel (%p738) target = $region16
      $region15: #{decoder_forward.1} parent=5 // pred_region
        // Predicated region
        $region17: #{decoder_forward.1} parent=15 // pred_check
          %p741 = pneg %p66
        $region18: #{decoder_forward.1} parent=15 // pred_check_branch
          %743 = sbr.rel (%p741) target = $region20
        $region19: #{decoder_forward.1} parent=15 // pred_region
          %p744 = scmp.lt.s32.totalorder %s41, 1
          %s745 = scalar_select %p744, %s41, 1
          %s746 = smul.addr %s745, 8
          %s747 = scalar_lea.vmem %s0, %s746
        $region20: #{decoder_forward.1} parent=15 // pred_fallthru
          _
        // Predicated region
        $region21: #{decoder_forward.1} parent=15 // pred_check
          %p748 = pneg %p92
        $region22: #{decoder_forward.1} parent=15 // pred_check_branch
          %750 = sbr.rel (%p748) target = $region24
        $region23: #{decoder_forward.1} parent=15 // pred_region
          %p751 = scmp.lt.s32.totalorder %s41, 1
          %s752 = scalar_select %p751, %s41, 1
          %s753 = smul.addr %s752, 2
          %s754 = smul.addr %s753, 4
          %s755 = scalar_lea.vmem %s1, %s754
        $region24: #{decoder_forward.1} parent=15 // pred_fallthru
          _
        // Predicated region
        $region25: #{decoder_forward.1} parent=15 // pred_check
          %p756 = pneg %p118
        $region26: #{decoder_forward.1} parent=15 // pred_check_branch
          %758 = sbr.rel (%p756) target = $region28
        $region27: #{decoder_forward.1} parent=15 // pred_region
          %p759 = scmp.lt.s32.totalorder %s41, 1
          %s760 = scalar_select %p759, %s41, 1
          %s761 = smul.addr %s760, 8
          %s762 = scalar_lea.vmem %s2, %s761
        $region28: #{decoder_forward.1} parent=15 // pred_fallthru
          _
        // Predicated region
        $region29: #{decoder_forward.1} parent=15 // pred_check
          %p763 = pneg %p144
        $region30: #{decoder_forward.1} parent=15 // pred_check_branch
          %765 = sbr.rel (%p763) target = $region32
        $region31: #{decoder_forward.1} parent=15 // pred_region
          %p766 = scmp.lt.s32.totalorder %s41, 1
          %s767 = scalar_select %p766, %s41, 1
          %s768 = scalar_lea.vmem %s3, %s767
        $region32: #{decoder_forward.1} parent=15 // pred_fallthru
          _
        // Predicated region
        $region33: #{decoder_forward.1} parent=15 // pred_check
          %p769 = pneg %p170
        $region34: #{decoder_forward.1} parent=15 // pred_check_branch
          %771 = sbr.rel (%p769) target = $region36
        $region35: #{decoder_forward.1} parent=15 // pred_region
          %p772 = scmp.lt.s32.totalorder %s41, 1
          %s773 = scalar_select %p772, %s41, 1
          %s774 = scalar_lea.vmem %s4, %s773
        $region36: #{decoder_forward.1} parent=15 // pred_fallthru
          _
        // Predicated region
        $region37: #{decoder_forward.1} parent=15 // pred_check
          %p775 = pneg %p196
        $region38: #{decoder_forward.1} parent=15 // pred_check_branch
          %777 = sbr.rel (%p775) target = $region40
        $region39: #{decoder_forward.1} parent=15 // pred_region
          %p778 = scmp.lt.s32.totalorder %s42, 1
          %s779 = scalar_select %p778, %s42, 1
          %s780 = smul.addr %s779, 4
          %s781 = smul.addr %s780, 4
          %s782 = scalar_lea.vmem %s5, %s781
        $region40: #{decoder_forward.1} parent=15 // pred_fallthru
          _
        // Predicated region
        $region41: #{decoder_forward.1} parent=15 // pred_check
          %p783 = pneg %p222
        $region42: #{decoder_forward.1} parent=15 // pred_check_branch
          %785 = sbr.rel (%p783) target = $region44
        $region43: #{decoder_forward.1} parent=15 // pred_region
          %p786 = scmp.lt.s32.totalorder %s42, 1
          %s787 = scalar_select %p786, %s42, 1
          %s788 = scalar_lea.vmem %s6, %s787
        $region44: #{decoder_forward.1} parent=15 // pred_fallthru
          _
        // Predicated region
        $region45: #{decoder_forward.1} parent=15 // pred_check
          %p789 = pneg %p248
        $region46: #{decoder_forward.1} parent=15 // pred_check_branch
          %791 = sbr.rel (%p789) target = $region48
        $region47: #{decoder_forward.1} parent=15 // pred_region
          %p792 = scmp.lt.s32.totalorder %s42, 1
          %s793 = scalar_select %p792, %s42, 1
          %s794 = smul.addr %s793, 4
          %s795 = smul.addr %s794, 4
          %s796 = scalar_lea.vmem %s7, %s795
        $region48: #{decoder_forward.1} parent=15 // pred_fallthru
          _
        // Predicated region
        $region49: #{decoder_forward.1} parent=15 // pred_check
          %p797 = pneg %p274
        $region50: #{decoder_forward.1} parent=15 // pred_check_branch
          %799 = sbr.rel (%p797) target = $region52
        $region51: #{decoder_forward.1} parent=15 // pred_region
          %p800 = scmp.lt.s32.totalorder %s42, 1
          %s801 = scalar_select %p800, %s42, 1
          %s802 = scalar_lea.vmem %s8, %s801
        $region52: #{decoder_forward.1} parent=15 // pred_fallthru
          _
        // Predicated region
        $region53: #{decoder_forward.1} parent=15 // pred_check
          %p803 = pneg %p300
        $region54: #{decoder_forward.1} parent=15 // pred_check_branch
          %805 = sbr.rel (%p803) target = $region56
        $region55: #{decoder_forward.1} parent=15 // pred_region
          %p806 = scmp.lt.s32.totalorder %s42, 1
          %s807 = scalar_select %p806, %s42, 1
          %s808 = scalar_lea.vmem %s9, %s807
        $region56: #{decoder_forward.1} parent=15 // pred_fallthru
          _
        // Predicated region
        $region57: #{decoder_forward.1} parent=15 // pred_check
          %p809 = pneg %p326
        $region58: #{decoder_forward.1} parent=15 // pred_check_branch
          %811 = sbr.rel (%p809) target = $region60
        $region59: #{decoder_forward.1} parent=15 // pred_region
          %p812 = scmp.lt.s32.totalorder %s42, 1
          %s813 = scalar_select %p812, %s42, 1
          %s814 = scalar_lea.vmem %s10, %s813
        $region60: #{decoder_forward.1} parent=15 // pred_fallthru
          _
        // Predicated region
        $region61: #{decoder_forward.1} parent=15 // pred_check
          %p815 = pneg %p352
        $region62: #{decoder_forward.1} parent=15 // pred_check_branch
          %817 = sbr.rel (%p815) target = $region64
        $region63: #{decoder_forward.1} parent=15 // pred_region
          %p818 = scmp.lt.s32.totalorder %s42, 1
          %s819 = scalar_select %p818, %s42, 1
          %s820 = smul.addr %s819, 4
          %s821 = smul.addr %s820, 4
          %s822 = scalar_lea.vmem %s11, %s821
        $region64: #{decoder_forward.1} parent=15 // pred_fallthru
          _
        // Predicated region
        $region65: #{decoder_forward.1} parent=15 // pred_check
          %p823 = pneg %p378
        $region66: #{decoder_forward.1} parent=15 // pred_check_branch
          %825 = sbr.rel (%p823) target = $region68
        $region67: #{decoder_forward.1} parent=15 // pred_region
          %p826 = scmp.lt.s32.totalorder %s42, 1
          %s827 = scalar_select %p826, %s42, 1
          %s828 = scalar_lea.vmem %s12, %s827
        $region68: #{decoder_forward.1} parent=15 // pred_fallthru
          _
        // Predicated region
        $region69: #{decoder_forward.1} parent=15 // pred_check
          %p829 = pneg %p404
        $region70: #{decoder_forward.1} parent=15 // pred_check_branch
          %831 = sbr.rel (%p829) target = $region72
        $region71: #{decoder_forward.1} parent=15 // pred_region
          %p832 = scmp.lt.s32.totalorder %s42, 1
          %s833 = scalar_select %p832, %s42, 1
          %s834 = smul.addr %s833, 4
          %s835 = smul.addr %s834, 4
          %s836 = scalar_lea.vmem %s13, %s835
        $region72: #{decoder_forward.1} parent=15 // pred_fallthru
          _
        // Predicated region
        $region73: #{decoder_forward.1} parent=15 // pred_check
          %p837 = pneg %p430
        $region74: #{decoder_forward.1} parent=15 // pred_check_branch
          %839 = sbr.rel (%p837) target = $region76
        $region75: #{decoder_forward.1} parent=15 // pred_region
          %p840 = scmp.lt.s32.totalorder %s42, 1
          %s841 = scalar_select %p840, %s42, 1
          %s842 = scalar_lea.vmem %s14, %s841
        $region76: #{decoder_forward.1} parent=15 // pred_fallthru
          _
        // Predicated region
        $region77: #{decoder_forward.1} parent=15 // pred_check
          %p843 = pneg %p456
        $region78: #{decoder_forward.1} parent=15 // pred_check_branch
          %845 = sbr.rel (%p843) target = $region80
        $region79: #{decoder_forward.1} parent=15 // pred_region
          %p846 = scmp.lt.s32.totalorder %s42, 1
          %s847 = scalar_select %p846, %s42, 1
          %s848 = smul.addr %s847, 4
          %s849 = smul.addr %s848, 4
          %s850 = scalar_lea.vmem %s15, %s849
        $region80: #{decoder_forward.1} parent=15 // pred_fallthru
          _
        // Predicated region
        $region81: #{decoder_forward.1} parent=15 // pred_check
          %p851 = pneg %p482
        $region82: #{decoder_forward.1} parent=15 // pred_check_branch
          %853 = sbr.rel (%p851) target = $region84
        $region83: #{decoder_forward.1} parent=15 // pred_region
          %p854 = scmp.lt.s32.totalorder %s42, 1
          %s855 = scalar_select %p854, %s42, 1
          %s856 = scalar_lea.vmem %s16, %s855
        $region84: #{decoder_forward.1} parent=15 // pred_fallthru
          _
        // Predicated region
        $region85: #{decoder_forward.1} parent=15 // pred_check
          %p857 = pneg %p508
        $region86: #{decoder_forward.1} parent=15 // pred_check_branch
          %859 = sbr.rel (%p857) target = $region88
        $region87: #{decoder_forward.1} parent=15 // pred_region
          %p860 = scmp.lt.s32.totalorder %s42, 1
          %s861 = scalar_select %p860, %s42, 1
          %s862 = scalar_lea.vmem %s17, %s861
        $region88: #{decoder_forward.1} parent=15 // pred_fallthru
          _
        // Predicated region
        $region89: #{decoder_forward.1} parent=15 // pred_check
          %p863 = pneg %p534
        $region90: #{decoder_forward.1} parent=15 // pred_check_branch
          %865 = sbr.rel (%p863) target = $region92
        $region91: #{decoder_forward.1} parent=15 // pred_region
          %p866 = scmp.lt.s32.totalorder %s42, 1
          %s867 = scalar_select %p866, %s42, 1
          %s868 = scalar_lea.vmem %s18, %s867
        $region92: #{decoder_forward.1} parent=15 // pred_fallthru
          _
        // Predicated region
        $region93: #{decoder_forward.1} parent=15 // pred_check
          %p869 = pneg %p560
        $region94: #{decoder_forward.1} parent=15 // pred_check_branch
          %871 = sbr.rel (%p869) target = $region96
        $region95: #{decoder_forward.1} parent=15 // pred_region
          %p872 = scmp.lt.s32.totalorder %s42, 1
          %s873 = scalar_select %p872, %s42, 1
          %s874 = smul.addr %s873, 4
          %s875 = smul.addr %s874, 4
          %s876 = scalar_lea.vmem %s19, %s875
        $region96: #{decoder_forward.1} parent=15 // pred_fallthru
          _
        // Predicated region
        $region97: #{decoder_forward.1} parent=15 // pred_check
          %p877 = pneg %p586
        $region98: #{decoder_forward.1} parent=15 // pred_check_branch
          %879 = sbr.rel (%p877) target = $region100
        $region99: #{decoder_forward.1} parent=15 // pred_region
          %p880 = scmp.lt.s32.totalorder %s42, 1
          %s881 = scalar_select %p880, %s42, 1
          %s882 = scalar_lea.vmem %s20, %s881
        $region100: #{decoder_forward.1} parent=15 // pred_fallthru
          _
        // Predicated region
        $region101: #{decoder_forward.1} parent=15 // pred_check
          %p883 = pneg %p612
        $region102: #{decoder_forward.1} parent=15 // pred_check_branch
          %885 = sbr.rel (%p883) target = $region104
        $region103: #{decoder_forward.1} parent=15 // pred_region
          %p886 = scmp.lt.s32.totalorder %s42, 1
          %s887 = scalar_select %p886, %s42, 1
          %s888 = smul.addr %s887, 8
          %s889 = smul.addr %s888, 4
          %s890 = scalar_lea.vmem %s21, %s889
        $region104: #{decoder_forward.1} parent=15 // pred_fallthru
          _
        // Predicated region
        $region105: #{decoder_forward.1} parent=15 // pred_check
          %p891 = pneg %p638
        $region106: #{decoder_forward.1} parent=15 // pred_check_branch
          %893 = sbr.rel (%p891) target = $region108
        $region107: #{decoder_forward.1} parent=15 // pred_region
          %p894 = scmp.lt.s32.totalorder %s42, 1
          %s895 = scalar_select %p894, %s42, 1
          %s896 = scalar_lea.vmem %s22, %s895
        $region108: #{decoder_forward.1} parent=15 // pred_fallthru
          _
        // Predicated region
        $region109: #{decoder_forward.1} parent=15 // pred_check
          %p897 = pneg %p664
        $region110: #{decoder_forward.1} parent=15 // pred_check_branch
          %899 = sbr.rel (%p897) target = $region112
        $region111: #{decoder_forward.1} parent=15 // pred_region
          %p900 = scmp.lt.s32.totalorder %s42, 1
          %s901 = scalar_select %p900, %s42, 1
          %s902 = scalar_lea.vmem %s23, %s901
        $region112: #{decoder_forward.1} parent=15 // pred_fallthru
          _
        // Predicated region
        $region113: #{decoder_forward.1} parent=15 // pred_check
          %p903 = pneg %p690
        $region114: #{decoder_forward.1} parent=15 // pred_check_branch
          %905 = sbr.rel (%p903) target = $region116
        $region115: #{decoder_forward.1} parent=15 // pred_region
          %p906 = scmp.lt.s32.totalorder %s42, 1
          %s907 = scalar_select %p906, %s42, 1
          %s908 = scalar_lea.vmem %s24, %s907
        $region116: #{decoder_forward.1} parent=15 // pred_fallthru
          _
      $region16: #{decoder_forward.1} parent=5 // pred_fallthru
        _
      %p909 = scmp.le.s32.totalorder 1, %s34
      %p910 = scmp.lt.s32.totalorder %s34, 5
      %p911 = pnand %p909, %p910
      %p912 = pneg %p911
      // Predicated region
      $region117: #{decoder_forward.1} parent=5 // pred_check
        _
      $region118: #{decoder_forward.1} parent=5 // pred_check_branch
        %914 = sbr.rel (%p911) target = $region120
      $region119: #{decoder_forward.1} parent=5 // pred_region
        %s915 = ssub.s32 %s34, 1
        %p916 = scmp.lt.s32.totalorder %s43, 1
        %s917 = scalar_select %p916, %s43, 1
        %s918 = smul.addr %s917, 8
        %s919 = scalar_lea.vmem %s0, %s918
        %p920 = pneg %p72
        %p921 = pneg %p69
        %p922 = scmp.lt.s32.totalorder %s43, 1
        %s923 = scalar_select %p922, %s43, 1
        %s924 = smul.addr %s923, 2
        %s925 = smul.addr %s924, 4
        %s926 = scalar_lea.vmem %s1, %s925
        %p927 = pneg %p98
        %p928 = pneg %p95
        %p929 = scmp.lt.s32.totalorder %s43, 1
        %s930 = scalar_select %p929, %s43, 1
        %s931 = smul.addr %s930, 8
        %s932 = scalar_lea.vmem %s2, %s931
        %p933 = pneg %p124
        %p934 = pneg %p121
        %p935 = scmp.lt.s32.totalorder %s43, 1
        %s936 = scalar_select %p935, %s43, 1
        %s937 = scalar_lea.vmem %s3, %s936
        %p938 = pneg %p150
        %p939 = pneg %p147
        %p940 = scmp.lt.s32.totalorder %s43, 1
        %s941 = scalar_select %p940, %s43, 1
        %s942 = scalar_lea.vmem %s4, %s941
        %p943 = pneg %p176
        %p944 = pneg %p173
        %p945 = scmp.lt.s32.totalorder %s44, 1
        %s946 = scalar_select %p945, %s44, 1
        %s947 = smul.addr %s946, 4
        %s948 = smul.addr %s947, 4
        %s949 = scalar_lea.vmem %s5, %s948
        %p950 = pneg %p202
        %p951 = pneg %p199
        %p952 = scmp.lt.s32.totalorder %s44, 1
        %s953 = scalar_select %p952, %s44, 1
        %s954 = scalar_lea.vmem %s6, %s953
        %p955 = pneg %p228
        %p956 = pneg %p225
        %p957 = scmp.lt.s32.totalorder %s44, 1
        %s958 = scalar_select %p957, %s44, 1
        %s959 = smul.addr %s958, 4
        %s960 = smul.addr %s959, 4
        %s961 = scalar_lea.vmem %s7, %s960
        %p962 = pneg %p254
        %p963 = pneg %p251
        %p964 = scmp.lt.s32.totalorder %s44, 1
        %s965 = scalar_select %p964, %s44, 1
        %s966 = scalar_lea.vmem %s8, %s965
        %p967 = pneg %p280
        %p968 = pneg %p277
        %p969 = scmp.lt.s32.totalorder %s44, 1
        %s970 = scalar_select %p969, %s44, 1
        %s971 = scalar_lea.vmem %s9, %s970
        %p972 = pneg %p306
        %p973 = pneg %p303
        %p974 = scmp.lt.s32.totalorder %s44, 1
        %s975 = scalar_select %p974, %s44, 1
        %s976 = scalar_lea.vmem %s10, %s975
        %p977 = pneg %p332
        %p978 = pneg %p329
        %p979 = scmp.lt.s32.totalorder %s44, 1
        %s980 = scalar_select %p979, %s44, 1
        %s981 = smul.addr %s980, 4
        %s982 = smul.addr %s981, 4
        %s983 = scalar_lea.vmem %s11, %s982
        %p984 = pneg %p358
        %p985 = pneg %p355
        %p986 = scmp.lt.s32.totalorder %s44, 1
        %s987 = scalar_select %p986, %s44, 1
        %s988 = scalar_lea.vmem %s12, %s987
        %p989 = pneg %p384
        %p990 = pneg %p381
        %p991 = scmp.lt.s32.totalorder %s44, 1
        %s992 = scalar_select %p991, %s44, 1
        %s993 = smul.addr %s992, 4
        %s994 = smul.addr %s993, 4
        %s995 = scalar_lea.vmem %s13, %s994
        %p996 = pneg %p410
        %p997 = pneg %p407
        %p998 = scmp.lt.s32.totalorder %s44, 1
        %s999 = scalar_select %p998, %s44, 1
        %s1000 = scalar_lea.vmem %s14, %s999
        %p1001 = pneg %p436
        %p1002 = pneg %p433
        %p1003 = scmp.lt.s32.totalorder %s44, 1
        %s1004 = scalar_select %p1003, %s44, 1
        %s1005 = smul.addr %s1004, 4
        %s1006 = smul.addr %s1005, 4
        %s1007 = scalar_lea.vmem %s15, %s1006
        %p1008 = pneg %p462
        %p1009 = pneg %p459
        %p1010 = scmp.lt.s32.totalorder %s44, 1
        %s1011 = scalar_select %p1010, %s44, 1
        %s1012 = scalar_lea.vmem %s16, %s1011
        %p1013 = pneg %p488
        %p1014 = pneg %p485
        %p1015 = scmp.lt.s32.totalorder %s44, 1
        %s1016 = scalar_select %p1015, %s44, 1
        %s1017 = scalar_lea.vmem %s17, %s1016
        %p1018 = pneg %p514
        %p1019 = pneg %p511
        %p1020 = scmp.lt.s32.totalorder %s44, 1
        %s1021 = scalar_select %p1020, %s44, 1
        %s1022 = scalar_lea.vmem %s18, %s1021
        %p1023 = pneg %p540
        %p1024 = pneg %p537
        %p1025 = scmp.lt.s32.totalorder %s44, 1
        %s1026 = scalar_select %p1025, %s44, 1
        %s1027 = smul.addr %s1026, 4
        %s1028 = smul.addr %s1027, 4
        %s1029 = scalar_lea.vmem %s19, %s1028
        %p1030 = pneg %p566
        %p1031 = pneg %p563
        %p1032 = scmp.lt.s32.totalorder %s44, 1
        %s1033 = scalar_select %p1032, %s44, 1
        %s1034 = scalar_lea.vmem %s20, %s1033
        %p1035 = pneg %p592
        %p1036 = pneg %p589
        %p1037 = scmp.lt.s32.totalorder %s44, 1
        %s1038 = scalar_select %p1037, %s44, 1
        %s1039 = smul.addr %s1038, 8
        %s1040 = smul.addr %s1039, 4
        %s1041 = scalar_lea.vmem %s21, %s1040
        %p1042 = pneg %p618
        %p1043 = pneg %p615
        %p1044 = scmp.lt.s32.totalorder %s44, 1
        %s1045 = scalar_select %p1044, %s44, 1
        %s1046 = scalar_lea.vmem %s22, %s1045
        %p1047 = pneg %p644
        %p1048 = pneg %p641
        %p1049 = scmp.lt.s32.totalorder %s44, 1
        %s1050 = scalar_select %p1049, %s44, 1
        %s1051 = scalar_lea.vmem %s23, %s1050
        %p1052 = pneg %p670
        %p1053 = pneg %p667
        %p1054 = scmp.lt.s32.totalorder %s44, 1
        %s1055 = scalar_select %p1054, %s44, 1
        %s1056 = scalar_lea.vmem %s24, %s1055
        %p1057 = pneg %p696
        %p1058 = pneg %p693
        %p1059 = pneg %p722
        %p1060 = pneg %p719
        %s1061 = sand.u32 %s709, 1
        %s1062 = scalar_lea.sflag [#allocation4], %s1061
        %s1063 = sand.u32 %s709, 1
        %s1064 = smul.addr %s1063, 8
        %s1065 = scalar_lea.vmem [#allocation3], %s1064
        %p1066 = scmp.lt.s32.totalorder %s43, 1
        %s1067 = scalar_select %p1066, %s43, 1
        %s1068 = smul.addr %s1067, 8
        %s1069 = scalar_lea.vmem %s0, %s1068
        %p1070 = scmp.lt.s32.totalorder %s43, 1
        %s1071 = scalar_select %p1070, %s43, 1
        %s1072 = smul.addr %s1071, 2
        %s1073 = smul.addr %s1072, 4
        %s1074 = scalar_lea.vmem %s1, %s1073
        %p1075 = scmp.lt.s32.totalorder %s43, 1
        %s1076 = scalar_select %p1075, %s43, 1
        %s1077 = smul.addr %s1076, 8
        %s1078 = scalar_lea.vmem %s2, %s1077
        %p1079 = scmp.lt.s32.totalorder %s43, 1
        %s1080 = scalar_select %p1079, %s43, 1
        %s1081 = scalar_lea.vmem %s3, %s1080
        %p1082 = scmp.lt.s32.totalorder %s43, 1
        %s1083 = scalar_select %p1082, %s43, 1
        %s1084 = scalar_lea.vmem %s4, %s1083
        %p1085 = scmp.lt.s32.totalorder %s44, 1
        %s1086 = scalar_select %p1085, %s44, 1
        %s1087 = smul.addr %s1086, 4
        %s1088 = smul.addr %s1087, 4
        %s1089 = scalar_lea.vmem %s5, %s1088
        %p1090 = scmp.lt.s32.totalorder %s44, 1
        %s1091 = scalar_select %p1090, %s44, 1
        %s1092 = scalar_lea.vmem %s6, %s1091
        %p1093 = scmp.lt.s32.totalorder %s44, 1
        %s1094 = scalar_select %p1093, %s44, 1
        %s1095 = smul.addr %s1094, 4
        %s1096 = smul.addr %s1095, 4
        %s1097 = scalar_lea.vmem %s7, %s1096
        %p1098 = scmp.lt.s32.totalorder %s44, 1
        %s1099 = scalar_select %p1098, %s44, 1
        %s1100 = scalar_lea.vmem %s8, %s1099
        %p1101 = scmp.lt.s32.totalorder %s44, 1
        %s1102 = scalar_select %p1101, %s44, 1
        %s1103 = scalar_lea.vmem %s9, %s1102
        %p1104 = scmp.lt.s32.totalorder %s44, 1
        %s1105 = scalar_select %p1104, %s44, 1
        %s1106 = scalar_lea.vmem %s10, %s1105
        %p1107 = scmp.lt.s32.totalorder %s44, 1
        %s1108 = scalar_select %p1107, %s44, 1
        %s1109 = smul.addr %s1108, 4
        %s1110 = smul.addr %s1109, 4
        %s1111 = scalar_lea.vmem %s11, %s1110
        %p1112 = scmp.lt.s32.totalorder %s44, 1
        %s1113 = scalar_select %p1112, %s44, 1
        %s1114 = scalar_lea.vmem %s12, %s1113
        %p1115 = scmp.lt.s32.totalorder %s44, 1
        %s1116 = scalar_select %p1115, %s44, 1
        %s1117 = smul.addr %s1116, 4
        %s1118 = smul.addr %s1117, 4
        %s1119 = scalar_lea.vmem %s13, %s1118
        %p1120 = scmp.lt.s32.totalorder %s44, 1
        %s1121 = scalar_select %p1120, %s44, 1
        %s1122 = scalar_lea.vmem %s14, %s1121
        %p1123 = scmp.lt.s32.totalorder %s44, 1
        %s1124 = scalar_select %p1123, %s44, 1
        %s1125 = smul.addr %s1124, 4
        %s1126 = smul.addr %s1125, 4
        %s1127 = scalar_lea.vmem %s15, %s1126
        %p1128 = scmp.lt.s32.totalorder %s44, 1
        %s1129 = scalar_select %p1128, %s44, 1
        %s1130 = scalar_lea.vmem %s16, %s1129
        %p1131 = scmp.lt.s32.totalorder %s44, 1
        %s1132 = scalar_select %p1131, %s44, 1
        %s1133 = scalar_lea.vmem %s17, %s1132
        %p1134 = scmp.lt.s32.totalorder %s44, 1
        %s1135 = scalar_select %p1134, %s44, 1
        %s1136 = scalar_lea.vmem %s18, %s1135
        %p1137 = scmp.lt.s32.totalorder %s44, 1
        %s1138 = scalar_select %p1137, %s44, 1
        %s1139 = smul.addr %s1138, 4
        %s1140 = smul.addr %s1139, 4
        %s1141 = scalar_lea.vmem %s19, %s1140
        %p1142 = scmp.lt.s32.totalorder %s44, 1
        %s1143 = scalar_select %p1142, %s44, 1
        %s1144 = scalar_lea.vmem %s20, %s1143
        %p1145 = scmp.lt.s32.totalorder %s44, 1
        %s1146 = scalar_select %p1145, %s44, 1
        %s1147 = smul.addr %s1146, 8
        %s1148 = smul.addr %s1147, 4
        %s1149 = scalar_lea.vmem %s21, %s1148
        %p1150 = scmp.lt.s32.totalorder %s44, 1
        %s1151 = scalar_select %p1150, %s44, 1
        %s1152 = scalar_lea.vmem %s22, %s1151
        %p1153 = scmp.lt.s32.totalorder %s44, 1
        %s1154 = scalar_select %p1153, %s44, 1
        %s1155 = scalar_lea.vmem %s23, %s1154
        %p1156 = scmp.lt.s32.totalorder %s44, 1
        %s1157 = scalar_select %p1156, %s44, 1
        %s1158 = scalar_lea.vmem %s24, %s1157
        %p1160 = scmp.eq.s32.totalorder %s44, 0
        // Predicated region
        $region121: #{decoder_forward.1} parent=119 // pred_check
          %p1161 = pneg %p1160
        $region122: #{decoder_forward.1} parent=119 // pred_check_branch
          %1163 = sbr.rel (%p1161) target = $region124
        $region123: #{decoder_forward.1} parent=119 // pred_region
          %v1164 = vld [vmem:[%s1069] sm:$0xff]
          %vm1165 = vcmask 261120
          %1166 = vst.msk [vmem:[#allocation2] sm:$0xff] %vm1165, %v1164
        $region124: #{decoder_forward.1} parent=119 // pred_fallthru
          _
        %v1167 = vld [vmem:[#allocation2] sm:$0xff]
        %v1168 = vld [vmem:[%s1074] sm:$0xf]
        %v1169 = vld [vmem:[%s1074 + $0x4] sm:$0x1]
        %v1170 = vld [vmem:[%s1078] sm:$0xff]
        %v1171 = vlaneseq
        %v1172 = vshrl.u32 %v1171, 7
        %v1173 = vlaneseq
        %v1174 = vand.u32 %v1173, 127
        %vm1175 = vcmp.gt.s32.totalorder %v1174, %v1172
        %v1176 = vsel %vm1175, 1, 0
        %v1177 = vcvt.s32.f32 %v1176
        %v1178 = vld [vmem:[%s1081] sm:$0x1]
        %v1180 = vlaneseq
        %v1181 = vshrl.u32 %v1180, 7
        %v1182 = vsub.s32 0, %v1181
        %v1183 = vrot.slane %v1178, %v1182
        %v1185 = vadd.f32 %v1177, %v1183
        %vm1186 = vcmp.gt.f32.partialorder %v1185, 0.0
        %v1187 = vsel %vm1186, -1e+09, 0.0
        %v1188 = vld [vmem:[%s1084] sm:$0x1]
        %v1189 = vmul.f32 %v1188, -1e+09
        %v1190 = vpack.c.bf16 %v1167, %v1167
        %v1191 = vld [vmem:[%s1089] sm:$0xf]
        %v1192 = vld [vmem:[%s1089 + $0x4] sm:$0xf]
        %v1193 = vld [vmem:[%s1089 + $0x8] sm:$0xf]
        %v1194 = vld [vmem:[%s1089 + $0xc] sm:$0xf]
        %v1195 = vld [vmem:[%s1092] sm:$0x1]
        %v1197 = vlaneseq
        %v1198 = vshrl.u32 %v1197, 7
        %v1199 = vsub.s32 0, %v1198
        %v1200 = vrot.slane %v1195, %v1199
        %v1206 = vunpack.c.l.b16 %v1191
        %v1207 = vunpack.c.l.b16 %v1192
        %v1208 = vunpack.c.l.b16 %v1193
        %v1209 = vunpack.c.l.b16 %v1194
        %v1210 = vpack.c.b16 %v1207, %v1206
        %v1211 = vpack.c.b16 %v1209, %v1208
        %vm1214 = vcmask 261120
        %v1216 = vsel %vm1214, %v1190, 0
        %1218 = vmatprep.subr.bf16.mxu0 0
        %1219 = vmatpush1.bf16.msra.mxu0 0
        %1220 = vmatprep.subr.bf16.mxu0 0
        %1221 = vmatpush1.bf16.msra.mxu0 0
        %1222 = vmatprep.subr.bf16.mxu0 0
        %1223 = vmatpush1.bf16.msra.mxu0 0
        %1224 = vmatprep.subr.bf16.mxu0 0
        %1225 = vmatpush1.bf16.msra.mxu0 0
        %1226 = vmatprep.subr.bf16.mxu0 0
        %1227 = vmatpush1.bf16.msra.mxu0 0
        %1228 = vmatprep.subr.bf16.mxu0 0
        %1229 = vmatpush1.bf16.msra.mxu0 0
        %1230 = vmatprep.subr.bf16.mxu0 0
        %1231 = vmatpush1.bf16.msra.mxu0 %v1211
        %1232 = vmatprep.subr.bf16.mxu0 0
        %1233 = vmatpush1.bf16.msra.mxu0 %v1210
        %1234 = vmatprep.subr.bf16.mxu0 0
        %1235 = vmatpush2.bf16.msra.mxu0 0
        %1236 = vmatprep.subr.bf16.mxu0 0
        %1237 = vmatpush2.bf16.msra.mxu0 0
        %1238 = vmatprep.subr.bf16.mxu0 0
        %1239 = vmatpush2.bf16.msra.mxu0 0
        %1240 = vmatprep.subr.bf16.mxu0 0
        %1241 = vmatpush2.bf16.msra.mxu0 0
        %1242 = vmatprep.subr.bf16.mxu0 0
        %1243 = vmatpush2.bf16.msra.mxu0 0
        %1244 = vmatprep.subr.bf16.mxu0 0
        %1245 = vmatpush2.bf16.msra.mxu0 0
        %1246 = vmatprep.subr.bf16.mxu0 0
        %1247 = vmatpush2.bf16.msra.mxu0 0
        %1248 = vmatprep.subr.bf16.mxu0 0
        %1249 = vmatpush2.bf16.msra.mxu0 0
        %1250 = vmatprep.mubr.bf16.mxu0 0
        %1251 = vmatmul.mubr.bf16.gmra.mxu0 %v1216
        %v1252 = vpop.f32.mrf.mxu0
        %v1253 = vadd.f32 %v1200, %v1252
        %v1254 = vpop.f32.mrf.mxu0
        %v1255 = vpop.f32.mrf.mxu0
        %v1256 = vpop.f32.mrf.mxu0
        %1257 = vdwg.mxu0
        %v1258 = vmul.f32 %v1253, 0.35355338
        %1260 = vrot.lane.b32.xlu0 %v1258, 120
        %v1261 = vpop.permute.xlu0 %1260
        %1262 = vrot.lane.b32.xlu0 %v1258, 112
        %v1263 = vpop.permute.xlu0 %1262
        %1264 = vrot.lane.b32.xlu0 %v1258, 104
        %v1265 = vpop.permute.xlu0 %1264
        %1267 = vrot.lane.b32.xlu0 %v1253, 120
        %v1268 = vpop.permute.xlu0 %1267
        %1269 = vrot.lane.b32.xlu0 %v1253, 112
        %v1270 = vpop.permute.xlu0 %1269
        %1271 = vrot.lane.b32.xlu0 %v1253, 104
        %v1272 = vpop.permute.xlu0 %1271
        %1273 = vrot.lane.b32.xlu0 %v1253, 96
        %v1274 = vpop.permute.xlu0 %1273
        %vm1275 = vcmask 64512
        %v1276 = vsel %vm1275, %v1258, 0
        %v1278 = vsel %vm1275, %v1274, 0
        %1280 = vmatprep.subr.mxu0 0.0
        %1281 = vmatpush1.xpose.msra.mxu0 0.0
        %1282 = vmatprep.subr.mxu0 0.0
        %1283 = vmatpush1.xpose.msra.mxu0 0.0
        %1284 = vmatprep.subr.mxu0 0.0
        %1285 = vmatpush1.xpose.msra.mxu0 0.0
        %1286 = vmatprep.subr.mxu0 0.0
        %1287 = vmatpush1.xpose.msra.mxu0 0.0
        %1288 = vmatprep.subr.mxu0 0.0
        %1289 = vmatpush1.xpose.msra.mxu0 0.0
        %1290 = vmatprep.subr.mxu0 0.0
        %1291 = vmatpush1.xpose.msra.mxu0 0.0
        %1292 = vmatprep.subr.mxu0 0.0
        %1293 = vmatpush1.xpose.msra.mxu0 0.0
        %1294 = vmatprep.subr.mxu0 0.0
        %1295 = vmatpush1.xpose.msra.mxu0 0.0
        %1296 = vmatprep.subr.mxu0 0.0
        %1297 = vmatpush1.xpose.msra.mxu0 0.0
        %1298 = vmatprep.subr.mxu0 0.0
        %1299 = vmatpush1.xpose.msra.mxu0 0.0
        %1300 = vmatprep.subr.mxu0 0.0
        %1301 = vmatpush1.xpose.msra.mxu0 0.0
        %1302 = vmatprep.subr.mxu0 0.0
        %1303 = vmatpush1.xpose.msra.mxu0 0.0
        %1304 = vmatprep.subr.mxu0 0.0
        %1305 = vmatpush1.xpose.msra.mxu0 0.0
        %1306 = vmatprep.subr.mxu0 0.0
        %1307 = vmatpush1.xpose.msra.mxu0 0.0
        %1308 = vmatprep.subr.mxu0 0.0
        %1309 = vmatpush1.xpose.msra.mxu0 0.0
        %1310 = vmatprep.subr.mxu0 0.0
        %1311 = vmatpush1.xpose.msra.mxu0 %v1278
        %1312 = vmatprep.subr.mxu0 0.0
        %1313 = vmatpush2.xpose.msra.mxu0 0.0
        %1314 = vmatprep.subr.mxu0 0.0
        %1315 = vmatpush2.xpose.msra.mxu0 0.0
        %1316 = vmatprep.subr.mxu0 0.0
        %1317 = vmatpush2.xpose.msra.mxu0 0.0
        %1318 = vmatprep.subr.mxu0 0.0
        %1319 = vmatpush2.xpose.msra.mxu0 0.0
        %1320 = vmatprep.subr.mxu0 0.0
        %1321 = vmatpush2.xpose.msra.mxu0 0.0
        %1322 = vmatprep.subr.mxu0 0.0
        %1323 = vmatpush2.xpose.msra.mxu0 0.0
        %1324 = vmatprep.subr.mxu0 0.0
        %1325 = vmatpush2.xpose.msra.mxu0 0.0
        %1326 = vmatprep.subr.mxu0 0.0
        %1327 = vmatpush2.xpose.msra.mxu0 0.0
        %1328 = vmatprep.subr.mxu0 0.0
        %1329 = vmatpush2.xpose.msra.mxu0 0.0
        %1330 = vmatprep.subr.mxu0 0.0
        %1331 = vmatpush2.xpose.msra.mxu0 0.0
        %1332 = vmatprep.subr.mxu0 0.0
        %1333 = vmatpush2.xpose.msra.mxu0 0.0
        %1334 = vmatprep.subr.mxu0 0.0
        %1335 = vmatpush2.xpose.msra.mxu0 0.0
        %1336 = vmatprep.subr.mxu0 0.0
        %1337 = vmatpush2.xpose.msra.mxu0 0.0
        %1338 = vmatprep.subr.mxu0 0.0
        %1339 = vmatpush2.xpose.msra.mxu0 0.0
        %1340 = vmatprep.subr.mxu0 0.0
        %1341 = vmatpush2.xpose.msra.mxu0 0.0
        %1342 = vmatprep.subr.mxu0 0.0
        %1343 = vmatpush2.xpose.msra.mxu0 0.0
        %1344 = vmatprep.mubr.f32.mxu0 0.0
        %1345 = vmatmul.mubr.f32.gmra.mxu0 %v1276
        %v1346 = vpop.f32.mrf.mxu0
        %v1347 = vadd.f32 %v1187, %v1346
        %v1348 = vpop.f32.mrf.mxu0
        %1349 = vdwg.mxu0
        %1350 = vrot.lane.b32.xlu0 %v1268, 96
        %v1351 = vpop.permute.xlu0 %1350
        %v1352 = vsel %vm1275, %v1261, 0
        %v1354 = vsel %vm1275, %v1351, 0
        %1356 = vmatprep.subr.mxu0 0.0
        %1357 = vmatpush1.xpose.msra.mxu0 0.0
        %1358 = vmatprep.subr.mxu0 0.0
        %1359 = vmatpush1.xpose.msra.mxu0 0.0
        %1360 = vmatprep.subr.mxu0 0.0
        %1361 = vmatpush1.xpose.msra.mxu0 0.0
        %1362 = vmatprep.subr.mxu0 0.0
        %1363 = vmatpush1.xpose.msra.mxu0 0.0
        %1364 = vmatprep.subr.mxu0 0.0
        %1365 = vmatpush1.xpose.msra.mxu0 0.0
        %1366 = vmatprep.subr.mxu0 0.0
        %1367 = vmatpush1.xpose.msra.mxu0 0.0
        %1368 = vmatprep.subr.mxu0 0.0
        %1369 = vmatpush1.xpose.msra.mxu0 0.0
        %1370 = vmatprep.subr.mxu0 0.0
        %1371 = vmatpush1.xpose.msra.mxu0 0.0
        %1372 = vmatprep.subr.mxu0 0.0
        %1373 = vmatpush1.xpose.msra.mxu0 0.0
        %1374 = vmatprep.subr.mxu0 0.0
        %1375 = vmatpush1.xpose.msra.mxu0 0.0
        %1376 = vmatprep.subr.mxu0 0.0
        %1377 = vmatpush1.xpose.msra.mxu0 0.0
        %1378 = vmatprep.subr.mxu0 0.0
        %1379 = vmatpush1.xpose.msra.mxu0 0.0
        %1380 = vmatprep.subr.mxu0 0.0
        %1381 = vmatpush1.xpose.msra.mxu0 0.0
        %1382 = vmatprep.subr.mxu0 0.0
        %1383 = vmatpush1.xpose.msra.mxu0 0.0
        %1384 = vmatprep.subr.mxu0 0.0
        %1385 = vmatpush1.xpose.msra.mxu0 0.0
        %1386 = vmatprep.subr.mxu0 0.0
        %1387 = vmatpush1.xpose.msra.mxu0 %v1354
        %1388 = vmatprep.subr.mxu0 0.0
        %1389 = vmatpush2.xpose.msra.mxu0 0.0
        %1390 = vmatprep.subr.mxu0 0.0
        %1391 = vmatpush2.xpose.msra.mxu0 0.0
        %1392 = vmatprep.subr.mxu0 0.0
        %1393 = vmatpush2.xpose.msra.mxu0 0.0
        %1394 = vmatprep.subr.mxu0 0.0
        %1395 = vmatpush2.xpose.msra.mxu0 0.0
        %1396 = vmatprep.subr.mxu0 0.0
        %1397 = vmatpush2.xpose.msra.mxu0 0.0
        %1398 = vmatprep.subr.mxu0 0.0
        %1399 = vmatpush2.xpose.msra.mxu0 0.0
        %1400 = vmatprep.subr.mxu0 0.0
        %1401 = vmatpush2.xpose.msra.mxu0 0.0
        %1402 = vmatprep.subr.mxu0 0.0
        %1403 = vmatpush2.xpose.msra.mxu0 0.0
        %1404 = vmatprep.subr.mxu0 0.0
        %1405 = vmatpush2.xpose.msra.mxu0 0.0
        %1406 = vmatprep.subr.mxu0 0.0
        %1407 = vmatpush2.xpose.msra.mxu0 0.0
        %1408 = vmatprep.subr.mxu0 0.0
        %1409 = vmatpush2.xpose.msra.mxu0 0.0
        %1410 = vmatprep.subr.mxu0 0.0
        %1411 = vmatpush2.xpose.msra.mxu0 0.0
        %1412 = vmatprep.subr.mxu0 0.0
        %1413 = vmatpush2.xpose.msra.mxu0 0.0
        %1414 = vmatprep.subr.mxu0 0.0
        %1415 = vmatpush2.xpose.msra.mxu0 0.0
        %1416 = vmatprep.subr.mxu0 0.0
        %1417 = vmatpush2.xpose.msra.mxu0 0.0
        %1418 = vmatprep.subr.mxu0 0.0
        %1419 = vmatpush2.xpose.msra.mxu0 0.0
        %1420 = vmatprep.mubr.f32.mxu0 0.0
        %1421 = vmatmul.mubr.f32.gmra.mxu0 %v1352
        %v1422 = vpop.f32.mrf.mxu0
        %v1423 = vadd.f32 %v1187, %v1422
        %v1424 = vpop.f32.mrf.mxu0
        %1425 = vdwg.mxu0
        %1426 = vrot.lane.b32.xlu0 %v1270, 96
        %v1427 = vpop.permute.xlu0 %1426
        %v1428 = vsel %vm1275, %v1263, 0
        %v1430 = vsel %vm1275, %v1427, 0
        %1432 = vmatprep.subr.mxu0 0.0
        %1433 = vmatpush1.xpose.msra.mxu0 0.0
        %1434 = vmatprep.subr.mxu0 0.0
        %1435 = vmatpush1.xpose.msra.mxu0 0.0
        %1436 = vmatprep.subr.mxu0 0.0
        %1437 = vmatpush1.xpose.msra.mxu0 0.0
        %1438 = vmatprep.subr.mxu0 0.0
        %1439 = vmatpush1.xpose.msra.mxu0 0.0
        %1440 = vmatprep.subr.mxu0 0.0
        %1441 = vmatpush1.xpose.msra.mxu0 0.0
        %1442 = vmatprep.subr.mxu0 0.0
        %1443 = vmatpush1.xpose.msra.mxu0 0.0
        %1444 = vmatprep.subr.mxu0 0.0
        %1445 = vmatpush1.xpose.msra.mxu0 0.0
        %1446 = vmatprep.subr.mxu0 0.0
        %1447 = vmatpush1.xpose.msra.mxu0 0.0
        %1448 = vmatprep.subr.mxu0 0.0
        %1449 = vmatpush1.xpose.msra.mxu0 0.0
        %1450 = vmatprep.subr.mxu0 0.0
        %1451 = vmatpush1.xpose.msra.mxu0 0.0
        %1452 = vmatprep.subr.mxu0 0.0
        %1453 = vmatpush1.xpose.msra.mxu0 0.0
        %1454 = vmatprep.subr.mxu0 0.0
        %1455 = vmatpush1.xpose.msra.mxu0 0.0
        %1456 = vmatprep.subr.mxu0 0.0
        %1457 = vmatpush1.xpose.msra.mxu0 0.0
        %1458 = vmatprep.subr.mxu0 0.0
        %1459 = vmatpush1.xpose.msra.mxu0 0.0
        %1460 = vmatprep.subr.mxu0 0.0
        %1461 = vmatpush1.xpose.msra.mxu0 0.0
        %1462 = vmatprep.subr.mxu0 0.0
        %1463 = vmatpush1.xpose.msra.mxu0 %v1430
        %1464 = vmatprep.subr.mxu0 0.0
        %1465 = vmatpush2.xpose.msra.mxu0 0.0
        %1466 = vmatprep.subr.mxu0 0.0
        %1467 = vmatpush2.xpose.msra.mxu0 0.0
        %1468 = vmatprep.subr.mxu0 0.0
        %1469 = vmatpush2.xpose.msra.mxu0 0.0
        %1470 = vmatprep.subr.mxu0 0.0
        %1471 = vmatpush2.xpose.msra.mxu0 0.0
        %1472 = vmatprep.subr.mxu0 0.0
        %1473 = vmatpush2.xpose.msra.mxu0 0.0
        %1474 = vmatprep.subr.mxu0 0.0
        %1475 = vmatpush2.xpose.msra.mxu0 0.0
        %1476 = vmatprep.subr.mxu0 0.0
        %1477 = vmatpush2.xpose.msra.mxu0 0.0
        %1478 = vmatprep.subr.mxu0 0.0
        %1479 = vmatpush2.xpose.msra.mxu0 0.0
        %1480 = vmatprep.subr.mxu0 0.0
        %1481 = vmatpush2.xpose.msra.mxu0 0.0
        %1482 = vmatprep.subr.mxu0 0.0
        %1483 = vmatpush2.xpose.msra.mxu0 0.0
        %1484 = vmatprep.subr.mxu0 0.0
        %1485 = vmatpush2.xpose.msra.mxu0 0.0
        %1486 = vmatprep.subr.mxu0 0.0
        %1487 = vmatpush2.xpose.msra.mxu0 0.0
        %1488 = vmatprep.subr.mxu0 0.0
        %1489 = vmatpush2.xpose.msra.mxu0 0.0
        %1490 = vmatprep.subr.mxu0 0.0
        %1491 = vmatpush2.xpose.msra.mxu0 0.0
        %1492 = vmatprep.subr.mxu0 0.0
        %1493 = vmatpush2.xpose.msra.mxu0 0.0
        %1494 = vmatprep.subr.mxu0 0.0
        %1495 = vmatpush2.xpose.msra.mxu0 0.0
        %1496 = vmatprep.mubr.f32.mxu0 0.0
        %1497 = vmatmul.mubr.f32.gmra.mxu0 %v1428
        %v1498 = vpop.f32.mrf.mxu0
        %v1499 = vadd.f32 %v1187, %v1498
        %v1500 = vpop.f32.mrf.mxu0
        %1501 = vdwg.mxu0
        %1502 = vrot.lane.b32.xlu0 %v1272, 96
        %v1503 = vpop.permute.xlu0 %1502
        %v1504 = vsel %vm1275, %v1265, 0
        %v1506 = vsel %vm1275, %v1503, 0
        %1508 = vmatprep.subr.mxu0 0.0
        %1509 = vmatpush1.xpose.msra.mxu0 0.0
        %1510 = vmatprep.subr.mxu0 0.0
        %1511 = vmatpush1.xpose.msra.mxu0 0.0
        %1512 = vmatprep.subr.mxu0 0.0
        %1513 = vmatpush1.xpose.msra.mxu0 0.0
        %1514 = vmatprep.subr.mxu0 0.0
        %1515 = vmatpush1.xpose.msra.mxu0 0.0
        %1516 = vmatprep.subr.mxu0 0.0
        %1517 = vmatpush1.xpose.msra.mxu0 0.0
        %1518 = vmatprep.subr.mxu0 0.0
        %1519 = vmatpush1.xpose.msra.mxu0 0.0
        %1520 = vmatprep.subr.mxu0 0.0
        %1521 = vmatpush1.xpose.msra.mxu0 0.0
        %1522 = vmatprep.subr.mxu0 0.0
        %1523 = vmatpush1.xpose.msra.mxu0 0.0
        %1524 = vmatprep.subr.mxu0 0.0
        %1525 = vmatpush1.xpose.msra.mxu0 0.0
        %1526 = vmatprep.subr.mxu0 0.0
        %1527 = vmatpush1.xpose.msra.mxu0 0.0
        %1528 = vmatprep.subr.mxu0 0.0
        %1529 = vmatpush1.xpose.msra.mxu0 0.0
        %1530 = vmatprep.subr.mxu0 0.0
        %1531 = vmatpush1.xpose.msra.mxu0 0.0
        %1532 = vmatprep.subr.mxu0 0.0
        %1533 = vmatpush1.xpose.msra.mxu0 0.0
        %1534 = vmatprep.subr.mxu0 0.0
        %1535 = vmatpush1.xpose.msra.mxu0 0.0
        %1536 = vmatprep.subr.mxu0 0.0
        %1537 = vmatpush1.xpose.msra.mxu0 0.0
        %1538 = vmatprep.subr.mxu0 0.0
        %1539 = vmatpush1.xpose.msra.mxu0 %v1506
        %1540 = vmatprep.subr.mxu0 0.0
        %1541 = vmatpush2.xpose.msra.mxu0 0.0
        %1542 = vmatprep.subr.mxu0 0.0
        %1543 = vmatpush2.xpose.msra.mxu0 0.0
        %1544 = vmatprep.subr.mxu0 0.0
        %1545 = vmatpush2.xpose.msra.mxu0 0.0
        %1546 = vmatprep.subr.mxu0 0.0
        %1547 = vmatpush2.xpose.msra.mxu0 0.0
        %1548 = vmatprep.subr.mxu0 0.0
        %1549 = vmatpush2.xpose.msra.mxu0 0.0
        %1550 = vmatprep.subr.mxu0 0.0
        %1551 = vmatpush2.xpose.msra.mxu0 0.0
        %1552 = vmatprep.subr.mxu0 0.0
        %1553 = vmatpush2.xpose.msra.mxu0 0.0
        %1554 = vmatprep.subr.mxu0 0.0
        %1555 = vmatpush2.xpose.msra.mxu0 0.0
        %1556 = vmatprep.subr.mxu0 0.0
        %1557 = vmatpush2.xpose.msra.mxu0 0.0
        %1558 = vmatprep.subr.mxu0 0.0
        %1559 = vmatpush2.xpose.msra.mxu0 0.0
        %1560 = vmatprep.subr.mxu0 0.0
        %1561 = vmatpush2.xpose.msra.mxu0 0.0
        %1562 = vmatprep.subr.mxu0 0.0
        %1563 = vmatpush2.xpose.msra.mxu0 0.0
        %1564 = vmatprep.subr.mxu0 0.0
        %1565 = vmatpush2.xpose.msra.mxu0 0.0
        %1566 = vmatprep.subr.mxu0 0.0
        %1567 = vmatpush2.xpose.msra.mxu0 0.0
        %1568 = vmatprep.subr.mxu0 0.0
        %1569 = vmatpush2.xpose.msra.mxu0 0.0
        %1570 = vmatprep.subr.mxu0 0.0
        %1571 = vmatpush2.xpose.msra.mxu0 0.0
        %1572 = vmatprep.mubr.f32.mxu0 0.0
        %1573 = vmatmul.mubr.f32.gmra.mxu0 %v1504
        %v1574 = vpop.f32.mrf.mxu0
        %v1575 = vadd.f32 %v1187, %v1574
        %v1576 = vpop.f32.mrf.mxu0
        %1577 = vdwg.mxu0
        %v1578 = vsel %vm1275, %v1347, -inf
        %1579 = vmax.xlane.f32.xlu0 %v1578
        %v1580 = vpop.xlane.xlu0 %1579
        %v1581 = vsel %vm1275, %v1423, -inf
        %1582 = vmax.xlane.f32.xlu0 %v1581
        %v1583 = vpop.xlane.xlu0 %1582
        %v1584 = vsel %vm1275, %v1499, -inf
        %1585 = vmax.xlane.f32.xlu0 %v1584
        %v1586 = vpop.xlane.xlu0 %1585
        %v1587 = vsel %vm1275, %v1575, -inf
        %1588 = vmax.xlane.f32.xlu0 %v1587
        %v1589 = vpop.xlane.xlu0 %1588
        %v1590 = vsub.f32 %v1347, %v1580
        %v1591 = vsub.f32 %v1423, %v1583
        %v1592 = vsub.f32 %v1499, %v1586
        %v1593 = vsub.f32 %v1575, %v1589
        %v1594 = vmul.f32 %v1590, 1.442695
        %v1595 = vpow.pop %v1594
        %v1596 = vmul.f32 %v1591, 1.442695
        %v1597 = vpow.pop %v1596
        %v1598 = vmul.f32 %v1592, 1.442695
        %v1599 = vpow.pop %v1598
        %v1600 = vmul.f32 %v1593, 1.442695
        %v1601 = vpow.pop %v1600
        %v1602 = vsel %vm1275, %v1595, 0.0
        %1603 = vadd.xlane.f32.xlu0 %v1602
        %v1604 = vpop.xlane.xlu0 %1603
        %v1605 = vsel %vm1275, %v1597, 0.0
        %1606 = vadd.xlane.f32.xlu0 %v1605
        %v1607 = vpop.xlane.xlu0 %1606
        %v1608 = vsel %vm1275, %v1599, 0.0
        %1609 = vadd.xlane.f32.xlu0 %v1608
        %v1610 = vpop.xlane.xlu0 %1609
        %v1611 = vsel %vm1275, %v1601, 0.0
        %1612 = vadd.xlane.f32.xlu0 %v1611
        %v1613 = vpop.xlane.xlu0 %1612
        %v1614 = vrcp.pop %v1604
        %v1615 = vrcp.pop %v1607
        %v1616 = vrcp.pop %v1610
        %v1617 = vrcp.pop %v1613
        %v1618 = vmul.f32 %v1595, %v1614
        %v1619 = vmul.f32 %v1597, %v1615
        %v1620 = vmul.f32 %v1599, %v1616
        %v1621 = vmul.f32 %v1601, %v1617
        %1622 = vrot.lane.b32.xlu0 %v1253, 64
        %v1623 = vpop.permute.xlu0 %1622
        %v1626 = vsel %vm1275, %v1618, 0
        %1628 = vmatprep.subr.mxu0 0.0
        %1629 = vmatpush1.msra.mxu0 0.0
        %1630 = vmatprep.subr.mxu0 0.0
        %1631 = vmatpush1.msra.mxu0 0.0
        %1632 = vmatprep.subr.mxu0 0.0
        %1633 = vmatpush1.msra.mxu0 0.0
        %1634 = vmatprep.subr.mxu0 0.0
        %1635 = vmatpush1.msra.mxu0 0.0
        %1636 = vmatprep.subr.mxu0 0.0
        %1637 = vmatpush1.msra.mxu0 0.0
        %1638 = vmatprep.subr.mxu0 0.0
        %1639 = vmatpush1.msra.mxu0 0.0
        %1640 = vmatprep.subr.mxu0 0.0
        %1641 = vmatpush1.msra.mxu0 0.0
        %1642 = vmatprep.subr.mxu0 0.0
        %1643 = vmatpush1.msra.mxu0 0.0
        %1644 = vmatprep.subr.mxu0 0.0
        %1645 = vmatpush1.msra.mxu0 0.0
        %1646 = vmatprep.subr.mxu0 0.0
        %1647 = vmatpush1.msra.mxu0 0.0
        %1648 = vmatprep.subr.mxu0 0.0
        %1649 = vmatpush1.msra.mxu0 0.0
        %1650 = vmatprep.subr.mxu0 0.0
        %1651 = vmatpush1.msra.mxu0 0.0
        %1652 = vmatprep.subr.mxu0 0.0
        %1653 = vmatpush1.msra.mxu0 0.0
        %1654 = vmatprep.subr.mxu0 0.0
        %1655 = vmatpush1.msra.mxu0 0.0
        %1656 = vmatprep.subr.mxu0 0.0
        %1657 = vmatpush1.msra.mxu0 0.0
        %1658 = vmatprep.subr.mxu0 0.0
        %1659 = vmatpush1.msra.mxu0 %v1623
        %1660 = vmatprep.subr.mxu0 0.0
        %1661 = vmatpush2.msra.mxu0 0.0
        %1662 = vmatprep.subr.mxu0 0.0
        %1663 = vmatpush2.msra.mxu0 0.0
        %1664 = vmatprep.subr.mxu0 0.0
        %1665 = vmatpush2.msra.mxu0 0.0
        %1666 = vmatprep.subr.mxu0 0.0
        %1667 = vmatpush2.msra.mxu0 0.0
        %1668 = vmatprep.subr.mxu0 0.0
        %1669 = vmatpush2.msra.mxu0 0.0
        %1670 = vmatprep.subr.mxu0 0.0
        %1671 = vmatpush2.msra.mxu0 0.0
        %1672 = vmatprep.subr.mxu0 0.0
        %1673 = vmatpush2.msra.mxu0 0.0
        %1674 = vmatprep.subr.mxu0 0.0
        %1675 = vmatpush2.msra.mxu0 0.0
        %1676 = vmatprep.subr.mxu0 0.0
        %1677 = vmatpush2.msra.mxu0 0.0
        %1678 = vmatprep.subr.mxu0 0.0
        %1679 = vmatpush2.msra.mxu0 0.0
        %1680 = vmatprep.subr.mxu0 0.0
        %1681 = vmatpush2.msra.mxu0 0.0
        %1682 = vmatprep.subr.mxu0 0.0
        %1683 = vmatpush2.msra.mxu0 0.0
        %1684 = vmatprep.subr.mxu0 0.0
        %1685 = vmatpush2.msra.mxu0 0.0
        %1686 = vmatprep.subr.mxu0 0.0
        %1687 = vmatpush2.msra.mxu0 0.0
        %1688 = vmatprep.subr.mxu0 0.0
        %1689 = vmatpush2.msra.mxu0 0.0
        %1690 = vmatprep.subr.mxu0 0.0
        %1691 = vmatpush2.msra.mxu0 0.0
        %1692 = vmatprep.mubr.f32.mxu0 0.0
        %1693 = vmatmul.mubr.f32.gmra.mxu0 %v1626
        %v1694 = vpop.f32.mrf.mxu0
        %v1695 = vadd.f32 0.0, %v1694
        %v1696 = vpop.f32.mrf.mxu0
        %1697 = vdwg.mxu0
        %1698 = vrot.lane.b32.xlu0 %v1268, 64
        %v1699 = vpop.permute.xlu0 %1698
        %v1702 = vsel %vm1275, %v1619, 0
        %1704 = vmatprep.subr.mxu0 0.0
        %1705 = vmatpush1.msra.mxu0 0.0
        %1706 = vmatprep.subr.mxu0 0.0
        %1707 = vmatpush1.msra.mxu0 0.0
        %1708 = vmatprep.subr.mxu0 0.0
        %1709 = vmatpush1.msra.mxu0 0.0
        %1710 = vmatprep.subr.mxu0 0.0
        %1711 = vmatpush1.msra.mxu0 0.0
        %1712 = vmatprep.subr.mxu0 0.0
        %1713 = vmatpush1.msra.mxu0 0.0
        %1714 = vmatprep.subr.mxu0 0.0
        %1715 = vmatpush1.msra.mxu0 0.0
        %1716 = vmatprep.subr.mxu0 0.0
        %1717 = vmatpush1.msra.mxu0 0.0
        %1718 = vmatprep.subr.mxu0 0.0
        %1719 = vmatpush1.msra.mxu0 0.0
        %1720 = vmatprep.subr.mxu0 0.0
        %1721 = vmatpush1.msra.mxu0 0.0
        %1722 = vmatprep.subr.mxu0 0.0
        %1723 = vmatpush1.msra.mxu0 0.0
        %1724 = vmatprep.subr.mxu0 0.0
        %1725 = vmatpush1.msra.mxu0 0.0
        %1726 = vmatprep.subr.mxu0 0.0
        %1727 = vmatpush1.msra.mxu0 0.0
        %1728 = vmatprep.subr.mxu0 0.0
        %1729 = vmatpush1.msra.mxu0 0.0
        %1730 = vmatprep.subr.mxu0 0.0
        %1731 = vmatpush1.msra.mxu0 0.0
        %1732 = vmatprep.subr.mxu0 0.0
        %1733 = vmatpush1.msra.mxu0 0.0
        %1734 = vmatprep.subr.mxu0 0.0
        %1735 = vmatpush1.msra.mxu0 %v1699
        %1736 = vmatprep.subr.mxu0 0.0
        %1737 = vmatpush2.msra.mxu0 0.0
        %1738 = vmatprep.subr.mxu0 0.0
        %1739 = vmatpush2.msra.mxu0 0.0
        %1740 = vmatprep.subr.mxu0 0.0
        %1741 = vmatpush2.msra.mxu0 0.0
        %1742 = vmatprep.subr.mxu0 0.0
        %1743 = vmatpush2.msra.mxu0 0.0
        %1744 = vmatprep.subr.mxu0 0.0
        %1745 = vmatpush2.msra.mxu0 0.0
        %1746 = vmatprep.subr.mxu0 0.0
        %1747 = vmatpush2.msra.mxu0 0.0
        %1748 = vmatprep.subr.mxu0 0.0
        %1749 = vmatpush2.msra.mxu0 0.0
        %1750 = vmatprep.subr.mxu0 0.0
        %1751 = vmatpush2.msra.mxu0 0.0
        %1752 = vmatprep.subr.mxu0 0.0
        %1753 = vmatpush2.msra.mxu0 0.0
        %1754 = vmatprep.subr.mxu0 0.0
        %1755 = vmatpush2.msra.mxu0 0.0
        %1756 = vmatprep.subr.mxu0 0.0
        %1757 = vmatpush2.msra.mxu0 0.0
        %1758 = vmatprep.subr.mxu0 0.0
        %1759 = vmatpush2.msra.mxu0 0.0
        %1760 = vmatprep.subr.mxu0 0.0
        %1761 = vmatpush2.msra.mxu0 0.0
        %1762 = vmatprep.subr.mxu0 0.0
        %1763 = vmatpush2.msra.mxu0 0.0
        %1764 = vmatprep.subr.mxu0 0.0
        %1765 = vmatpush2.msra.mxu0 0.0
        %1766 = vmatprep.subr.mxu0 0.0
        %1767 = vmatpush2.msra.mxu0 0.0
        %1768 = vmatprep.mubr.f32.mxu0 0.0
        %1769 = vmatmul.mubr.f32.gmra.mxu0 %v1702
        %v1770 = vpop.f32.mrf.mxu0
        %v1771 = vadd.f32 0.0, %v1770
        %v1772 = vpop.f32.mrf.mxu0
        %1773 = vdwg.mxu0
        %1774 = vrot.lane.b32.xlu0 %v1270, 64
        %v1775 = vpop.permute.xlu0 %1774
        %v1778 = vsel %vm1275, %v1620, 0
        %1780 = vmatprep.subr.mxu0 0.0
        %1781 = vmatpush1.msra.mxu0 0.0
        %1782 = vmatprep.subr.mxu0 0.0
        %1783 = vmatpush1.msra.mxu0 0.0
        %1784 = vmatprep.subr.mxu0 0.0
        %1785 = vmatpush1.msra.mxu0 0.0
        %1786 = vmatprep.subr.mxu0 0.0
        %1787 = vmatpush1.msra.mxu0 0.0
        %1788 = vmatprep.subr.mxu0 0.0
        %1789 = vmatpush1.msra.mxu0 0.0
        %1790 = vmatprep.subr.mxu0 0.0
        %1791 = vmatpush1.msra.mxu0 0.0
        %1792 = vmatprep.subr.mxu0 0.0
        %1793 = vmatpush1.msra.mxu0 0.0
        %1794 = vmatprep.subr.mxu0 0.0
        %1795 = vmatpush1.msra.mxu0 0.0
        %1796 = vmatprep.subr.mxu0 0.0
        %1797 = vmatpush1.msra.mxu0 0.0
        %1798 = vmatprep.subr.mxu0 0.0
        %1799 = vmatpush1.msra.mxu0 0.0
        %1800 = vmatprep.subr.mxu0 0.0
        %1801 = vmatpush1.msra.mxu0 0.0
        %1802 = vmatprep.subr.mxu0 0.0
        %1803 = vmatpush1.msra.mxu0 0.0
        %1804 = vmatprep.subr.mxu0 0.0
        %1805 = vmatpush1.msra.mxu0 0.0
        %1806 = vmatprep.subr.mxu0 0.0
        %1807 = vmatpush1.msra.mxu0 0.0
        %1808 = vmatprep.subr.mxu0 0.0
        %1809 = vmatpush1.msra.mxu0 0.0
        %1810 = vmatprep.subr.mxu0 0.0
        %1811 = vmatpush1.msra.mxu0 %v1775
        %1812 = vmatprep.subr.mxu0 0.0
        %1813 = vmatpush2.msra.mxu0 0.0
        %1814 = vmatprep.subr.mxu0 0.0
        %1815 = vmatpush2.msra.mxu0 0.0
        %1816 = vmatprep.subr.mxu0 0.0
        %1817 = vmatpush2.msra.mxu0 0.0
        %1818 = vmatprep.subr.mxu0 0.0
        %1819 = vmatpush2.msra.mxu0 0.0
        %1820 = vmatprep.subr.mxu0 0.0
        %1821 = vmatpush2.msra.mxu0 0.0
        %1822 = vmatprep.subr.mxu0 0.0
        %1823 = vmatpush2.msra.mxu0 0.0
        %1824 = vmatprep.subr.mxu0 0.0
        %1825 = vmatpush2.msra.mxu0 0.0
        %1826 = vmatprep.subr.mxu0 0.0
        %1827 = vmatpush2.msra.mxu0 0.0
        %1828 = vmatprep.subr.mxu0 0.0
        %1829 = vmatpush2.msra.mxu0 0.0
        %1830 = vmatprep.subr.mxu0 0.0
        %1831 = vmatpush2.msra.mxu0 0.0
        %1832 = vmatprep.subr.mxu0 0.0
        %1833 = vmatpush2.msra.mxu0 0.0
        %1834 = vmatprep.subr.mxu0 0.0
        %1835 = vmatpush2.msra.mxu0 0.0
        %1836 = vmatprep.subr.mxu0 0.0
        %1837 = vmatpush2.msra.mxu0 0.0
        %1838 = vmatprep.subr.mxu0 0.0
        %1839 = vmatpush2.msra.mxu0 0.0
        %1840 = vmatprep.subr.mxu0 0.0
        %1841 = vmatpush2.msra.mxu0 0.0
        %1842 = vmatprep.subr.mxu0 0.0
        %1843 = vmatpush2.msra.mxu0 0.0
        %1844 = vmatprep.mubr.f32.mxu0 0.0
        %1845 = vmatmul.mubr.f32.gmra.mxu0 %v1778
        %v1846 = vpop.f32.mrf.mxu0
        %v1847 = vadd.f32 0.0, %v1846
        %v1848 = vpop.f32.mrf.mxu0
        %1849 = vdwg.mxu0
        %1850 = vrot.lane.b32.xlu0 %v1272, 64
        %v1851 = vpop.permute.xlu0 %1850
        %v1854 = vsel %vm1275, %v1621, 0
        %1856 = vmatprep.subr.mxu0 0.0
        %1857 = vmatpush1.msra.mxu0 0.0
        %1858 = vmatprep.subr.mxu0 0.0
        %1859 = vmatpush1.msra.mxu0 0.0
        %1860 = vmatprep.subr.mxu0 0.0
        %1861 = vmatpush1.msra.mxu0 0.0
        %1862 = vmatprep.subr.mxu0 0.0
        %1863 = vmatpush1.msra.mxu0 0.0
        %1864 = vmatprep.subr.mxu0 0.0
        %1865 = vmatpush1.msra.mxu0 0.0
        %1866 = vmatprep.subr.mxu0 0.0
        %1867 = vmatpush1.msra.mxu0 0.0
        %1868 = vmatprep.subr.mxu0 0.0
        %1869 = vmatpush1.msra.mxu0 0.0
        %1870 = vmatprep.subr.mxu0 0.0
        %1871 = vmatpush1.msra.mxu0 0.0
        %1872 = vmatprep.subr.mxu0 0.0
        %1873 = vmatpush1.msra.mxu0 0.0
        %1874 = vmatprep.subr.mxu0 0.0
        %1875 = vmatpush1.msra.mxu0 0.0
        %1876 = vmatprep.subr.mxu0 0.0
        %1877 = vmatpush1.msra.mxu0 0.0
        %1878 = vmatprep.subr.mxu0 0.0
        %1879 = vmatpush1.msra.mxu0 0.0
        %1880 = vmatprep.subr.mxu0 0.0
        %1881 = vmatpush1.msra.mxu0 0.0
        %1882 = vmatprep.subr.mxu0 0.0
        %1883 = vmatpush1.msra.mxu0 0.0
        %1884 = vmatprep.subr.mxu0 0.0
        %1885 = vmatpush1.msra.mxu0 0.0
        %1886 = vmatprep.subr.mxu0 0.0
        %1887 = vmatpush1.msra.mxu0 %v1851
        %1888 = vmatprep.subr.mxu0 0.0
        %1889 = vmatpush2.msra.mxu0 0.0
        %1890 = vmatprep.subr.mxu0 0.0
        %1891 = vmatpush2.msra.mxu0 0.0
        %1892 = vmatprep.subr.mxu0 0.0
        %1893 = vmatpush2.msra.mxu0 0.0
        %1894 = vmatprep.subr.mxu0 0.0
        %1895 = vmatpush2.msra.mxu0 0.0
        %1896 = vmatprep.subr.mxu0 0.0
        %1897 = vmatpush2.msra.mxu0 0.0
        %1898 = vmatprep.subr.mxu0 0.0
        %1899 = vmatpush2.msra.mxu0 0.0
        %1900 = vmatprep.subr.mxu0 0.0
        %1901 = vmatpush2.msra.mxu0 0.0
        %1902 = vmatprep.subr.mxu0 0.0
        %1903 = vmatpush2.msra.mxu0 0.0
        %1904 = vmatprep.subr.mxu0 0.0
        %1905 = vmatpush2.msra.mxu0 0.0
        %1906 = vmatprep.subr.mxu0 0.0
        %1907 = vmatpush2.msra.mxu0 0.0
        %1908 = vmatprep.subr.mxu0 0.0
        %1909 = vmatpush2.msra.mxu0 0.0
        %1910 = vmatprep.subr.mxu0 0.0
        %1911 = vmatpush2.msra.mxu0 0.0
        %1912 = vmatprep.subr.mxu0 0.0
        %1913 = vmatpush2.msra.mxu0 0.0
        %1914 = vmatprep.subr.mxu0 0.0
        %1915 = vmatpush2.msra.mxu0 0.0
        %1916 = vmatprep.subr.mxu0 0.0
        %1917 = vmatpush2.msra.mxu0 0.0
        %1918 = vmatprep.subr.mxu0 0.0
        %1919 = vmatpush2.msra.mxu0 0.0
        %1920 = vmatprep.mubr.f32.mxu0 0.0
        %1921 = vmatmul.mubr.f32.gmra.mxu0 %v1854
        %v1922 = vpop.f32.mrf.mxu0
        %v1923 = vadd.f32 0.0, %v1922
        %v1924 = vpop.f32.mrf.mxu0
        %1925 = vdwg.mxu0
        %1927 = vrot.lane.b32.xlu0 %v1771, 8
        %v1928 = vpop.permute.xlu0 %1927
        %1931 = vrot.lane.b32.xlu0 %v1847, 16
        %v1932 = vpop.permute.xlu0 %1931
        %1935 = vrot.lane.b32.xlu0 %v1923, 24
        %v1936 = vpop.permute.xlu0 %1935
        %v1938 = vsel %vm1275, %v1695, %v1928
        %vm1939 = vcmask 130048
        %v1940 = vsel %vm1939, %v1938, %v1932
        %vm1941 = vcmask 195584
        %v1942 = vsel %vm1941, %v1940, %v1936
        %v1943 = vpack.c.bf16 %v1942, %v1942
        %v1944 = vld [vmem:[%s1097] sm:$0xf]
        %v1945 = vld [vmem:[%s1097 + $0x4] sm:$0xf]
        %v1946 = vld [vmem:[%s1097 + $0x8] sm:$0xf]
        %v1947 = vld [vmem:[%s1097 + $0xc] sm:$0xf]
        %v1948 = vld [vmem:[%s1100] sm:$0x1]
        %v1950 = vlaneseq
        %v1951 = vshrl.u32 %v1950, 7
        %v1952 = vsub.s32 0, %v1951
        %v1953 = vrot.slane %v1948, %v1952
        %v1959 = vunpack.c.l.b16 %v1944
        %v1960 = vunpack.c.l.b16 %v1945
        %v1961 = vunpack.c.l.b16 %v1946
        %v1962 = vunpack.c.l.b16 %v1947
        %v1963 = vpack.c.b16 %v1960, %v1959
        %v1964 = vpack.c.b16 %v1962, %v1961
        %v1968 = vsel %vm1214, %v1943, 0
        %1970 = vmatprep.subr.bf16.mxu0 0
        %1971 = vmatpush1.bf16.msra.mxu0 0
        %1972 = vmatprep.subr.bf16.mxu0 0
        %1973 = vmatpush1.bf16.msra.mxu0 0
        %1974 = vmatprep.subr.bf16.mxu0 0
        %1975 = vmatpush1.bf16.msra.mxu0 0
        %1976 = vmatprep.subr.bf16.mxu0 0
        %1977 = vmatpush1.bf16.msra.mxu0 0
        %1978 = vmatprep.subr.bf16.mxu0 0
        %1979 = vmatpush1.bf16.msra.mxu0 0
        %1980 = vmatprep.subr.bf16.mxu0 0
        %1981 = vmatpush1.bf16.msra.mxu0 0
        %1982 = vmatprep.subr.bf16.mxu0 0
        %1983 = vmatpush1.bf16.msra.mxu0 %v1964
        %1984 = vmatprep.subr.bf16.mxu0 0
        %1985 = vmatpush1.bf16.msra.mxu0 %v1963
        %1986 = vmatprep.subr.bf16.mxu0 0
        %1987 = vmatpush2.bf16.msra.mxu0 0
        %1988 = vmatprep.subr.bf16.mxu0 0
        %1989 = vmatpush2.bf16.msra.mxu0 0
        %1990 = vmatprep.subr.bf16.mxu0 0
        %1991 = vmatpush2.bf16.msra.mxu0 0
        %1992 = vmatprep.subr.bf16.mxu0 0
        %1993 = vmatpush2.bf16.msra.mxu0 0
        %1994 = vmatprep.subr.bf16.mxu0 0
        %1995 = vmatpush2.bf16.msra.mxu0 0
        %1996 = vmatprep.subr.bf16.mxu0 0
        %1997 = vmatpush2.bf16.msra.mxu0 0
        %1998 = vmatprep.subr.bf16.mxu0 0
        %1999 = vmatpush2.bf16.msra.mxu0 0
        %2000 = vmatprep.subr.bf16.mxu0 0
        %2001 = vmatpush2.bf16.msra.mxu0 0
        %2002 = vmatprep.mubr.bf16.mxu0 0
        %2003 = vmatmul.mubr.bf16.gmra.mxu0 %v1968
        %v2004 = vpop.f32.mrf.mxu0
        %v2005 = vadd.f32 %v1953, %v2004
        %v2006 = vpop.f32.mrf.mxu0
        %v2007 = vpop.f32.mrf.mxu0
        %v2008 = vpop.f32.mrf.mxu0
        %2009 = vdwg.mxu0
        %v2010 = vadd.f32 %v2005, %v1167
        %v2011 = vsel %vm1214, %v2010, 0.0
        %2012 = vadd.xlane.f32.xlu0 %v2011
        %v2013 = vpop.xlane.xlu0 %2012
        %v2014 = vrcp.pop 32.0
        %v2015 = vmul.f32 %v2013, %v2014
        %v2016 = vsub.f32 %v2010, %v2015
        %v2017 = vmul.f32 %v2016, %v2016
        %v2018 = vsel %vm1214, %v2017, 0.0
        %2019 = vadd.xlane.f32.xlu0 %v2018
        %v2020 = vpop.xlane.xlu0 %2019
        %v2021 = vmul.f32 %v2020, %v2014
        %v2022 = vadd.f32 %v2021, 1e-05
        %v2023 = vrsqrt.pop %v2022
        %v2024 = vmul.f32 %v2016, %v2023
        %v2025 = vld [vmem:[%s1103] sm:$0x1]
        %v2027 = vlaneseq
        %v2028 = vshrl.u32 %v2027, 7
        %v2029 = vsub.s32 0, %v2028
        %v2030 = vrot.slane %v2025, %v2029
        %v2032 = vmul.f32 %v2024, %v2030
        %v2033 = vld [vmem:[%s1106] sm:$0x1]
        %v2035 = vlaneseq
        %v2036 = vshrl.u32 %v2035, 7
        %v2037 = vsub.s32 0, %v2036
        %v2038 = vrot.slane %v2033, %v2037
        %v2040 = vadd.f32 %v2032, %v2038
        %2042 = vset.pattern.permute.xlu0 0
        %2043 = vperm.xlu0 %2042, %v1170
        %v2044 = vpop.permute.xlu0 %2043
        %v2046 = vmul.f32 %v2040, %v2044
        %v2047 = vpack.c.bf16 %v2046, %v2046
        %v2048 = vld [vmem:[%s1111] sm:$0xf]
        %v2049 = vld [vmem:[%s1111 + $0x4] sm:$0xf]
        %v2050 = vld [vmem:[%s1111 + $0x8] sm:$0xf]
        %v2051 = vld [vmem:[%s1111 + $0xc] sm:$0xf]
        %v2052 = vld [vmem:[%s1114] sm:$0x1]
        %v2054 = vlaneseq
        %v2055 = vshrl.u32 %v2054, 7
        %v2056 = vsub.s32 0, %v2055
        %v2057 = vrot.slane %v2052, %v2056
        %v2063 = vunpack.c.l.b16 %v2048
        %v2064 = vunpack.c.l.b16 %v2049
        %v2065 = vunpack.c.l.b16 %v2050
        %v2066 = vunpack.c.l.b16 %v2051
        %v2067 = vpack.c.b16 %v2064, %v2063
        %v2068 = vpack.c.b16 %v2066, %v2065
        %v2072 = vsel %vm1214, %v2047, 0
        %2074 = vmatprep.subr.bf16.mxu0 0
        %2075 = vmatpush1.bf16.msra.mxu0 0
        %2076 = vmatprep.subr.bf16.mxu0 0
        %2077 = vmatpush1.bf16.msra.mxu0 0
        %2078 = vmatprep.subr.bf16.mxu0 0
        %2079 = vmatpush1.bf16.msra.mxu0 0
        %2080 = vmatprep.subr.bf16.mxu0 0
        %2081 = vmatpush1.bf16.msra.mxu0 0
        %2082 = vmatprep.subr.bf16.mxu0 0
        %2083 = vmatpush1.bf16.msra.mxu0 0
        %2084 = vmatprep.subr.bf16.mxu0 0
        %2085 = vmatpush1.bf16.msra.mxu0 0
        %2086 = vmatprep.subr.bf16.mxu0 0
        %2087 = vmatpush1.bf16.msra.mxu0 %v2068
        %2088 = vmatprep.subr.bf16.mxu0 0
        %2089 = vmatpush1.bf16.msra.mxu0 %v2067
        %2090 = vmatprep.subr.bf16.mxu0 0
        %2091 = vmatpush2.bf16.msra.mxu0 0
        %2092 = vmatprep.subr.bf16.mxu0 0
        %2093 = vmatpush2.bf16.msra.mxu0 0
        %2094 = vmatprep.subr.bf16.mxu0 0
        %2095 = vmatpush2.bf16.msra.mxu0 0
        %2096 = vmatprep.subr.bf16.mxu0 0
        %2097 = vmatpush2.bf16.msra.mxu0 0
        %2098 = vmatprep.subr.bf16.mxu0 0
        %2099 = vmatpush2.bf16.msra.mxu0 0
        %2100 = vmatprep.subr.bf16.mxu0 0
        %2101 = vmatpush2.bf16.msra.mxu0 0
        %2102 = vmatprep.subr.bf16.mxu0 0
        %2103 = vmatpush2.bf16.msra.mxu0 0
        %2104 = vmatprep.subr.bf16.mxu0 0
        %2105 = vmatpush2.bf16.msra.mxu0 0
        %2106 = vmatprep.mubr.bf16.mxu0 0
        %2107 = vmatmul.mubr.bf16.gmra.mxu0 %v2072
        %v2108 = vpop.f32.mrf.mxu0
        %v2109 = vadd.f32 %v2057, %v2108
        %v2110 = vpop.f32.mrf.mxu0
        %v2111 = vpop.f32.mrf.mxu0
        %v2112 = vpop.f32.mrf.mxu0
        %2113 = vdwg.mxu0
        %v2114 = vmul.f32 %v2109, 0.35355338
        %v2115 = vld [vmem:[%s1119] sm:$0xf]
        %v2116 = vld [vmem:[%s1119 + $0x4] sm:$0xf]
        %v2117 = vld [vmem:[%s1119 + $0x8] sm:$0xf]
        %v2118 = vld [vmem:[%s1119 + $0xc] sm:$0xf]
        %v2119 = vld [vmem:[%s1122] sm:$0x1]
        %v2121 = vlaneseq
        %v2122 = vshrl.u32 %v2121, 7
        %v2123 = vsub.s32 0, %v2122
        %v2124 = vrot.slane %v2119, %v2123
        %v2128 = vunpack.c.l.b16 %v1168
        %v2129 = vunpack.c.l.b16 %v1169
        %v2130 = vpack.c.b16 %v2129, %v2128
        %v2135 = vunpack.c.l.b16 %v2115
        %v2136 = vunpack.c.l.b16 %v2116
        %v2137 = vunpack.c.l.b16 %v2117
        %v2138 = vunpack.c.l.b16 %v2118
        %v2139 = vpack.c.b16 %v2136, %v2135
        %v2140 = vpack.c.b16 %v2138, %v2137
        %v2144 = vsel %vm1214, %v2130, 0
        %2146 = vmatprep.subr.bf16.mxu0 0
        %2147 = vmatpush1.bf16.msra.mxu0 0
        %2148 = vmatprep.subr.bf16.mxu0 0
        %2149 = vmatpush1.bf16.msra.mxu0 0
        %2150 = vmatprep.subr.bf16.mxu0 0
        %2151 = vmatpush1.bf16.msra.mxu0 0
        %2152 = vmatprep.subr.bf16.mxu0 0
        %2153 = vmatpush1.bf16.msra.mxu0 0
        %2154 = vmatprep.subr.bf16.mxu0 0
        %2155 = vmatpush1.bf16.msra.mxu0 0
        %2156 = vmatprep.subr.bf16.mxu0 0
        %2157 = vmatpush1.bf16.msra.mxu0 0
        %2158 = vmatprep.subr.bf16.mxu0 0
        %2159 = vmatpush1.bf16.msra.mxu0 %v2140
        %2160 = vmatprep.subr.bf16.mxu0 0
        %2161 = vmatpush1.bf16.msra.mxu0 %v2139
        %2162 = vmatprep.subr.bf16.mxu0 0
        %2163 = vmatpush2.bf16.msra.mxu0 0
        %2164 = vmatprep.subr.bf16.mxu0 0
        %2165 = vmatpush2.bf16.msra.mxu0 0
        %2166 = vmatprep.subr.bf16.mxu0 0
        %2167 = vmatpush2.bf16.msra.mxu0 0
        %2168 = vmatprep.subr.bf16.mxu0 0
        %2169 = vmatpush2.bf16.msra.mxu0 0
        %2170 = vmatprep.subr.bf16.mxu0 0
        %2171 = vmatpush2.bf16.msra.mxu0 0
        %2172 = vmatprep.subr.bf16.mxu0 0
        %2173 = vmatpush2.bf16.msra.mxu0 0
        %2174 = vmatprep.subr.bf16.mxu0 0
        %2175 = vmatpush2.bf16.msra.mxu0 0
        %2176 = vmatprep.subr.bf16.mxu0 0
        %2177 = vmatpush2.bf16.msra.mxu0 0
        %2178 = vmatprep.mubr.bf16.mxu0 0
        %2179 = vmatmul.mubr.bf16.gmra.mxu0 %v2144
        %v2180 = vpop.f32.mrf.mxu0
        %v2181 = vadd.f32 %v2124, %v2180
        %v2182 = vpop.f32.mrf.mxu0
        %v2183 = vpop.f32.mrf.mxu0
        %v2184 = vadd.f32 %v2124, %v2183
        %v2185 = vpop.f32.mrf.mxu0
        %2186 = vdwg.mxu0
        %2188 = vrot.lane.b32.xlu0 %v2114, 120
        %v2189 = vpop.permute.xlu0 %2188
        %2190 = vrot.lane.b32.xlu0 %v2114, 112
        %v2191 = vpop.permute.xlu0 %2190
        %2192 = vrot.lane.b32.xlu0 %v2114, 104
        %v2193 = vpop.permute.xlu0 %2192
        %2196 = vrot.lane.b32.xlu0 %v2181, 120
        %v2197 = vpop.permute.xlu0 %2196
        %2198 = vrot.lane.b32.xlu0 %v2184, 120
        %v2199 = vpop.permute.xlu0 %2198
        %2200 = vrot.lane.b32.xlu0 %v2181, 112
        %v2201 = vpop.permute.xlu0 %2200
        %2202 = vrot.lane.b32.xlu0 %v2184, 112
        %v2203 = vpop.permute.xlu0 %2202
        %2204 = vrot.lane.b32.xlu0 %v2181, 104
        %v2205 = vpop.permute.xlu0 %2204
        %2206 = vrot.lane.b32.xlu0 %v2184, 104
        %v2207 = vpop.permute.xlu0 %2206
        %v2209 = vlaneseq
        %v2210 = vshrl.u32 %v2209, 7
        %v2211 = vsub.s32 0, %v2210
        %v2212 = vrot.slane %v1189, %v2211
        %v2214 = vsel %vm1275, %v2114, 0
        %v2216 = vsel %vm1275, %v2181, 0
        %v2218 = vsel %vm1275, %v2184, 0
        %2220 = vmatprep.subr.mxu0 0.0
        %2221 = vmatpush1.xpose.msra.mxu0 0.0
        %2222 = vmatprep.subr.mxu0 0.0
        %2223 = vmatpush1.xpose.msra.mxu0 0.0
        %2224 = vmatprep.subr.mxu0 0.0
        %2225 = vmatpush1.xpose.msra.mxu0 0.0
        %2226 = vmatprep.subr.mxu0 0.0
        %2227 = vmatpush1.xpose.msra.mxu0 0.0
        %2228 = vmatprep.subr.mxu0 0.0
        %2229 = vmatpush1.xpose.msra.mxu0 0.0
        %2230 = vmatprep.subr.mxu0 0.0
        %2231 = vmatpush1.xpose.msra.mxu0 0.0
        %2232 = vmatprep.subr.mxu0 0.0
        %2233 = vmatpush1.xpose.msra.mxu0 0.0
        %2234 = vmatprep.subr.mxu0 0.0
        %2235 = vmatpush1.xpose.msra.mxu0 0.0
        %2236 = vmatprep.subr.mxu0 0.0
        %2237 = vmatpush1.xpose.msra.mxu0 0.0
        %2238 = vmatprep.subr.mxu0 0.0
        %2239 = vmatpush1.xpose.msra.mxu0 0.0
        %2240 = vmatprep.subr.mxu0 0.0
        %2241 = vmatpush1.xpose.msra.mxu0 0.0
        %2242 = vmatprep.subr.mxu0 0.0
        %2243 = vmatpush1.xpose.msra.mxu0 0.0
        %2244 = vmatprep.subr.mxu0 0.0
        %2245 = vmatpush1.xpose.msra.mxu0 0.0
        %2246 = vmatprep.subr.mxu0 0.0
        %2247 = vmatpush1.xpose.msra.mxu0 0.0
        %2248 = vmatprep.subr.mxu0 0.0
        %2249 = vmatpush1.xpose.msra.mxu0 %v2218
        %2250 = vmatprep.subr.mxu0 0.0
        %2251 = vmatpush1.xpose.msra.mxu0 %v2216
        %2252 = vmatprep.subr.mxu0 0.0
        %2253 = vmatpush2.xpose.msra.mxu0 0.0
        %2254 = vmatprep.subr.mxu0 0.0
        %2255 = vmatpush2.xpose.msra.mxu0 0.0
        %2256 = vmatprep.subr.mxu0 0.0
        %2257 = vmatpush2.xpose.msra.mxu0 0.0
        %2258 = vmatprep.subr.mxu0 0.0
        %2259 = vmatpush2.xpose.msra.mxu0 0.0
        %2260 = vmatprep.subr.mxu0 0.0
        %2261 = vmatpush2.xpose.msra.mxu0 0.0
        %2262 = vmatprep.subr.mxu0 0.0
        %2263 = vmatpush2.xpose.msra.mxu0 0.0
        %2264 = vmatprep.subr.mxu0 0.0
        %2265 = vmatpush2.xpose.msra.mxu0 0.0
        %2266 = vmatprep.subr.mxu0 0.0
        %2267 = vmatpush2.xpose.msra.mxu0 0.0
        %2268 = vmatprep.subr.mxu0 0.0
        %2269 = vmatpush2.xpose.msra.mxu0 0.0
        %2270 = vmatprep.subr.mxu0 0.0
        %2271 = vmatpush2.xpose.msra.mxu0 0.0
        %2272 = vmatprep.subr.mxu0 0.0
        %2273 = vmatpush2.xpose.msra.mxu0 0.0
        %2274 = vmatprep.subr.mxu0 0.0
        %2275 = vmatpush2.xpose.msra.mxu0 0.0
        %2276 = vmatprep.subr.mxu0 0.0
        %2277 = vmatpush2.xpose.msra.mxu0 0.0
        %2278 = vmatprep.subr.mxu0 0.0
        %2279 = vmatpush2.xpose.msra.mxu0 0.0
        %2280 = vmatprep.subr.mxu0 0.0
        %2281 = vmatpush2.xpose.msra.mxu0 0.0
        %2282 = vmatprep.subr.mxu0 0.0
        %2283 = vmatpush2.xpose.msra.mxu0 0.0
        %2284 = vmatprep.mubr.f32.mxu0 0.0
        %2285 = vmatmul.mubr.f32.gmra.mxu0 %v2214
        %v2286 = vpop.f32.mrf.mxu0
        %v2287 = vadd.f32 %v2212, %v2286
        %v2288 = vpop.f32.mrf.mxu0
        %2289 = vdwg.mxu0
        %v2290 = vsel %vm1275, %v2189, 0
        %v2292 = vsel %vm1275, %v2197, 0
        %v2294 = vsel %vm1275, %v2199, 0
        %2296 = vmatprep.subr.mxu0 0.0
        %2297 = vmatpush1.xpose.msra.mxu0 0.0
        %2298 = vmatprep.subr.mxu0 0.0
        %2299 = vmatpush1.xpose.msra.mxu0 0.0
        %2300 = vmatprep.subr.mxu0 0.0
        %2301 = vmatpush1.xpose.msra.mxu0 0.0
        %2302 = vmatprep.subr.mxu0 0.0
        %2303 = vmatpush1.xpose.msra.mxu0 0.0
        %2304 = vmatprep.subr.mxu0 0.0
        %2305 = vmatpush1.xpose.msra.mxu0 0.0
        %2306 = vmatprep.subr.mxu0 0.0
        %2307 = vmatpush1.xpose.msra.mxu0 0.0
        %2308 = vmatprep.subr.mxu0 0.0
        %2309 = vmatpush1.xpose.msra.mxu0 0.0
        %2310 = vmatprep.subr.mxu0 0.0
        %2311 = vmatpush1.xpose.msra.mxu0 0.0
        %2312 = vmatprep.subr.mxu0 0.0
        %2313 = vmatpush1.xpose.msra.mxu0 0.0
        %2314 = vmatprep.subr.mxu0 0.0
        %2315 = vmatpush1.xpose.msra.mxu0 0.0
        %2316 = vmatprep.subr.mxu0 0.0
        %2317 = vmatpush1.xpose.msra.mxu0 0.0
        %2318 = vmatprep.subr.mxu0 0.0
        %2319 = vmatpush1.xpose.msra.mxu0 0.0
        %2320 = vmatprep.subr.mxu0 0.0
        %2321 = vmatpush1.xpose.msra.mxu0 0.0
        %2322 = vmatprep.subr.mxu0 0.0
        %2323 = vmatpush1.xpose.msra.mxu0 0.0
        %2324 = vmatprep.subr.mxu0 0.0
        %2325 = vmatpush1.xpose.msra.mxu0 %v2294
        %2326 = vmatprep.subr.mxu0 0.0
        %2327 = vmatpush1.xpose.msra.mxu0 %v2292
        %2328 = vmatprep.subr.mxu0 0.0
        %2329 = vmatpush2.xpose.msra.mxu0 0.0
        %2330 = vmatprep.subr.mxu0 0.0
        %2331 = vmatpush2.xpose.msra.mxu0 0.0
        %2332 = vmatprep.subr.mxu0 0.0
        %2333 = vmatpush2.xpose.msra.mxu0 0.0
        %2334 = vmatprep.subr.mxu0 0.0
        %2335 = vmatpush2.xpose.msra.mxu0 0.0
        %2336 = vmatprep.subr.mxu0 0.0
        %2337 = vmatpush2.xpose.msra.mxu0 0.0
        %2338 = vmatprep.subr.mxu0 0.0
        %2339 = vmatpush2.xpose.msra.mxu0 0.0
        %2340 = vmatprep.subr.mxu0 0.0
        %2341 = vmatpush2.xpose.msra.mxu0 0.0
        %2342 = vmatprep.subr.mxu0 0.0
        %2343 = vmatpush2.xpose.msra.mxu0 0.0
        %2344 = vmatprep.subr.mxu0 0.0
        %2345 = vmatpush2.xpose.msra.mxu0 0.0
        %2346 = vmatprep.subr.mxu0 0.0
        %2347 = vmatpush2.xpose.msra.mxu0 0.0
        %2348 = vmatprep.subr.mxu0 0.0
        %2349 = vmatpush2.xpose.msra.mxu0 0.0
        %2350 = vmatprep.subr.mxu0 0.0
        %2351 = vmatpush2.xpose.msra.mxu0 0.0
        %2352 = vmatprep.subr.mxu0 0.0
        %2353 = vmatpush2.xpose.msra.mxu0 0.0
        %2354 = vmatprep.subr.mxu0 0.0
        %2355 = vmatpush2.xpose.msra.mxu0 0.0
        %2356 = vmatprep.subr.mxu0 0.0
        %2357 = vmatpush2.xpose.msra.mxu0 0.0
        %2358 = vmatprep.subr.mxu0 0.0
        %2359 = vmatpush2.xpose.msra.mxu0 0.0
        %2360 = vmatprep.mubr.f32.mxu0 0.0
        %2361 = vmatmul.mubr.f32.gmra.mxu0 %v2290
        %v2362 = vpop.f32.mrf.mxu0
        %v2363 = vadd.f32 %v2212, %v2362
        %v2364 = vpop.f32.mrf.mxu0
        %2365 = vdwg.mxu0
        %v2366 = vsel %vm1275, %v2191, 0
        %v2368 = vsel %vm1275, %v2201, 0
        %v2370 = vsel %vm1275, %v2203, 0
        %2372 = vmatprep.subr.mxu0 0.0
        %2373 = vmatpush1.xpose.msra.mxu0 0.0
        %2374 = vmatprep.subr.mxu0 0.0
        %2375 = vmatpush1.xpose.msra.mxu0 0.0
        %2376 = vmatprep.subr.mxu0 0.0
        %2377 = vmatpush1.xpose.msra.mxu0 0.0
        %2378 = vmatprep.subr.mxu0 0.0
        %2379 = vmatpush1.xpose.msra.mxu0 0.0
        %2380 = vmatprep.subr.mxu0 0.0
        %2381 = vmatpush1.xpose.msra.mxu0 0.0
        %2382 = vmatprep.subr.mxu0 0.0
        %2383 = vmatpush1.xpose.msra.mxu0 0.0
        %2384 = vmatprep.subr.mxu0 0.0
        %2385 = vmatpush1.xpose.msra.mxu0 0.0
        %2386 = vmatprep.subr.mxu0 0.0
        %2387 = vmatpush1.xpose.msra.mxu0 0.0
        %2388 = vmatprep.subr.mxu0 0.0
        %2389 = vmatpush1.xpose.msra.mxu0 0.0
        %2390 = vmatprep.subr.mxu0 0.0
        %2391 = vmatpush1.xpose.msra.mxu0 0.0
        %2392 = vmatprep.subr.mxu0 0.0
        %2393 = vmatpush1.xpose.msra.mxu0 0.0
        %2394 = vmatprep.subr.mxu0 0.0
        %2395 = vmatpush1.xpose.msra.mxu0 0.0
        %2396 = vmatprep.subr.mxu0 0.0
        %2397 = vmatpush1.xpose.msra.mxu0 0.0
        %2398 = vmatprep.subr.mxu0 0.0
        %2399 = vmatpush1.xpose.msra.mxu0 0.0
        %2400 = vmatprep.subr.mxu0 0.0
        %2401 = vmatpush1.xpose.msra.mxu0 %v2370
        %2402 = vmatprep.subr.mxu0 0.0
        %2403 = vmatpush1.xpose.msra.mxu0 %v2368
        %2404 = vmatprep.subr.mxu0 0.0
        %2405 = vmatpush2.xpose.msra.mxu0 0.0
        %2406 = vmatprep.subr.mxu0 0.0
        %2407 = vmatpush2.xpose.msra.mxu0 0.0
        %2408 = vmatprep.subr.mxu0 0.0
        %2409 = vmatpush2.xpose.msra.mxu0 0.0
        %2410 = vmatprep.subr.mxu0 0.0
        %2411 = vmatpush2.xpose.msra.mxu0 0.0
        %2412 = vmatprep.subr.mxu0 0.0
        %2413 = vmatpush2.xpose.msra.mxu0 0.0
        %2414 = vmatprep.subr.mxu0 0.0
        %2415 = vmatpush2.xpose.msra.mxu0 0.0
        %2416 = vmatprep.subr.mxu0 0.0
        %2417 = vmatpush2.xpose.msra.mxu0 0.0
        %2418 = vmatprep.subr.mxu0 0.0
        %2419 = vmatpush2.xpose.msra.mxu0 0.0
        %2420 = vmatprep.subr.mxu0 0.0
        %2421 = vmatpush2.xpose.msra.mxu0 0.0
        %2422 = vmatprep.subr.mxu0 0.0
        %2423 = vmatpush2.xpose.msra.mxu0 0.0
        %2424 = vmatprep.subr.mxu0 0.0
        %2425 = vmatpush2.xpose.msra.mxu0 0.0
        %2426 = vmatprep.subr.mxu0 0.0
        %2427 = vmatpush2.xpose.msra.mxu0 0.0
        %2428 = vmatprep.subr.mxu0 0.0
        %2429 = vmatpush2.xpose.msra.mxu0 0.0
        %2430 = vmatprep.subr.mxu0 0.0
        %2431 = vmatpush2.xpose.msra.mxu0 0.0
        %2432 = vmatprep.subr.mxu0 0.0
        %2433 = vmatpush2.xpose.msra.mxu0 0.0
        %2434 = vmatprep.subr.mxu0 0.0
        %2435 = vmatpush2.xpose.msra.mxu0 0.0
        %2436 = vmatprep.mubr.f32.mxu0 0.0
        %2437 = vmatmul.mubr.f32.gmra.mxu0 %v2366
        %v2438 = vpop.f32.mrf.mxu0
        %v2439 = vadd.f32 %v2212, %v2438
        %v2440 = vpop.f32.mrf.mxu0
        %2441 = vdwg.mxu0
        %v2442 = vsel %vm1275, %v2193, 0
        %v2444 = vsel %vm1275, %v2205, 0
        %v2446 = vsel %vm1275, %v2207, 0
        %2448 = vmatprep.subr.mxu0 0.0
        %2449 = vmatpush1.xpose.msra.mxu0 0.0
        %2450 = vmatprep.subr.mxu0 0.0
        %2451 = vmatpush1.xpose.msra.mxu0 0.0
        %2452 = vmatprep.subr.mxu0 0.0
        %2453 = vmatpush1.xpose.msra.mxu0 0.0
        %2454 = vmatprep.subr.mxu0 0.0
        %2455 = vmatpush1.xpose.msra.mxu0 0.0
        %2456 = vmatprep.subr.mxu0 0.0
        %2457 = vmatpush1.xpose.msra.mxu0 0.0
        %2458 = vmatprep.subr.mxu0 0.0
        %2459 = vmatpush1.xpose.msra.mxu0 0.0
        %2460 = vmatprep.subr.mxu0 0.0
        %2461 = vmatpush1.xpose.msra.mxu0 0.0
        %2462 = vmatprep.subr.mxu0 0.0
        %2463 = vmatpush1.xpose.msra.mxu0 0.0
        %2464 = vmatprep.subr.mxu0 0.0
        %2465 = vmatpush1.xpose.msra.mxu0 0.0
        %2466 = vmatprep.subr.mxu0 0.0
        %2467 = vmatpush1.xpose.msra.mxu0 0.0
        %2468 = vmatprep.subr.mxu0 0.0
        %2469 = vmatpush1.xpose.msra.mxu0 0.0
        %2470 = vmatprep.subr.mxu0 0.0
        %2471 = vmatpush1.xpose.msra.mxu0 0.0
        %2472 = vmatprep.subr.mxu0 0.0
        %2473 = vmatpush1.xpose.msra.mxu0 0.0
        %2474 = vmatprep.subr.mxu0 0.0
        %2475 = vmatpush1.xpose.msra.mxu0 0.0
        %2476 = vmatprep.subr.mxu0 0.0
        %2477 = vmatpush1.xpose.msra.mxu0 %v2446
        %2478 = vmatprep.subr.mxu0 0.0
        %2479 = vmatpush1.xpose.msra.mxu0 %v2444
        %2480 = vmatprep.subr.mxu0 0.0
        %2481 = vmatpush2.xpose.msra.mxu0 0.0
        %2482 = vmatprep.subr.mxu0 0.0
        %2483 = vmatpush2.xpose.msra.mxu0 0.0
        %2484 = vmatprep.subr.mxu0 0.0
        %2485 = vmatpush2.xpose.msra.mxu0 0.0
        %2486 = vmatprep.subr.mxu0 0.0
        %2487 = vmatpush2.xpose.msra.mxu0 0.0
        %2488 = vmatprep.subr.mxu0 0.0
        %2489 = vmatpush2.xpose.msra.mxu0 0.0
        %2490 = vmatprep.subr.mxu0 0.0
        %2491 = vmatpush2.xpose.msra.mxu0 0.0
        %2492 = vmatprep.subr.mxu0 0.0
        %2493 = vmatpush2.xpose.msra.mxu0 0.0
        %2494 = vmatprep.subr.mxu0 0.0
        %2495 = vmatpush2.xpose.msra.mxu0 0.0
        %2496 = vmatprep.subr.mxu0 0.0
        %2497 = vmatpush2.xpose.msra.mxu0 0.0
        %2498 = vmatprep.subr.mxu0 0.0
        %2499 = vmatpush2.xpose.msra.mxu0 0.0
        %2500 = vmatprep.subr.mxu0 0.0
        %2501 = vmatpush2.xpose.msra.mxu0 0.0
        %2502 = vmatprep.subr.mxu0 0.0
        %2503 = vmatpush2.xpose.msra.mxu0 0.0
        %2504 = vmatprep.subr.mxu0 0.0
        %2505 = vmatpush2.xpose.msra.mxu0 0.0
        %2506 = vmatprep.subr.mxu0 0.0
        %2507 = vmatpush2.xpose.msra.mxu0 0.0
        %2508 = vmatprep.subr.mxu0 0.0
        %2509 = vmatpush2.xpose.msra.mxu0 0.0
        %2510 = vmatprep.subr.mxu0 0.0
        %2511 = vmatpush2.xpose.msra.mxu0 0.0
        %2512 = vmatprep.mubr.f32.mxu0 0.0
        %2513 = vmatmul.mubr.f32.gmra.mxu0 %v2442
        %v2514 = vpop.f32.mrf.mxu0
        %v2515 = vadd.f32 %v2212, %v2514
        %v2516 = vpop.f32.mrf.mxu0
        %2517 = vdwg.mxu0
        %vm2518 = vcmask 80896
        %v2519 = vsel %vm2518, %v2287, -inf
        %2520 = vmax.xlane.f32.xlu0 %v2519
        %v2521 = vpop.xlane.xlu0 %2520
        %v2522 = vsel %vm2518, %v2363, -inf
        %2523 = vmax.xlane.f32.xlu0 %v2522
        %v2524 = vpop.xlane.xlu0 %2523
        %v2525 = vsel %vm2518, %v2439, -inf
        %2526 = vmax.xlane.f32.xlu0 %v2525
        %v2527 = vpop.xlane.xlu0 %2526
        %v2528 = vsel %vm2518, %v2515, -inf
        %2529 = vmax.xlane.f32.xlu0 %v2528
        %v2530 = vpop.xlane.xlu0 %2529
        %v2531 = vsub.f32 %v2287, %v2521
        %v2532 = vsub.f32 %v2363, %v2524
        %v2533 = vsub.f32 %v2439, %v2527
        %v2534 = vsub.f32 %v2515, %v2530
        %v2535 = vmul.f32 %v2531, 1.442695
        %v2536 = vpow.pop %v2535
        %v2537 = vmul.f32 %v2532, 1.442695
        %v2538 = vpow.pop %v2537
        %v2539 = vmul.f32 %v2533, 1.442695
        %v2540 = vpow.pop %v2539
        %v2541 = vmul.f32 %v2534, 1.442695
        %v2542 = vpow.pop %v2541
        %v2543 = vsel %vm2518, %v2536, 0.0
        %2544 = vadd.xlane.f32.xlu0 %v2543
        %v2545 = vpop.xlane.xlu0 %2544
        %v2546 = vsel %vm2518, %v2538, 0.0
        %2547 = vadd.xlane.f32.xlu0 %v2546
        %v2548 = vpop.xlane.xlu0 %2547
        %v2549 = vsel %vm2518, %v2540, 0.0
        %2550 = vadd.xlane.f32.xlu0 %v2549
        %v2551 = vpop.xlane.xlu0 %2550
        %v2552 = vsel %vm2518, %v2542, 0.0
        %2553 = vadd.xlane.f32.xlu0 %v2552
        %v2554 = vpop.xlane.xlu0 %2553
        %v2555 = vrcp.pop %v2545
        %v2556 = vrcp.pop %v2548
        %v2557 = vrcp.pop %v2551
        %v2558 = vrcp.pop %v2554
        %v2559 = vmul.f32 %v2536, %v2555
        %v2560 = vmul.f32 %v2538, %v2556
        %v2561 = vmul.f32 %v2540, %v2557
        %v2562 = vmul.f32 %v2542, %v2558
        %2563 = vrot.lane.b32.xlu0 %v2181, 96
        %v2564 = vpop.permute.xlu0 %2563
        %2565 = vrot.lane.b32.xlu0 %v2184, 96
        %v2566 = vpop.permute.xlu0 %2565
        %v2569 = vsel %vm2518, %v2559, 0
        %vm2571 = vcmask 1041408
        %v2572 = vsel %vm2571, %v2566, 0
        %2574 = vmatprep.subr.mxu0 0.0
        %2575 = vmatpush1.msra.mxu0 0.0
        %2576 = vmatprep.subr.mxu0 0.0
        %2577 = vmatpush1.msra.mxu0 0.0
        %2578 = vmatprep.subr.mxu0 0.0
        %2579 = vmatpush1.msra.mxu0 0.0
        %2580 = vmatprep.subr.mxu0 0.0
        %2581 = vmatpush1.msra.mxu0 0.0
        %2582 = vmatprep.subr.mxu0 0.0
        %2583 = vmatpush1.msra.mxu0 0.0
        %2584 = vmatprep.subr.mxu0 0.0
        %2585 = vmatpush1.msra.mxu0 0.0
        %2586 = vmatprep.subr.mxu0 0.0
        %2587 = vmatpush1.msra.mxu0 0.0
        %2588 = vmatprep.subr.mxu0 0.0
        %2589 = vmatpush1.msra.mxu0 0.0
        %2590 = vmatprep.subr.mxu0 0.0
        %2591 = vmatpush1.msra.mxu0 0.0
        %2592 = vmatprep.subr.mxu0 0.0
        %2593 = vmatpush1.msra.mxu0 0.0
        %2594 = vmatprep.subr.mxu0 0.0
        %2595 = vmatpush1.msra.mxu0 0.0
        %2596 = vmatprep.subr.mxu0 0.0
        %2597 = vmatpush1.msra.mxu0 0.0
        %2598 = vmatprep.subr.mxu0 0.0
        %2599 = vmatpush1.msra.mxu0 0.0
        %2600 = vmatprep.subr.mxu0 0.0
        %2601 = vmatpush1.msra.mxu0 0.0
        %2602 = vmatprep.subr.mxu0 0.0
        %2603 = vmatpush1.msra.mxu0 %v2572
        %2604 = vmatprep.subr.mxu0 0.0
        %2605 = vmatpush1.msra.mxu0 %v2564
        %2606 = vmatprep.subr.mxu0 0.0
        %2607 = vmatpush2.msra.mxu0 0.0
        %2608 = vmatprep.subr.mxu0 0.0
        %2609 = vmatpush2.msra.mxu0 0.0
        %2610 = vmatprep.subr.mxu0 0.0
        %2611 = vmatpush2.msra.mxu0 0.0
        %2612 = vmatprep.subr.mxu0 0.0
        %2613 = vmatpush2.msra.mxu0 0.0
        %2614 = vmatprep.subr.mxu0 0.0
        %2615 = vmatpush2.msra.mxu0 0.0
        %2616 = vmatprep.subr.mxu0 0.0
        %2617 = vmatpush2.msra.mxu0 0.0
        %2618 = vmatprep.subr.mxu0 0.0
        %2619 = vmatpush2.msra.mxu0 0.0
        %2620 = vmatprep.subr.mxu0 0.0
        %2621 = vmatpush2.msra.mxu0 0.0
        %2622 = vmatprep.subr.mxu0 0.0
        %2623 = vmatpush2.msra.mxu0 0.0
        %2624 = vmatprep.subr.mxu0 0.0
        %2625 = vmatpush2.msra.mxu0 0.0
        %2626 = vmatprep.subr.mxu0 0.0
        %2627 = vmatpush2.msra.mxu0 0.0
        %2628 = vmatprep.subr.mxu0 0.0
        %2629 = vmatpush2.msra.mxu0 0.0
        %2630 = vmatprep.subr.mxu0 0.0
        %2631 = vmatpush2.msra.mxu0 0.0
        %2632 = vmatprep.subr.mxu0 0.0
        %2633 = vmatpush2.msra.mxu0 0.0
        %2634 = vmatprep.subr.mxu0 0.0
        %2635 = vmatpush2.msra.mxu0 0.0
        %2636 = vmatprep.subr.mxu0 0.0
        %2637 = vmatpush2.msra.mxu0 0.0
        %2638 = vmatprep.mubr.f32.mxu0 0.0
        %2639 = vmatmul.mubr.f32.gmra.mxu0 %v2569
        %v2640 = vpop.f32.mrf.mxu0
        %v2641 = vadd.f32 0.0, %v2640
        %v2642 = vpop.f32.mrf.mxu0
        %2643 = vdwg.mxu0
        %2644 = vrot.lane.b32.xlu0 %v2197, 96
        %v2645 = vpop.permute.xlu0 %2644
        %2646 = vrot.lane.b32.xlu0 %v2199, 96
        %v2647 = vpop.permute.xlu0 %2646
        %v2650 = vsel %vm2518, %v2560, 0
        %v2652 = vsel %vm2571, %v2647, 0
        %2654 = vmatprep.subr.mxu0 0.0
        %2655 = vmatpush1.msra.mxu0 0.0
        %2656 = vmatprep.subr.mxu0 0.0
        %2657 = vmatpush1.msra.mxu0 0.0
        %2658 = vmatprep.subr.mxu0 0.0
        %2659 = vmatpush1.msra.mxu0 0.0
        %2660 = vmatprep.subr.mxu0 0.0
        %2661 = vmatpush1.msra.mxu0 0.0
        %2662 = vmatprep.subr.mxu0 0.0
        %2663 = vmatpush1.msra.mxu0 0.0
        %2664 = vmatprep.subr.mxu0 0.0
        %2665 = vmatpush1.msra.mxu0 0.0
        %2666 = vmatprep.subr.mxu0 0.0
        %2667 = vmatpush1.msra.mxu0 0.0
        %2668 = vmatprep.subr.mxu0 0.0
        %2669 = vmatpush1.msra.mxu0 0.0
        %2670 = vmatprep.subr.mxu0 0.0
        %2671 = vmatpush1.msra.mxu0 0.0
        %2672 = vmatprep.subr.mxu0 0.0
        %2673 = vmatpush1.msra.mxu0 0.0
        %2674 = vmatprep.subr.mxu0 0.0
        %2675 = vmatpush1.msra.mxu0 0.0
        %2676 = vmatprep.subr.mxu0 0.0
        %2677 = vmatpush1.msra.mxu0 0.0
        %2678 = vmatprep.subr.mxu0 0.0
        %2679 = vmatpush1.msra.mxu0 0.0
        %2680 = vmatprep.subr.mxu0 0.0
        %2681 = vmatpush1.msra.mxu0 0.0
        %2682 = vmatprep.subr.mxu0 0.0
        %2683 = vmatpush1.msra.mxu0 %v2652
        %2684 = vmatprep.subr.mxu0 0.0
        %2685 = vmatpush1.msra.mxu0 %v2645
        %2686 = vmatprep.subr.mxu0 0.0
        %2687 = vmatpush2.msra.mxu0 0.0
        %2688 = vmatprep.subr.mxu0 0.0
        %2689 = vmatpush2.msra.mxu0 0.0
        %2690 = vmatprep.subr.mxu0 0.0
        %2691 = vmatpush2.msra.mxu0 0.0
        %2692 = vmatprep.subr.mxu0 0.0
        %2693 = vmatpush2.msra.mxu0 0.0
        %2694 = vmatprep.subr.mxu0 0.0
        %2695 = vmatpush2.msra.mxu0 0.0
        %2696 = vmatprep.subr.mxu0 0.0
        %2697 = vmatpush2.msra.mxu0 0.0
        %2698 = vmatprep.subr.mxu0 0.0
        %2699 = vmatpush2.msra.mxu0 0.0
        %2700 = vmatprep.subr.mxu0 0.0
        %2701 = vmatpush2.msra.mxu0 0.0
        %2702 = vmatprep.subr.mxu0 0.0
        %2703 = vmatpush2.msra.mxu0 0.0
        %2704 = vmatprep.subr.mxu0 0.0
        %2705 = vmatpush2.msra.mxu0 0.0
        %2706 = vmatprep.subr.mxu0 0.0
        %2707 = vmatpush2.msra.mxu0 0.0
        %2708 = vmatprep.subr.mxu0 0.0
        %2709 = vmatpush2.msra.mxu0 0.0
        %2710 = vmatprep.subr.mxu0 0.0
        %2711 = vmatpush2.msra.mxu0 0.0
        %2712 = vmatprep.subr.mxu0 0.0
        %2713 = vmatpush2.msra.mxu0 0.0
        %2714 = vmatprep.subr.mxu0 0.0
        %2715 = vmatpush2.msra.mxu0 0.0
        %2716 = vmatprep.subr.mxu0 0.0
        %2717 = vmatpush2.msra.mxu0 0.0
        %2718 = vmatprep.mubr.f32.mxu0 0.0
        %2719 = vmatmul.mubr.f32.gmra.mxu0 %v2650
        %v2720 = vpop.f32.mrf.mxu0
        %v2721 = vadd.f32 0.0, %v2720
        %v2722 = vpop.f32.mrf.mxu0
        %2723 = vdwg.mxu0
        %2724 = vrot.lane.b32.xlu0 %v2201, 96
        %v2725 = vpop.permute.xlu0 %2724
        %2726 = vrot.lane.b32.xlu0 %v2203, 96
        %v2727 = vpop.permute.xlu0 %2726
        %v2730 = vsel %vm2518, %v2561, 0
        %v2732 = vsel %vm2571, %v2727, 0
        %2734 = vmatprep.subr.mxu0 0.0
        %2735 = vmatpush1.msra.mxu0 0.0
        %2736 = vmatprep.subr.mxu0 0.0
        %2737 = vmatpush1.msra.mxu0 0.0
        %2738 = vmatprep.subr.mxu0 0.0
        %2739 = vmatpush1.msra.mxu0 0.0
        %2740 = vmatprep.subr.mxu0 0.0
        %2741 = vmatpush1.msra.mxu0 0.0
        %2742 = vmatprep.subr.mxu0 0.0
        %2743 = vmatpush1.msra.mxu0 0.0
        %2744 = vmatprep.subr.mxu0 0.0
        %2745 = vmatpush1.msra.mxu0 0.0
        %2746 = vmatprep.subr.mxu0 0.0
        %2747 = vmatpush1.msra.mxu0 0.0
        %2748 = vmatprep.subr.mxu0 0.0
        %2749 = vmatpush1.msra.mxu0 0.0
        %2750 = vmatprep.subr.mxu0 0.0
        %2751 = vmatpush1.msra.mxu0 0.0
        %2752 = vmatprep.subr.mxu0 0.0
        %2753 = vmatpush1.msra.mxu0 0.0
        %2754 = vmatprep.subr.mxu0 0.0
        %2755 = vmatpush1.msra.mxu0 0.0
        %2756 = vmatprep.subr.mxu0 0.0
        %2757 = vmatpush1.msra.mxu0 0.0
        %2758 = vmatprep.subr.mxu0 0.0
        %2759 = vmatpush1.msra.mxu0 0.0
        %2760 = vmatprep.subr.mxu0 0.0
        %2761 = vmatpush1.msra.mxu0 0.0
        %2762 = vmatprep.subr.mxu0 0.0
        %2763 = vmatpush1.msra.mxu0 %v2732
        %2764 = vmatprep.subr.mxu0 0.0
        %2765 = vmatpush1.msra.mxu0 %v2725
        %2766 = vmatprep.subr.mxu0 0.0
        %2767 = vmatpush2.msra.mxu0 0.0
        %2768 = vmatprep.subr.mxu0 0.0
        %2769 = vmatpush2.msra.mxu0 0.0
        %2770 = vmatprep.subr.mxu0 0.0
        %2771 = vmatpush2.msra.mxu0 0.0
        %2772 = vmatprep.subr.mxu0 0.0
        %2773 = vmatpush2.msra.mxu0 0.0
        %2774 = vmatprep.subr.mxu0 0.0
        %2775 = vmatpush2.msra.mxu0 0.0
        %2776 = vmatprep.subr.mxu0 0.0
        %2777 = vmatpush2.msra.mxu0 0.0
        %2778 = vmatprep.subr.mxu0 0.0
        %2779 = vmatpush2.msra.mxu0 0.0
        %2780 = vmatprep.subr.mxu0 0.0
        %2781 = vmatpush2.msra.mxu0 0.0
        %2782 = vmatprep.subr.mxu0 0.0
        %2783 = vmatpush2.msra.mxu0 0.0
        %2784 = vmatprep.subr.mxu0 0.0
        %2785 = vmatpush2.msra.mxu0 0.0
        %2786 = vmatprep.subr.mxu0 0.0
        %2787 = vmatpush2.msra.mxu0 0.0
        %2788 = vmatprep.subr.mxu0 0.0
        %2789 = vmatpush2.msra.mxu0 0.0
        %2790 = vmatprep.subr.mxu0 0.0
        %2791 = vmatpush2.msra.mxu0 0.0
        %2792 = vmatprep.subr.mxu0 0.0
        %2793 = vmatpush2.msra.mxu0 0.0
        %2794 = vmatprep.subr.mxu0 0.0
        %2795 = vmatpush2.msra.mxu0 0.0
        %2796 = vmatprep.subr.mxu0 0.0
        %2797 = vmatpush2.msra.mxu0 0.0
        %2798 = vmatprep.mubr.f32.mxu0 0.0
        %2799 = vmatmul.mubr.f32.gmra.mxu0 %v2730
        %v2800 = vpop.f32.mrf.mxu0
        %v2801 = vadd.f32 0.0, %v2800
        %v2802 = vpop.f32.mrf.mxu0
        %2803 = vdwg.mxu0
        %2804 = vrot.lane.b32.xlu0 %v2205, 96
        %v2805 = vpop.permute.xlu0 %2804
        %2806 = vrot.lane.b32.xlu0 %v2207, 96
        %v2807 = vpop.permute.xlu0 %2806
        %v2810 = vsel %vm2518, %v2562, 0
        %v2812 = vsel %vm2571, %v2807, 0
        %2814 = vmatprep.subr.mxu0 0.0
        %2815 = vmatpush1.msra.mxu0 0.0
        %2816 = vmatprep.subr.mxu0 0.0
        %2817 = vmatpush1.msra.mxu0 0.0
        %2818 = vmatprep.subr.mxu0 0.0
        %2819 = vmatpush1.msra.mxu0 0.0
        %2820 = vmatprep.subr.mxu0 0.0
        %2821 = vmatpush1.msra.mxu0 0.0
        %2822 = vmatprep.subr.mxu0 0.0
        %2823 = vmatpush1.msra.mxu0 0.0
        %2824 = vmatprep.subr.mxu0 0.0
        %2825 = vmatpush1.msra.mxu0 0.0
        %2826 = vmatprep.subr.mxu0 0.0
        %2827 = vmatpush1.msra.mxu0 0.0
        %2828 = vmatprep.subr.mxu0 0.0
        %2829 = vmatpush1.msra.mxu0 0.0
        %2830 = vmatprep.subr.mxu0 0.0
        %2831 = vmatpush1.msra.mxu0 0.0
        %2832 = vmatprep.subr.mxu0 0.0
        %2833 = vmatpush1.msra.mxu0 0.0
        %2834 = vmatprep.subr.mxu0 0.0
        %2835 = vmatpush1.msra.mxu0 0.0
        %2836 = vmatprep.subr.mxu0 0.0
        %2837 = vmatpush1.msra.mxu0 0.0
        %2838 = vmatprep.subr.mxu0 0.0
        %2839 = vmatpush1.msra.mxu0 0.0
        %2840 = vmatprep.subr.mxu0 0.0
        %2841 = vmatpush1.msra.mxu0 0.0
        %2842 = vmatprep.subr.mxu0 0.0
        %2843 = vmatpush1.msra.mxu0 %v2812
        %2844 = vmatprep.subr.mxu0 0.0
        %2845 = vmatpush1.msra.mxu0 %v2805
        %2846 = vmatprep.subr.mxu0 0.0
        %2847 = vmatpush2.msra.mxu0 0.0
        %2848 = vmatprep.subr.mxu0 0.0
        %2849 = vmatpush2.msra.mxu0 0.0
        %2850 = vmatprep.subr.mxu0 0.0
        %2851 = vmatpush2.msra.mxu0 0.0
        %2852 = vmatprep.subr.mxu0 0.0
        %2853 = vmatpush2.msra.mxu0 0.0
        %2854 = vmatprep.subr.mxu0 0.0
        %2855 = vmatpush2.msra.mxu0 0.0
        %2856 = vmatprep.subr.mxu0 0.0
        %2857 = vmatpush2.msra.mxu0 0.0
        %2858 = vmatprep.subr.mxu0 0.0
        %2859 = vmatpush2.msra.mxu0 0.0
        %2860 = vmatprep.subr.mxu0 0.0
        %2861 = vmatpush2.msra.mxu0 0.0
        %2862 = vmatprep.subr.mxu0 0.0
        %2863 = vmatpush2.msra.mxu0 0.0
        %2864 = vmatprep.subr.mxu0 0.0
        %2865 = vmatpush2.msra.mxu0 0.0
        %2866 = vmatprep.subr.mxu0 0.0
        %2867 = vmatpush2.msra.mxu0 0.0
        %2868 = vmatprep.subr.mxu0 0.0
        %2869 = vmatpush2.msra.mxu0 0.0
        %2870 = vmatprep.subr.mxu0 0.0
        %2871 = vmatpush2.msra.mxu0 0.0
        %2872 = vmatprep.subr.mxu0 0.0
        %2873 = vmatpush2.msra.mxu0 0.0
        %2874 = vmatprep.subr.mxu0 0.0
        %2875 = vmatpush2.msra.mxu0 0.0
        %2876 = vmatprep.subr.mxu0 0.0
        %2877 = vmatpush2.msra.mxu0 0.0
        %2878 = vmatprep.mubr.f32.mxu0 0.0
        %2879 = vmatmul.mubr.f32.gmra.mxu0 %v2810
        %v2880 = vpop.f32.mrf.mxu0
        %v2881 = vadd.f32 0.0, %v2880
        %v2882 = vpop.f32.mrf.mxu0
        %2883 = vdwg.mxu0
        %2885 = vrot.lane.b32.xlu0 %v2721, 8
        %v2886 = vpop.permute.xlu0 %2885
        %2889 = vrot.lane.b32.xlu0 %v2801, 16
        %v2890 = vpop.permute.xlu0 %2889
        %2893 = vrot.lane.b32.xlu0 %v2881, 24
        %v2894 = vpop.permute.xlu0 %2893
        %v2896 = vsel %vm1275, %v2641, %v2886
        %v2897 = vsel %vm1939, %v2896, %v2890
        %v2898 = vsel %vm1941, %v2897, %v2894
        %v2899 = vpack.c.bf16 %v2898, %v2898
        %v2900 = vld [vmem:[%s1127] sm:$0xf]
        %v2901 = vld [vmem:[%s1127 + $0x4] sm:$0xf]
        %v2902 = vld [vmem:[%s1127 + $0x8] sm:$0xf]
        %v2903 = vld [vmem:[%s1127 + $0xc] sm:$0xf]
        %v2904 = vld [vmem:[%s1130] sm:$0x1]
        %v2906 = vlaneseq
        %v2907 = vshrl.u32 %v2906, 7
        %v2908 = vsub.s32 0, %v2907
        %v2909 = vrot.slane %v2904, %v2908
        %v2915 = vunpack.c.l.b16 %v2900
        %v2916 = vunpack.c.l.b16 %v2901
        %v2917 = vunpack.c.l.b16 %v2902
        %v2918 = vunpack.c.l.b16 %v2903
        %v2919 = vpack.c.b16 %v2916, %v2915
        %v2920 = vpack.c.b16 %v2918, %v2917
        %v2924 = vsel %vm1214, %v2899, 0
        %2926 = vmatprep.subr.bf16.mxu0 0
        %2927 = vmatpush1.bf16.msra.mxu0 0
        %2928 = vmatprep.subr.bf16.mxu0 0
        %2929 = vmatpush1.bf16.msra.mxu0 0
        %2930 = vmatprep.subr.bf16.mxu0 0
        %2931 = vmatpush1.bf16.msra.mxu0 0
        %2932 = vmatprep.subr.bf16.mxu0 0
        %2933 = vmatpush1.bf16.msra.mxu0 0
        %2934 = vmatprep.subr.bf16.mxu0 0
        %2935 = vmatpush1.bf16.msra.mxu0 0
        %2936 = vmatprep.subr.bf16.mxu0 0
        %2937 = vmatpush1.bf16.msra.mxu0 0
        %2938 = vmatprep.subr.bf16.mxu0 0
        %2939 = vmatpush1.bf16.msra.mxu0 %v2920
        %2940 = vmatprep.subr.bf16.mxu0 0
        %2941 = vmatpush1.bf16.msra.mxu0 %v2919
        %2942 = vmatprep.subr.bf16.mxu0 0
        %2943 = vmatpush2.bf16.msra.mxu0 0
        %2944 = vmatprep.subr.bf16.mxu0 0
        %2945 = vmatpush2.bf16.msra.mxu0 0
        %2946 = vmatprep.subr.bf16.mxu0 0
        %2947 = vmatpush2.bf16.msra.mxu0 0
        %2948 = vmatprep.subr.bf16.mxu0 0
        %2949 = vmatpush2.bf16.msra.mxu0 0
        %2950 = vmatprep.subr.bf16.mxu0 0
        %2951 = vmatpush2.bf16.msra.mxu0 0
        %2952 = vmatprep.subr.bf16.mxu0 0
        %2953 = vmatpush2.bf16.msra.mxu0 0
        %2954 = vmatprep.subr.bf16.mxu0 0
        %2955 = vmatpush2.bf16.msra.mxu0 0
        %2956 = vmatprep.subr.bf16.mxu0 0
        %2957 = vmatpush2.bf16.msra.mxu0 0
        %2958 = vmatprep.mubr.bf16.mxu0 0
        %2959 = vmatmul.mubr.bf16.gmra.mxu0 %v2924
        %v2960 = vpop.f32.mrf.mxu0
        %v2961 = vadd.f32 %v2909, %v2960
        %v2962 = vpop.f32.mrf.mxu0
        %v2963 = vpop.f32.mrf.mxu0
        %v2964 = vpop.f32.mrf.mxu0
        %2965 = vdwg.mxu0
        %v2966 = vadd.f32 %v2961, %v2046
        %v2967 = vsel %vm1214, %v2966, 0.0
        %2968 = vadd.xlane.f32.xlu0 %v2967
        %v2969 = vpop.xlane.xlu0 %2968
        %v2970 = vmul.f32 %v2969, %v2014
        %v2971 = vsub.f32 %v2966, %v2970
        %v2972 = vmul.f32 %v2971, %v2971
        %v2973 = vsel %vm1214, %v2972, 0.0
        %2974 = vadd.xlane.f32.xlu0 %v2973
        %v2975 = vpop.xlane.xlu0 %2974
        %v2976 = vmul.f32 %v2975, %v2014
        %v2977 = vadd.f32 %v2976, 1e-05
        %v2978 = vrsqrt.pop %v2977
        %v2979 = vmul.f32 %v2971, %v2978
        %v2980 = vld [vmem:[%s1133] sm:$0x1]
        %v2982 = vlaneseq
        %v2983 = vshrl.u32 %v2982, 7
        %v2984 = vsub.s32 0, %v2983
        %v2985 = vrot.slane %v2980, %v2984
        %v2987 = vmul.f32 %v2979, %v2985
        %v2988 = vld [vmem:[%s1136] sm:$0x1]
        %v2990 = vlaneseq
        %v2991 = vshrl.u32 %v2990, 7
        %v2992 = vsub.s32 0, %v2991
        %v2993 = vrot.slane %v2988, %v2992
        %v2995 = vadd.f32 %v2987, %v2993
        %v2996 = vmul.f32 %v2995, %v2044
        %v2997 = vpack.c.bf16 %v2996, %v2996
        %v2998 = vld [vmem:[%s1141] sm:$0xf]
        %v2999 = vld [vmem:[%s1141 + $0x4] sm:$0xf]
        %v3000 = vld [vmem:[%s1141 + $0x8] sm:$0xf]
        %v3001 = vld [vmem:[%s1141 + $0xc] sm:$0xf]
        %v3002 = vld [vmem:[%s1144] sm:$0x1]
        %v3004 = vlaneseq
        %v3005 = vshrl.u32 %v3004, 7
        %v3006 = vsub.s32 0, %v3005
        %v3007 = vrot.slane %v3002, %v3006
        %v3013 = vunpack.c.l.b16 %v2998
        %v3014 = vunpack.c.l.b16 %v2999
        %v3015 = vunpack.c.l.b16 %v3000
        %v3016 = vunpack.c.l.b16 %v3001
        %v3017 = vpack.c.b16 %v3014, %v3013
        %v3018 = vpack.c.b16 %v3016, %v3015
        %v3022 = vsel %vm1214, %v2997, 0
        %3024 = vmatprep.subr.bf16.mxu0 0
        %3025 = vmatpush1.bf16.msra.mxu0 0
        %3026 = vmatprep.subr.bf16.mxu0 0
        %3027 = vmatpush1.bf16.msra.mxu0 0
        %3028 = vmatprep.subr.bf16.mxu0 0
        %3029 = vmatpush1.bf16.msra.mxu0 0
        %3030 = vmatprep.subr.bf16.mxu0 0
        %3031 = vmatpush1.bf16.msra.mxu0 0
        %3032 = vmatprep.subr.bf16.mxu0 0
        %3033 = vmatpush1.bf16.msra.mxu0 0
        %3034 = vmatprep.subr.bf16.mxu0 0
        %3035 = vmatpush1.bf16.msra.mxu0 0
        %3036 = vmatprep.subr.bf16.mxu0 0
        %3037 = vmatpush1.bf16.msra.mxu0 %v3018
        %3038 = vmatprep.subr.bf16.mxu0 0
        %3039 = vmatpush1.bf16.msra.mxu0 %v3017
        %3040 = vmatprep.subr.bf16.mxu0 0
        %3041 = vmatpush2.bf16.msra.mxu0 0
        %3042 = vmatprep.subr.bf16.mxu0 0
        %3043 = vmatpush2.bf16.msra.mxu0 0
        %3044 = vmatprep.subr.bf16.mxu0 0
        %3045 = vmatpush2.bf16.msra.mxu0 0
        %3046 = vmatprep.subr.bf16.mxu0 0
        %3047 = vmatpush2.bf16.msra.mxu0 0
        %3048 = vmatprep.subr.bf16.mxu0 0
        %3049 = vmatpush2.bf16.msra.mxu0 0
        %3050 = vmatprep.subr.bf16.mxu0 0
        %3051 = vmatpush2.bf16.msra.mxu0 0
        %3052 = vmatprep.subr.bf16.mxu0 0
        %3053 = vmatpush2.bf16.msra.mxu0 0
        %3054 = vmatprep.subr.bf16.mxu0 0
        %3055 = vmatpush2.bf16.msra.mxu0 0
        %3056 = vmatprep.mubr.bf16.mxu0 0
        %3057 = vmatmul.mubr.bf16.gmra.mxu0 %v3022
        %v3058 = vpop.f32.mrf.mxu0
        %v3059 = vadd.f32 %v3007, %v3058
        %v3060 = vpop.f32.mrf.mxu0
        %v3061 = vpop.f32.mrf.mxu0
        %v3062 = vpop.f32.mrf.mxu0
        %3063 = vdwg.mxu0
        %v3064 = vmax.f32 %v3059, 0.0
        %v3065 = vpack.c.bf16 %v3064, %v3064
        %v3066 = vld [vmem:[%s1149] sm:$0xf]
        %v3067 = vld [vmem:[%s1149 + $0x4] sm:$0xf]
        %v3068 = vld [vmem:[%s1149 + $0x8] sm:$0xf]
        %v3069 = vld [vmem:[%s1149 + $0xc] sm:$0xf]
        %v3070 = vld [vmem:[%s1149 + $0x10] sm:$0xf]
        %v3071 = vld [vmem:[%s1149 + $0x14] sm:$0xf]
        %v3072 = vld [vmem:[%s1149 + $0x18] sm:$0xf]
        %v3073 = vld [vmem:[%s1149 + $0x1c] sm:$0xf]
        %v3074 = vld [vmem:[%s1152] sm:$0x1]
        %v3076 = vlaneseq
        %v3077 = vshrl.u32 %v3076, 7
        %v3078 = vsub.s32 0, %v3077
        %v3079 = vrot.slane %v3074, %v3078
        %v3089 = vunpack.c.l.b16 %v3066
        %v3090 = vunpack.c.l.b16 %v3067
        %v3091 = vunpack.c.l.b16 %v3068
        %v3092 = vunpack.c.l.b16 %v3069
        %v3093 = vunpack.c.l.b16 %v3070
        %v3094 = vunpack.c.l.b16 %v3071
        %v3095 = vunpack.c.l.b16 %v3072
        %v3096 = vunpack.c.l.b16 %v3073
        %v3097 = vpack.c.b16 %v3090, %v3089
        %v3098 = vpack.c.b16 %v3092, %v3091
        %v3099 = vpack.c.b16 %v3094, %v3093
        %v3100 = vpack.c.b16 %v3096, %v3095
        %vm3105 = vcmask 523264
        %v3107 = vsel %vm3105, %v3065, 0
        %3109 = vmatprep.subr.bf16.mxu0 0
        %3110 = vmatpush1.bf16.msra.mxu0 0
        %3111 = vmatprep.subr.bf16.mxu0 0
        %3112 = vmatpush1.bf16.msra.mxu0 0
        %3113 = vmatprep.subr.bf16.mxu0 0
        %3114 = vmatpush1.bf16.msra.mxu0 0
        %3115 = vmatprep.subr.bf16.mxu0 0
        %3116 = vmatpush1.bf16.msra.mxu0 0
        %3117 = vmatprep.subr.bf16.mxu0 0
        %3118 = vmatpush1.bf16.msra.mxu0 %v3100
        %3119 = vmatprep.subr.bf16.mxu0 0
        %3120 = vmatpush1.bf16.msra.mxu0 %v3099
        %3121 = vmatprep.subr.bf16.mxu0 0
        %3122 = vmatpush1.bf16.msra.mxu0 %v3098
        %3123 = vmatprep.subr.bf16.mxu0 0
        %3124 = vmatpush1.bf16.msra.mxu0 %v3097
        %3125 = vmatprep.subr.bf16.mxu0 0
        %3126 = vmatpush2.bf16.msra.mxu0 0
        %3127 = vmatprep.subr.bf16.mxu0 0
        %3128 = vmatpush2.bf16.msra.mxu0 0
        %3129 = vmatprep.subr.bf16.mxu0 0
        %3130 = vmatpush2.bf16.msra.mxu0 0
        %3131 = vmatprep.subr.bf16.mxu0 0
        %3132 = vmatpush2.bf16.msra.mxu0 0
        %3133 = vmatprep.subr.bf16.mxu0 0
        %3134 = vmatpush2.bf16.msra.mxu0 0
        %3135 = vmatprep.subr.bf16.mxu0 0
        %3136 = vmatpush2.bf16.msra.mxu0 0
        %3137 = vmatprep.subr.bf16.mxu0 0
        %3138 = vmatpush2.bf16.msra.mxu0 0
        %3139 = vmatprep.subr.bf16.mxu0 0
        %3140 = vmatpush2.bf16.msra.mxu0 0
        %3141 = vmatprep.mubr.bf16.mxu0 0
        %3142 = vmatmul.mubr.bf16.gmra.mxu0 %v3107
        %v3143 = vpop.f32.mrf.mxu0
        %v3144 = vadd.f32 %v3079, %v3143
        %v3145 = vpop.f32.mrf.mxu0
        %v3146 = vpop.f32.mrf.mxu0
        %v3147 = vpop.f32.mrf.mxu0
        %3148 = vdwg.mxu0
        %v3149 = vadd.f32 %v3144, %v2996
        %v3150 = vsel %vm1214, %v3149, 0.0
        %3151 = vadd.xlane.f32.xlu0 %v3150
        %v3152 = vpop.xlane.xlu0 %3151
        %v3153 = vmul.f32 %v3152, %v2014
        %v3154 = vsub.f32 %v3149, %v3153
        %v3155 = vmul.f32 %v3154, %v3154
        %v3156 = vsel %vm1214, %v3155, 0.0
        %3157 = vadd.xlane.f32.xlu0 %v3156
        %v3158 = vpop.xlane.xlu0 %3157
        %v3159 = vmul.f32 %v3158, %v2014
        %v3160 = vadd.f32 %v3159, 1e-05
        %v3161 = vrsqrt.pop %v3160
        %v3162 = vmul.f32 %v3154, %v3161
        %v3163 = vld [vmem:[%s1155] sm:$0x1]
        %v3165 = vlaneseq
        %v3166 = vshrl.u32 %v3165, 7
        %v3167 = vsub.s32 0, %v3166
        %v3168 = vrot.slane %v3163, %v3167
        %v3170 = vmul.f32 %v3162, %v3168
        %v3171 = vld [vmem:[%s1158] sm:$0x1]
        %v3173 = vlaneseq
        %v3174 = vshrl.u32 %v3173, 7
        %v3175 = vsub.s32 0, %v3174
        %v3176 = vrot.slane %v3171, %v3175
        %v3178 = vadd.f32 %v3170, %v3176
        %v3179 = vmul.f32 %v3178, %v2044
        %3180 = vst.msk [vmem:[#allocation2] sm:$0xff] %vm1214, %v3179
        %3181 = vst.msk [vmem:[%s1065] sm:$0xff] %vm1214, %v3179
        %s3182 = sand.u32 %s709, 1
        %s3183 = scalar_lea.sflag [#allocation4], %s3182
        %s3184 = sand.u32 %s709, 1
        %s3185 = smul.addr %s3184, 8
        %s3186 = scalar_lea.vmem [#allocation3], %s3185
        // Predicated region
        $region125: #{decoder_forward.1} parent=119 // pred_check
          %p3187 = pneg %p719
        $region126: #{decoder_forward.1} parent=119 // pred_check_branch
          %3189 = sbr.rel (%p3187) target = $region128
        $region127: #{decoder_forward.1} parent=119 // pred_region
          %s3191 = ssub.s32 128, 128
          %3192 = vsyncadd %s3183, %s3191
          %s3193 = smul.addr %s43, 128
          %s3194 = scalar_lea.hbm %s25, %s3193
          %s3196 = sshll.u32 %s3186, 4
          %s3197 = int_to_ptr.vmem [resolvable:$true] %s3196
          %3199 = dma.vmem_to_hbm [thread:$0]  %s3197, 128, %s3194, %s3183
        $region128: #{decoder_forward.1} parent=119 // pred_fallthru
          _
      $region120: #{decoder_forward.1} parent=5 // pred_fallthru
        _
      %p3200 = scmp.le.s32.totalorder 2, %s34
      // Predicated region
      $region129: #{decoder_forward.1} parent=5 // pred_check
        %p3201 = pneg %p3200
      $region130: #{decoder_forward.1} parent=5 // pred_check_branch
        %3203 = sbr.rel (%p3201) target = $region132
      $region131: #{decoder_forward.1} parent=5 // pred_region
        %s3204 = ssub.s32 %s34, 2
        // Predicated region
        $region133: #{decoder_forward.1} parent=131 // pred_check
          %p3205 = pneg %p725
        $region134: #{decoder_forward.1} parent=131 // pred_check_branch
          %3207 = sbr.rel (%p3205) target = $region136
        $region135: #{decoder_forward.1} parent=131 // pred_region
          %s3208 = sand.u32 %s710, 1
          %s3209 = scalar_lea.sflag [#allocation4], %s3208
          %s3210 = sand.u32 %s710, 1
          %s3211 = smul.addr %s3210, 8
          %s3212 = scalar_lea.vmem [#allocation3], %s3211
          %3213 = dma.done %s3209, 128
        $region136: #{decoder_forward.1} parent=131 // pred_fallthru
          _
      $region132: #{decoder_forward.1} parent=5 // pred_fallthru
        _
    $region6: #{decoder_forward.1} parent=1 // loop_footer
      %s38 = sadd.s32 1, %s34
    $region7: #{decoder_forward.1} parent=1 // loop_footer_branch
      %33 = sbr.rel target = $region3
    $region8: #{decoder_forward.1} parent=1 // loop_exit
      _
    %3214 = vsyncpa [#allocation4], 1
    %s3215 = scalar_lea.sflag [#allocation4], 1
    %3216 = vsyncpa %s3215, 1

</llo_original>
